<compile_context>
chip_gen: v6e
topology: v6e:2x2x1
jax: 0.10.0
libtpu: 0.0.40
codegen_flags: <defaults>
</compile_context>

<pallas_src>
import jax
import jax.numpy as jnp
from jax import lax
from jax.experimental import pallas as pl
from jax.experimental.pallas import tpu as pltpu

EXPANSION = 4
BN_EPS = 1e-5
LANE = 128


def _round_up(x, m):
    return ((x + m - 1) // m) * m


def _pick_tile_h(H, W, target_rows=512):
    """Largest TILE_H dividing H with TILE_H*W <= ~target_rows flattened rows."""
    best = H
    for th in range(1, H + 1):
        if H % th != 0:
            continue
        rows = th * W
        if rows > max(target_rows, W):
            break
        if rows % 8 == 0 or th == H:
            best = th
    return best


def _make_kernel(H, W, T, HALO, HW):
    def kernel(x_ref, w1_ref, b1_ref, w2_ref, b2_ref, w3_ref, b3_ref, out_ref):
        t = pl.program_id(1)
        row0 = t * T                        # first (unpadded) flat pixel of tile
        if T % 8 == 0:
            row0 = pl.multiple_of(row0, 8)

        # tile + halo rows of the zero-padded input image: (T + 2*HALO, Cin_p)
        x_halo = x_ref[pl.ds(row0, T + 2 * HALO), :]

        # ---- conv1 (1x1, BN scale folded into weights) + bias + relu ----
        h1 = jnp.dot(x_halo.astype(jnp.bfloat16), w1_ref[...],
                     preferred_element_type=jnp.float32)
        h1 = jnp.maximum(h1 + b1_ref[...], 0.0)

        # flat image index of every halo-slab row; rows outside the image must
        # act as conv2's zero padding (not relu(bias1)).
        g = (row0 - HALO) + lax.broadcasted_iota(jnp.int32, (T + 2 * HALO, 1), 0)
        h1 = jnp.where((g >= 0) & (g < HW), h1, 0.0)

        # One bf16 cast + two column-masked variants of the full halo slab.
        # Masking the SOURCE pixel's column (== W-1 for dx=-1 taps, == 0 for
        # dx=+1 taps) is exactly equivalent to masking the destination's
        # left/right image border.
        col = jnp.mod(g, W)
        h1_bf = h1.astype(jnp.bfloat16)                       # dx == 0 taps
        h1_dxm1 = jnp.where(col != W - 1, h1_bf, 0.0)         # dx == -1 taps
        h1_dxp1 = jnp.where(col != 0, h1_bf, 0.0)             # dx == +1 taps

        # ---- conv2 (3x3, stride 1, pad 1) as ONE im2col matmul ----
        taps = []
        for dy in (-1, 0, 1):
            for dx in (-1, 0, 1):
                src = h1_dxm1 if dx == -1 else (h1_dxp1 if dx == 1 else h1_bf)
                s = dy * W + dx
                taps.append(src[HALO + s: HALO + s + T, :])   # static slice
        im2col = jnp.concatenate(taps, axis=1)                # (T, 9*Cmid_p) bf16
        h2 = jnp.dot(im2col, w2_ref[...], preferred_element_type=jnp.float32)
        h2 = jnp.maximum(h2 + b2_ref[...], 0.0)

        # ---- conv3 (1x1) + bias + identity residual + relu ----
        h3 = jnp.dot(h2.astype(jnp.bfloat16), w3_ref[...],
                     preferred_element_type=jnp.float32)
        h3 = h3 + b3_ref[...]
        res = x_ref[pl.ds(row0 + HALO, T), :]                 # f32 residual (Cin_p==Cout_p)
        out_ref[...] = jnp.maximum(h3 + res, 0.0)

    return kernel


def resnet_block_pallas(x_nchw, p):
    N, Cin, H, W = x_nchw.shape
    Cmid = p["w1"].shape[0]
    Cout = p["w3"].shape[0]
    assert Cin == Cout, "identity residual requires in_channels == out_channels"

    HW = H * W
    HALO = W + 1
    TILE_H = _pick_tile_h(H, W)
    T = TILE_H * W
    num_t = HW // T

    Cin_p = _round_up(Cin, LANE)
    Cmid_p = _round_up(Cmid, LANE)
    Cout_p = _round_up(Cout, LANE)
    HP = _round_up(HW + 2 * HALO, 8)      # padded rows per image (top+bottom halo)
    pad_bot = HP - (HW + HALO)

    # NCHW -> NHWC -> (N, HW, Cin); pad channels to the lane width, add zero
    # halo rows above/below each image (used as conv2 zero padding in y).
    # TODO(synk): the NCHW<->NHWC transposes disappear if the model stays NHWC.
    x_nhwc = jnp.transpose(x_nchw, (0, 2, 3, 1)).reshape(N, HW, Cin)
    x_pad = jnp.pad(x_nhwc.astype(jnp.float32),
                    ((0, 0), (HALO, pad_bot), (0, Cin_p - Cin)))

    def bn_fold(gamma, beta, mean, var, conv_b, cp):
        scale = gamma / jnp.sqrt(var + BN_EPS)                 # folded into weights
        bias = beta + (conv_b - mean) * scale
        bias = jnp.pad(bias.astype(jnp.float32), (0, cp - bias.shape[0]))
        return scale, bias.reshape(1, cp)

    s1, b1 = bn_fold(p["g1"], p["be1"], p["m1"], p["v1"], p["b1"], Cmid_p)
    s2, b2 = bn_fold(p["g2"], p["be2"], p["m2"], p["v2"], p["b2"], Cmid_p)
    s3, b3 = bn_fold(p["g3"], p["be3"], p["m3"], p["v3"], p["b3"], Cout_p)

    # PyTorch conv weight layout is (Cout, Cin, KH, KW); fold the BN scale into
    # the output channels (f32), then pad + cast to bf16 MXU weights.
    w1 = p["w1"][:, :, 0, 0].T * s1[None, :]                  # (Cin, Cmid)
    w1 = jnp.pad(w1, ((0, Cin_p - Cin), (0, Cmid_p - Cmid))).astype(jnp.bfloat16)

    w2_hwio = jnp.transpose(p["w2"], (2, 3, 1, 0)) * s2[None, None, None, :]
    w2 = jnp.pad(w2_hwio, ((0, 0), (0, 0),
                           (0, Cmid_p - Cmid), (0, Cmid_p - Cmid)))
    w2 = w2.reshape(9 * Cmid_p, Cmid_p).astype(jnp.bfloat16)  # tap-major, matches im2col

    w3 = p["w3"][:, :, 0, 0].T * s3[None, :]                  # (Cmid, Cout)
    w3 = jnp.pad(w3, ((0, Cmid_p - Cmid), (0, Cout_p - Cout))).astype(jnp.bfloat16)

    kernel = _make_kernel(H, W, T, HALO, HW)

    def full2d(a):
        return pl.BlockSpec(a.shape, lambda n, t: (0, 0))

    # Rough per-step VMEM estimate -> explicit scoped-VMEM limit (raises v5e's
    # 16 MiB default; stays well under v7x's 64 MiB physical VMEM).
    est = (2 * HP * Cin_p * 4                                  # input slab (dbl-buf)
           + 2 * T * Cout_p * 4                                # output tile (dbl-buf)
           + 2 * 2 * (Cin_p * Cmid_p + 9 * Cmid_p * Cmid_p + Cmid_p * Cout_p)
           + (T + 2 * HALO) * Cmid_p * (4 + 3 * 2)             # h1 f32 + 3 bf16 slabs
           + 2 * T * 9 * Cmid_p * 2                            # im2col
           + 4 * T * Cmid_p * 4)                               # h2/h3 temporaries
    vmem_limit = int(min(48 * 2**20, max(4 * est, 32 * 2**20)))

    out_p = pl.pallas_call(
        kernel,
        out_shape=jax.ShapeDtypeStruct((N, HW, Cout_p), jnp.float32),
        grid=(N, num_t),
        in_specs=[
            # per-image padded slab, resident across the spatial-tile axis
            pl.BlockSpec((None, HP, Cin_p), lambda n, t: (n, 0, 0)),
            full2d(w1), full2d(b1),
            full2d(w2), full2d(b2),
            full2d(w3), full2d(b3),
        ],
        out_specs=pl.BlockSpec((None, T, Cout_p), lambda n, t: (n, t, 0)),
        compiler_params=pltpu.CompilerParams(
            dimension_semantics=("parallel", "parallel"),
            vmem_limit_bytes=vmem_limit),
    )(x_pad, w1, b1, w2, b2, w3, b3)

    out = out_p[:, :, :Cout].reshape(N, H, W, Cout)
    return jnp.transpose(out, (0, 3, 1, 2))                  # back to NCHW


def resnet_block_reference(x_nchw, p):
    # Pure-JAX f32 reference (eval-mode BN), used only for a correctness check.
    x = jnp.transpose(x_nchw, (0, 2, 3, 1))                  # NHWC

    def bn(y, g, b, m, v):
        return (y - m) / jnp.sqrt(v + BN_EPS) * g + b

    h = jnp.einsum('nhwc,oc->nhwo', x, p["w1"][:, :, 0, 0]) + p["b1"]
    h = jax.nn.relu(bn(h, p["g1"], p["be1"], p["m1"], p["v1"]))
    h = lax.conv_general_dilated(
        h, jnp.transpose(p["w2"], (2, 3, 1, 0)),
        window_strides=(1, 1), padding=((1, 1), (1, 1)),
        dimension_numbers=('NHWC', 'HWIO', 'NHWC')) + p["b2"]
    h = jax.nn.relu(bn(h, p["g2"], p["be2"], p["m2"], p["v2"]))
    h = jnp.einsum('nhwc,oc->nhwo', h, p["w3"][:, :, 0, 0]) + p["b3"]
    h = bn(h, p["g3"], p["be3"], p["m3"], p["v3"])
    h = jax.nn.relu(h + x)
    return jnp.transpose(h, (0, 3, 1, 2))


def make_params(key, in_channels, intermediate_channels):
    cmid = intermediate_channels
    cout = intermediate_channels * EXPANSION
    ks = jax.random.split(key, 16)
    f32 = jnp.float32
    return {
        "w1": 0.1 * jax.random.normal(ks[0], (cmid, in_channels, 1, 1), f32),
        "b1": 0.05 * jax.random.normal(ks[1], (cmid,), f32),
        "w2": 0.1 * jax.random.normal(ks[2], (cmid, cmid, 3, 3), f32),
        "b2": 0.05 * jax.random.normal(ks[3], (cmid,), f32),
        "w3": 0.1 * jax.random.normal(ks[4], (cout, cmid, 1, 1), f32),
        "b3": 0.05 * jax.random.normal(ks[5], (cout,), f32),
        # BatchNorm (gamma, beta, running_mean, running_var) per layer.
        "g1": 1.0 + 0.1 * jax.random.normal(ks[6], (cmid,), f32),
        "be1": 0.05 * jax.random.normal(ks[7], (cmid,), f32),
        "m1": 0.05 * jax.random.normal(ks[8], (cmid,), f32),
        "v1": 1.0 + 0.2 * jax.random.uniform(ks[9], (cmid,), f32),
        "g2": 1.0 + 0.1 * jax.random.normal(ks[10], (cmid,), f32),
        "be2": 0.05 * jax.random.normal(ks[11], (cmid,), f32),
        "m2": 0.05 * jax.random.normal(ks[12], (cmid,), f32),
        "v2": 1.0 + 0.2 * jax.random.uniform(ks[13], (cmid,), f32),
        "g3": 1.0 + 0.1 * jax.random.normal(ks[14], (cout,), f32),
        "be3": 0.05 * jax.random.normal(ks[15], (cout,), f32),
        "m3": jnp.zeros((cout,), f32),
        "v3": jnp.ones((cout,), f32),
    }


if __name__ == "__main__":
    # batch=2, in_channels=16, intermediate_channels=4, expansion=4 ->
    # out_channels=16 (identity residual valid), spatial 16x16, stride=1.
    N, Cin, H, W = 2, 16, 16, 16
    Cmid = 4

    key = jax.random.PRNGKey(0)
    kx, kp = jax.random.split(key)
    x = jax.random.normal(kx, (N, Cin, H, W), jnp.float32)
    params = make_params(kp, Cin, Cmid)

    out = jax.block_until_ready(resnet_block_pallas(x, params))
    ref = jax.block_until_ready(resnet_block_reference(x, params))

    assert out.shape == (N, Cmid * EXPANSION, H, W)
    # bf16 MXU inputs (f32 accumulation) -> slightly looser tolerance than pure f32.
    if not jnp.allclose(out, ref, rtol=1e-2, atol=1e-2):
        max_err = jnp.max(jnp.abs(out - ref))
        raise AssertionError(f"Pallas output mismatch, max abs err = {max_err}")

    print("KERNEL_OK")
</pallas_src>

<mosaic_0001>
module attributes {stable_mosaic.version = 11 : i64} {
  func.func @kernel(%arg0: i32, %arg1: i32, %arg2: memref<1x296x128xf32, #tpu.memory_space<vmem>>, %arg3: memref<128x128xbf16, #tpu.memory_space<vmem>>, %arg4: memref<1x128xf32, #tpu.memory_space<vmem>>, %arg5: memref<1152x128xbf16, #tpu.memory_space<vmem>>, %arg6: memref<1x128xf32, #tpu.memory_space<vmem>>, %arg7: memref<128x128xbf16, #tpu.memory_space<vmem>>, %arg8: memref<1x128xf32, #tpu.memory_space<vmem>>, %arg9: memref<1x256x128xf32, #tpu.memory_space<vmem>>) attributes {dimension_semantics = [#tpu.dimension_semantics<parallel>, #tpu.dimension_semantics<parallel>], iteration_bounds = array<i64: 2, 1>, scalar_prefetch = 0 : i64, scratch_operands = 0 : i64, tpu.core_type = #tpu.core_type<tc>, window_params = [{transform_indices = @transform_0, window_bounds = array<i64: 1, 296, 128>}, {pipeline_mode = #tpu.pipeline_mode<synchronous>, transform_indices = @transform_1, window_bounds = array<i64: 128, 128>}, {pipeline_mode = #tpu.pipeline_mode<synchronous>, transform_indices = @transform_2, window_bounds = array<i64: 1, 128>}, {pipeline_mode = #tpu.pipeline_mode<synchronous>, transform_indices = @transform_3, window_bounds = array<i64: 1152, 128>}, {pipeline_mode = #tpu.pipeline_mode<synchronous>, transform_indices = @transform_4, window_bounds = array<i64: 1, 128>}, {pipeline_mode = #tpu.pipeline_mode<synchronous>, transform_indices = @transform_5, window_bounds = array<i64: 128, 128>}, {pipeline_mode = #tpu.pipeline_mode<synchronous>, transform_indices = @transform_6, window_bounds = array<i64: 1, 128>}, {transform_indices = @transform_7, window_bounds = array<i64: 1, 256, 128>}]} {
    %c256_i32 = arith.constant 256 : i32
    %0 = arith.muli %arg1, %c256_i32 : i32
    %1 = tpu.assume_multiple %0, 8 : i32
    %c0 = arith.constant 0 : index
    %2 = arith.index_cast %1 : i32 to index
    %c0_0 = arith.constant 0 : index
    %3 = vector.load %arg2[%c0, %2, %c0_0] : memref<1x296x128xf32, #tpu.memory_space<vmem>>, vector<1x290x128xf32>
    %4 = vector.shape_cast %3 : vector<1x290x128xf32> to vector<290x128xf32>
    %5 = arith.truncf %4 : vector<290x128xf32> to vector<290x128xbf16>
    %c0_1 = arith.constant 0 : index
    %c0_2 = arith.constant 0 : index
    %6 = vector.load %arg3[%c0_1, %c0_2] : memref<128x128xbf16, #tpu.memory_space<vmem>>, vector<128x128xbf16>
    %cst = arith.constant dense<0.000000e+00> : vector<290x128xf32>
    %7 = tpu.matmul %5, %6, %cst {dimension_numbers = #tpu.dot_dimension_numbers<[1], [0], [0], [1], [0, 0, 1, 1], [], []>} : vector<290x128xbf16>, vector<128x128xbf16>, vector<290x128xf32> -> vector<290x128xf32>
    %c0_3 = arith.constant 0 : index
    %c0_4 = arith.constant 0 : index
    %8 = vector.load %arg4[%c0_3, %c0_4] : memref<1x128xf32, #tpu.memory_space<vmem>>, vector<1x128xf32>
    %9 = vector.broadcast %8 : vector<1x128xf32> to vector<290x128xf32>
    %10 = arith.addf %7, %9 : vector<290x128xf32>
    %cst_5 = arith.constant 0.000000e+00 : f32
    %11 = vector.broadcast %cst_5 : f32 to vector<290x128xf32>
    %12 = arith.maximumf %10, %11 : vector<290x128xf32>
    %c17_i32 = arith.constant 17 : i32
    %13 = arith.subi %1, %c17_i32 : i32
    %14 = tpu.iota {dimensions = array<i32: 0>} : vector<290x1xi32>
    %15 = vector.broadcast %13 : i32 to vector<290x1xi32>
    %16 = arith.addi %15, %14 : vector<290x1xi32>
    %c0_i32 = arith.constant 0 : i32
    %17 = vector.broadcast %c0_i32 : i32 to vector<290x1xi32>
    %18 = arith.cmpi sge, %16, %17 : vector<290x1xi32>
    %c256_i32_6 = arith.constant 256 : i32
    %19 = vector.broadcast %c256_i32_6 : i32 to vector<290x1xi32>
    %20 = arith.cmpi slt, %16, %19 : vector<290x1xi32>
    %21 = arith.andi %18, %20 : vector<290x1xi1>
    %cst_7 = arith.constant 0.000000e+00 : f32
    %22 = vector.shape_cast %21 : vector<290x1xi1> to vector<290x1xi1>
    %23 = vector.broadcast %22 : vector<290x1xi1> to vector<290x128xi1>
    %24 = vector.broadcast %cst_7 : f32 to vector<290x128xf32>
    %25 = arith.select %23, %12, %24 : vector<290x128xi1>, vector<290x128xf32>
    %c16_i32 = arith.constant 16 : i32
    %c0_i32_8 = arith.constant 0 : i32
    %26 = arith.cmpi eq, %c16_i32, %c0_i32_8 : i32
    %c1_i32 = arith.constant 1 : i32
    %27 = arith.select %26, %c1_i32, %c16_i32 : i32
    %28 = vector.broadcast %27 : i32 to vector<290x1xi32>
    %29 = arith.remsi %16, %28 : vector<290x1xi32>
    %c0_i32_9 = arith.constant 0 : i32
    %30 = vector.broadcast %c0_i32_9 : i32 to vector<290x1xi32>
    %31 = arith.cmpi ne, %29, %30 : vector<290x1xi32>
    %c0_i32_10 = arith.constant 0 : i32
    %32 = vector.broadcast %c0_i32_10 : i32 to vector<290x1xi32>
    %33 = arith.cmpi slt, %29, %32 : vector<290x1xi32>
    %c0_i32_11 = arith.constant 0 : i32
    %34 = arith.cmpi slt, %27, %c0_i32_11 : i32
    %35 = vector.broadcast %34 : i1 to vector<290x1xi1>
    %36 = vector.broadcast %35 : vector<290x1xi1> to vector<290x1xi1>
    %37 = arith.xori %33, %36 : vector<290x1xi1>
    %38 = arith.andi %37, %31 : vector<290x1xi1>
    %39 = vector.broadcast %27 : i32 to vector<290x1xi32>
    %40 = arith.addi %29, %39 : vector<290x1xi32>
    %41 = arith.select %38, %40, %29 : vector<290x1xi1>, vector<290x1xi32>
    %42 = arith.truncf %25 : vector<290x128xf32> to vector<290x128xbf16>
    %c15_i32 = arith.constant 15 : i32
    %43 = vector.broadcast %c15_i32 : i32 to vector<290x1xi32>
    %44 = arith.cmpi ne, %41, %43 : vector<290x1xi32>
    %cst_12 = arith.constant 0.000000e+00 : f32
    %45 = arith.truncf %cst_12 : f32 to bf16
    %46 = vector.shape_cast %44 : vector<290x1xi1> to vector<290x1xi1>
    %47 = vector.broadcast %46 : vector<290x1xi1> to vector<290x128xi1>
    %48 = vector.broadcast %45 : bf16 to vector<290x128xbf16>
    %49 = arith.select %47, %42, %48 : vector<290x128xi1>, vector<290x128xbf16>
    %c0_i32_13 = arith.constant 0 : i32
    %50 = vector.broadcast %c0_i32_13 : i32 to vector<290x1xi32>
    %51 = arith.cmpi ne, %41, %50 : vector<290x1xi32>
    %cst_14 = arith.constant 0.000000e+00 : f32
    %52 = arith.truncf %cst_14 : f32 to bf16
    %53 = vector.shape_cast %51 : vector<290x1xi1> to vector<290x1xi1>
    %54 = vector.broadcast %53 : vector<290x1xi1> to vector<290x128xi1>
    %55 = vector.broadcast %52 : bf16 to vector<290x128xbf16>
    %56 = arith.select %54, %42, %55 : vector<290x128xi1>, vector<290x128xbf16>
    %57 = vector.extract_strided_slice %49 {offsets = [0, 0], sizes = [256, 128], strides = [1, 1]} : vector<290x128xbf16> to vector<256x128xbf16>
    %58 = vector.extract_strided_slice %42 {offsets = [1, 0], sizes = [256, 128], strides = [1, 1]} : vector<290x128xbf16> to vector<256x128xbf16>
    %59 = vector.extract_strided_slice %56 {offsets = [2, 0], sizes = [256, 128], strides = [1, 1]} : vector<290x128xbf16> to vector<256x128xbf16>
    %60 = vector.extract_strided_slice %49 {offsets = [16, 0], sizes = [256, 128], strides = [1, 1]} : vector<290x128xbf16> to vector<256x128xbf16>
    %61 = vector.extract_strided_slice %42 {offsets = [17, 0], sizes = [256, 128], strides = [1, 1]} : vector<290x128xbf16> to vector<256x128xbf16>
    %62 = vector.extract_strided_slice %56 {offsets = [18, 0], sizes = [256, 128], strides = [1, 1]} : vector<290x128xbf16> to vector<256x128xbf16>
    %63 = vector.extract_strided_slice %49 {offsets = [32, 0], sizes = [256, 128], strides = [1, 1]} : vector<290x128xbf16> to vector<256x128xbf16>
    %64 = vector.extract_strided_slice %42 {offsets = [33, 0], sizes = [256, 128], strides = [1, 1]} : vector<290x128xbf16> to vector<256x128xbf16>
    %65 = vector.extract_strided_slice %56 {offsets = [34, 0], sizes = [256, 128], strides = [1, 1]} : vector<290x128xbf16> to vector<256x128xbf16>
    %66 = tpu.concatenate %57, %58, %59, %60, %61, %62, %63, %64, %65 in 1 : vector<256x128xbf16>, vector<256x128xbf16>, vector<256x128xbf16>, vector<256x128xbf16>, vector<256x128xbf16>, vector<256x128xbf16>, vector<256x128xbf16>, vector<256x128xbf16>, vector<256x128xbf16> -> vector<256x1152xbf16>
    %c0_15 = arith.constant 0 : index
    %c0_16 = arith.constant 0 : index
    %67 = vector.load %arg5[%c0_15, %c0_16] : memref<1152x128xbf16, #tpu.memory_space<vmem>>, vector<1152x128xbf16>
    %cst_17 = arith.constant dense<0.000000e+00> : vector<256x128xf32>
    %68 = tpu.matmul %66, %67, %cst_17 {dimension_numbers = #tpu.dot_dimension_numbers<[1], [0], [0], [1], [0, 0, 1, 1], [], []>} : vector<256x1152xbf16>, vector<1152x128xbf16>, vector<256x128xf32> -> vector<256x128xf32>
    %c0_18 = arith.constant 0 : index
    %c0_19 = arith.constant 0 : index
    %69 = vector.load %arg6[%c0_18, %c0_19] : memref<1x128xf32, #tpu.memory_space<vmem>>, vector<1x128xf32>
    %70 = vector.broadcast %69 : vector<1x128xf32> to vector<256x128xf32>
    %71 = arith.addf %68, %70 : vector<256x128xf32>
    %cst_20 = arith.constant 0.000000e+00 : f32
    %72 = vector.broadcast %cst_20 : f32 to vector<256x128xf32>
    %73 = arith.maximumf %71, %72 : vector<256x128xf32>
    %74 = arith.truncf %73 : vector<256x128xf32> to vector<256x128xbf16>
    %c0_21 = arith.constant 0 : index
    %c0_22 = arith.constant 0 : index
    %75 = vector.load %arg7[%c0_21, %c0_22] : memref<128x128xbf16, #tpu.memory_space<vmem>>, vector<128x128xbf16>
    %cst_23 = arith.constant dense<0.000000e+00> : vector<256x128xf32>
    %76 = tpu.matmul %74, %75, %cst_23 {dimension_numbers = #tpu.dot_dimension_numbers<[1], [0], [0], [1], [0, 0, 1, 1], [], []>} : vector<256x128xbf16>, vector<128x128xbf16>, vector<256x128xf32> -> vector<256x128xf32>
    %c0_24 = arith.constant 0 : index
    %c0_25 = arith.constant 0 : index
    %77 = vector.load %arg8[%c0_24, %c0_25] : memref<1x128xf32, #tpu.memory_space<vmem>>, vector<1x128xf32>
    %78 = vector.broadcast %77 : vector<1x128xf32> to vector<256x128xf32>
    %79 = arith.addf %76, %78 : vector<256x128xf32>
    %c17_i32_26 = arith.constant 17 : i32
    %80 = arith.addi %1, %c17_i32_26 : i32
    %c0_27 = arith.constant 0 : index
    %81 = arith.index_cast %80 : i32 to index
    %c0_28 = arith.constant 0 : index
    %82 = vector.load %arg2[%c0_27, %81, %c0_28] : memref<1x296x128xf32, #tpu.memory_space<vmem>>, vector<1x256x128xf32>
    %83 = vector.shape_cast %82 : vector<1x256x128xf32> to vector<256x128xf32>
    %84 = arith.addf %79, %83 : vector<256x128xf32>
    %cst_29 = arith.constant 0.000000e+00 : f32
    %85 = vector.broadcast %cst_29 : f32 to vector<256x128xf32>
    %86 = arith.maximumf %84, %85 : vector<256x128xf32>
    %c0_30 = arith.constant 0 : index
    %c0_31 = arith.constant 0 : index
    %c0_32 = arith.constant 0 : index
    %87 = vector.load %arg9[%c0_30, %c0_31, %c0_32] : memref<1x256x128xf32, #tpu.memory_space<vmem>>, vector<1x256x128xf32>
    %88 = vector.shape_cast %87 : vector<1x256x128xf32> to vector<256x128xf32>
    %89 = vector.shape_cast %86 : vector<256x128xf32> to vector<1x256x128xf32>
    tpu.vector_store %arg9[%c0_30, %c0_31, %c0_32], %89 {strides = array<i32>} : memref<1x256x128xf32, #tpu.memory_space<vmem>>, vector<1x256x128xf32>,
    return
  }
  func.func @transform_0(%arg0: i32, %arg1: i32) -> (i32, i32, i32) {
    %c0_i32 = arith.constant 0 : i32
    %c0_i32_0 = arith.constant 0 : i32
    %c0_i32_1 = arith.constant 0 : i32
    return %arg0, %c0_i32, %c0_i32_0 : i32, i32, i32
  }
  func.func @transform_1(%arg0: i32, %arg1: i32) -> (i32, i32) {
    %c0_i32 = arith.constant 0 : i32
    %c0_i32_0 = arith.constant 0 : i32
    %c0_i32_1 = arith.constant 0 : i32
    return %c0_i32, %c0_i32_0 : i32, i32
  }
  func.func @transform_2(%arg0: i32, %arg1: i32) -> (i32, i32) {
    %c0_i32 = arith.constant 0 : i32
    %c0_i32_0 = arith.constant 0 : i32
    %c0_i32_1 = arith.constant 0 : i32
    return %c0_i32, %c0_i32_0 : i32, i32
  }
  func.func @transform_3(%arg0: i32, %arg1: i32) -> (i32, i32) {
    %c0_i32 = arith.constant 0 : i32
    %c0_i32_0 = arith.constant 0 : i32
    %c0_i32_1 = arith.constant 0 : i32
    return %c0_i32, %c0_i32_0 : i32, i32
  }
  func.func @transform_4(%arg0: i32, %arg1: i32) -> (i32, i32) {
    %c0_i32 = arith.constant 0 : i32
    %c0_i32_0 = arith.constant 0 : i32
    %c0_i32_1 = arith.constant 0 : i32
    return %c0_i32, %c0_i32_0 : i32, i32
  }
  func.func @transform_5(%arg0: i32, %arg1: i32) -> (i32, i32) {
    %c0_i32 = arith.constant 0 : i32
    %c0_i32_0 = arith.constant 0 : i32
    %c0_i32_1 = arith.constant 0 : i32
    return %c0_i32, %c0_i32_0 : i32, i32
  }
  func.func @transform_6(%arg0: i32, %arg1: i32) -> (i32, i32) {
    %c0_i32 = arith.constant 0 : i32
    %c0_i32_0 = arith.constant 0 : i32
    %c0_i32_1 = arith.constant 0 : i32
    return %c0_i32, %c0_i32_0 : i32, i32
  }
  func.func @transform_7(%arg0: i32, %arg1: i32) -> (i32, i32, i32) {
    %c0_i32 = arith.constant 0 : i32
    %c0_i32_0 = arith.constant 0 : i32
    return %arg0, %arg1, %c0_i32 : i32, i32, i32
  }
}

</mosaic_0001>

<llo_original>
// kernel: tpu_custom_call.1
$region0: #{tpu_custom_call.1}
  #allocation0 [shape = 'u32[]', space=smem, size = 0x4, offset = 0x4, fixed_abs, tag = 'smem constant byte address 0x4 - core index']
  #allocation1 [shape = 'u32[144,128]{1,0:T(1,128)}', space=vmem, size = 0x12000, scoped, tag = 'internal scratch']
  %s0 = inlined_call_operand.hbm [shape: f32[2,296,128], index: 0, kind: input, shape index: {}]
  %s1 = inlined_call_operand.hbm [shape: bf16[128,128], index: 1, kind: input, shape index: {}]
  %s2 = inlined_call_operand.vmem [shape: f32[1,128], index: 2, kind: input, shape index: {}]
  %s3 = inlined_call_operand.hbm [shape: bf16[1152,128], index: 3, kind: input, shape index: {}]
  %s4 = inlined_call_operand.vmem [shape: f32[1,128], index: 4, kind: input, shape index: {}]
  %s5 = inlined_call_operand.hbm [shape: bf16[128,128], index: 5, kind: input, shape index: {}]
  %s6 = inlined_call_operand.vmem [shape: f32[1,128], index: 6, kind: input, shape index: {}]
  %s7 = inlined_call_operand.hbm [shape: f32[2,256,128], index: 7, kind: output, shape index: {}]
  %s8 = sld [smem:[#allocation0]]
  $region77: #{tpu_custom_call.1} parent=0
    _
  %s10 = ssub.s32 1, %s8
  %s11 = scalar_select 0, %s10, %s8
  $region1: #{tpu_custom_call.1} parent=0
    #allocation2 [shape = 'u8[303104]{0}', space=vmem, size = 0x4a000, scoped, tag = 'input window, operand 0']
    #allocation3 [shape = 's32[2]{0}', space=sflag, size = 0x8, scoped, tag = 'scoped memory for tpu_custom_call.1']
    #allocation4 [shape = 's32[2]{0}', space=sflag, size = 0x8, scoped, tag = 'scoped memory for tpu_custom_call.1']
    #allocation5 [shape = 'u8[32768]{0}', space=vmem, size = 0x8000, scoped, tag = 'input window, operand 1, single buffered']
    #allocation6 [shape = 's32[1]{0}', space=sflag, size = 0x4, scoped, tag = 'scoped memory for tpu_custom_call.1']
    #allocation7 [shape = 'u8[294912]{0}', space=vmem, size = 0x48000, scoped, tag = 'input window, operand 3, single buffered']
    #allocation8 [shape = 'u8[32768]{0}', space=vmem, size = 0x8000, scoped, tag = 'input window, operand 5, single buffered']
    #allocation9 [shape = 's32[1]{0}', space=sflag, size = 0x4, scoped, tag = 'scoped memory for tpu_custom_call.1']
    #allocation10 [shape = 'u8[262144]{0}', space=vmem, size = 0x40000, scoped, tag = 'output window, operand 0']
    %12 = vsyncpa [#allocation3], 0
    %s13 = scalar_lea.sflag [#allocation3], 1
    %14 = vsyncpa %s13, 0
    %15 = vsyncpa [#allocation6], 0
    %16 = vsyncpa [#allocation9], 0
    %17 = vsyncpa [#allocation4], 0
    %s18 = scalar_lea.sflag [#allocation4], 1
    %19 = vsyncpa %s18, 0
    loop: start=0, step=1, limit=4
    $region2: #{tpu_custom_call.1} parent=1 // loop_pre_header
      _
    $region3: #{tpu_custom_call.1} parent=1 // loop_header
      %s21 = sphi 0, %s25
      %p22 = scmp.ge.s32.totalorder %s21, 4
      %s28 = sphi 0, %s40
      %s29 = sphi 0, %s36
      %s30 = sphi 0, %s28
      %s31 = sphi 0, %s29
      %s32 = sphi 0, %s30
      %s33 = sphi 0, %s31
      %s43 = sphi 0, %s45
      %s46 = sphi 0, %s43
      %s47 = sphi 0, %s46
      %s63 = sphi 0, %s47
      %s67 = sphi 0, %s67
      %s69 = sphi 0, %s67
      %s70 = sphi 0, %s69
      %s84 = sphi 0, %s70
      %s88 = sphi 0, %s88
      %s90 = sphi 0, %s88
      %s91 = sphi 0, %s90
      %s105 = sphi 0, %s91
      %s109 = sphi 0, %s109
      %s111 = sphi 0, %s109
      %s112 = sphi 0, %s111
      %s126 = sphi 0, %s112
      %s130 = sphi 0, %s130
      %s132 = sphi 0, %s130
      %s133 = sphi 0, %s132
      %s147 = sphi 0, %s133
      %s151 = sphi 0, %s151
      %s153 = sphi 0, %s151
      %s154 = sphi 0, %s153
      %s168 = sphi 0, %s154
      %s172 = sphi 0, %s172
      %s174 = sphi 0, %s172
      %s175 = sphi 0, %s174
      %s189 = sphi 0, %s175
      %s197 = sphi 0, %s199
      %s200 = sphi 0, %s197
      %s201 = sphi 0, %s200
      %s217 = sphi 0, %s201
    $region4: #{tpu_custom_call.1} parent=1 // loop_header_branch
      %24 = sbr.rel (%p22) target = $region8
    $region5: #{tpu_custom_call.1} parent=1 // loop_body
      %s26 = ssub.s32 %s21, 1
      %s27 = ssub.s32 %s21, 2
      %s34 = sadd.s32 1, %s29
      %p35 = scmp.ge.s32.totalorder %s34, 1
      %s36 = scalar_select %p35, 0, %s34
      %s37 = sadd.s32 1, %s28
      %s38 = scalar_select %p35, %s37, %s28
      %p39 = scmp.ge.s32.totalorder %s38, 2
      %s40 = scalar_select %p39, 0, %s38
      %s41 = ssub.s32 %s28, %s40
      %p42 = scmp.eq.s32.totalorder %s41, 0
      %s44 = sadd.s32 %s43, 1
      %s45 = scalar_select %p42, %s43, %s44
      %p48 = pneg %p42
      %p49 = scmp.eq.s32.totalorder %s21, 1
      %p50 = por %p48, %p49
      %p51 = scmp.ne.s32.totalorder %s43, %s46
      %p52 = scmp.eq.s32.totalorder %s21, 0
      %p53 = por %p51, %p52
      %p54 = scmp.ne.s32.totalorder %s43, %s46
      %p55 = scmp.eq.s32.totalorder %s26, 1
      %p56 = por %p54, %p55
      %p57 = scmp.ne.s32.totalorder %s46, %s47
      %p58 = scmp.eq.s32.totalorder %s26, 0
      %p59 = por %p57, %p58
      %p60 = scmp.ne.s32.totalorder %s46, %s47
      %p61 = scmp.eq.s32.totalorder %s27, 1
      %p62 = por %p60, %p61
      %p64 = scmp.ne.s32.totalorder %s47, %s63
      %p65 = scmp.eq.s32.totalorder %s27, 0
      %p66 = por %p64, %p65
      %s68 = sadd.s32 %s67, 1
      %p71 = scmp.eq.s32.totalorder %s21, 1
      %p72 = scmp.ne.s32.totalorder %s67, %s69
      %p73 = scmp.eq.s32.totalorder %s21, 0
      %p74 = por %p72, %p73
      %p75 = scmp.ne.s32.totalorder %s67, %s69
      %p76 = scmp.eq.s32.totalorder %s26, 1
      %p77 = por %p75, %p76
      %p78 = scmp.ne.s32.totalorder %s69, %s70
      %p79 = scmp.eq.s32.totalorder %s26, 0
      %p80 = por %p78, %p79
      %p81 = scmp.ne.s32.totalorder %s69, %s70
      %p82 = scmp.eq.s32.totalorder %s27, 1
      %p83 = por %p81, %p82
      %p85 = scmp.ne.s32.totalorder %s70, %s84
      %p86 = scmp.eq.s32.totalorder %s27, 0
      %p87 = por %p85, %p86
      %s89 = sadd.s32 %s88, 1
      %p92 = scmp.eq.s32.totalorder %s21, 1
      %p93 = scmp.ne.s32.totalorder %s88, %s90
      %p94 = scmp.eq.s32.totalorder %s21, 0
      %p95 = por %p93, %p94
      %p96 = scmp.ne.s32.totalorder %s88, %s90
      %p97 = scmp.eq.s32.totalorder %s26, 1
      %p98 = por %p96, %p97
      %p99 = scmp.ne.s32.totalorder %s90, %s91
      %p100 = scmp.eq.s32.totalorder %s26, 0
      %p101 = por %p99, %p100
      %p102 = scmp.ne.s32.totalorder %s90, %s91
      %p103 = scmp.eq.s32.totalorder %s27, 1
      %p104 = por %p102, %p103
      %p106 = scmp.ne.s32.totalorder %s91, %s105
      %p107 = scmp.eq.s32.totalorder %s27, 0
      %p108 = por %p106, %p107
      %s110 = sadd.s32 %s109, 1
      %p113 = scmp.eq.s32.totalorder %s21, 1
      %p114 = scmp.ne.s32.totalorder %s109, %s111
      %p115 = scmp.eq.s32.totalorder %s21, 0
      %p116 = por %p114, %p115
      %p117 = scmp.ne.s32.totalorder %s109, %s111
      %p118 = scmp.eq.s32.totalorder %s26, 1
      %p119 = por %p117, %p118
      %p120 = scmp.ne.s32.totalorder %s111, %s112
      %p121 = scmp.eq.s32.totalorder %s26, 0
      %p122 = por %p120, %p121
      %p123 = scmp.ne.s32.totalorder %s111, %s112
      %p124 = scmp.eq.s32.totalorder %s27, 1
      %p125 = por %p123, %p124
      %p127 = scmp.ne.s32.totalorder %s112, %s126
      %p128 = scmp.eq.s32.totalorder %s27, 0
      %p129 = por %p127, %p128
      %s131 = sadd.s32 %s130, 1
      %p134 = scmp.eq.s32.totalorder %s21, 1
      %p135 = scmp.ne.s32.totalorder %s130, %s132
      %p136 = scmp.eq.s32.totalorder %s21, 0
      %p137 = por %p135, %p136
      %p138 = scmp.ne.s32.totalorder %s130, %s132
      %p139 = scmp.eq.s32.totalorder %s26, 1
      %p140 = por %p138, %p139
      %p141 = scmp.ne.s32.totalorder %s132, %s133
      %p142 = scmp.eq.s32.totalorder %s26, 0
      %p143 = por %p141, %p142
      %p144 = scmp.ne.s32.totalorder %s132, %s133
      %p145 = scmp.eq.s32.totalorder %s27, 1
      %p146 = por %p144, %p145
      %p148 = scmp.ne.s32.totalorder %s133, %s147
      %p149 = scmp.eq.s32.totalorder %s27, 0
      %p150 = por %p148, %p149
      %s152 = sadd.s32 %s151, 1
      %p155 = scmp.eq.s32.totalorder %s21, 1
      %p156 = scmp.ne.s32.totalorder %s151, %s153
      %p157 = scmp.eq.s32.totalorder %s21, 0
      %p158 = por %p156, %p157
      %p159 = scmp.ne.s32.totalorder %s151, %s153
      %p160 = scmp.eq.s32.totalorder %s26, 1
      %p161 = por %p159, %p160
      %p162 = scmp.ne.s32.totalorder %s153, %s154
      %p163 = scmp.eq.s32.totalorder %s26, 0
      %p164 = por %p162, %p163
      %p165 = scmp.ne.s32.totalorder %s153, %s154
      %p166 = scmp.eq.s32.totalorder %s27, 1
      %p167 = por %p165, %p166
      %p169 = scmp.ne.s32.totalorder %s154, %s168
      %p170 = scmp.eq.s32.totalorder %s27, 0
      %p171 = por %p169, %p170
      %s173 = sadd.s32 %s172, 1
      %p176 = scmp.eq.s32.totalorder %s21, 1
      %p177 = scmp.ne.s32.totalorder %s172, %s174
      %p178 = scmp.eq.s32.totalorder %s21, 0
      %p179 = por %p177, %p178
      %p180 = scmp.ne.s32.totalorder %s172, %s174
      %p181 = scmp.eq.s32.totalorder %s26, 1
      %p182 = por %p180, %p181
      %p183 = scmp.ne.s32.totalorder %s174, %s175
      %p184 = scmp.eq.s32.totalorder %s26, 0
      %p185 = por %p183, %p184
      %p186 = scmp.ne.s32.totalorder %s174, %s175
      %p187 = scmp.eq.s32.totalorder %s27, 1
      %p188 = por %p186, %p187
      %p190 = scmp.ne.s32.totalorder %s175, %s189
      %p191 = scmp.eq.s32.totalorder %s27, 0
      %p192 = por %p190, %p191
      %s193 = ssub.s32 %s28, %s40
      %s194 = ssub.s32 %s29, %s36
      %s195 = sor.u32 %s193, %s194
      %p196 = scmp.eq.s32.totalorder %s195, 0
      %s198 = sadd.s32 %s197, 1
      %s199 = scalar_select %p196, %s197, %s198
      %p202 = pneg %p196
      %p203 = scmp.eq.s32.totalorder %s21, 1
      %p204 = por %p202, %p203
      %p205 = scmp.ne.s32.totalorder %s197, %s200
      %p206 = scmp.eq.s32.totalorder %s21, 0
      %p207 = por %p205, %p206
      %p208 = scmp.ne.s32.totalorder %s197, %s200
      %p209 = scmp.eq.s32.totalorder %s26, 1
      %p210 = por %p208, %p209
      %p211 = scmp.ne.s32.totalorder %s200, %s201
      %p212 = scmp.eq.s32.totalorder %s26, 0
      %p213 = por %p211, %p212
      %p214 = scmp.ne.s32.totalorder %s200, %s201
      %p215 = scmp.eq.s32.totalorder %s27, 1
      %p216 = por %p214, %p215
      %p218 = scmp.ne.s32.totalorder %s201, %s217
      %p219 = scmp.eq.s32.totalorder %s27, 0
      %p220 = por %p218, %p219
      %p221 = scmp.le.s32.totalorder 1, %s21
      %p222 = scmp.lt.s32.totalorder %s21, 3
      %p223 = pnand %p221, %p222
      %p224 = pneg %p223
      // Predicated region
      $region9: #{tpu_custom_call.1} parent=5 // pred_check
        _
      $region10: #{tpu_custom_call.1} parent=5 // pred_check_branch
        %226 = sbr.rel (%p223) target = $region12
      $region11: #{tpu_custom_call.1} parent=5 // pred_region
        %s227 = ssub.s32 %s21, 1
        // Predicated region
        $region13: #{tpu_custom_call.1} parent=11 // pred_check
          %p228 = pneg %p80
        $region14: #{tpu_custom_call.1} parent=11 // pred_check_branch
          %230 = sbr.rel (%p228) target = $region16
        $region15: #{tpu_custom_call.1} parent=11 // pred_region
          %s232 = ssub.s32 1024, 1024
          %233 = vsyncadd [#allocation6], %s232
          %s234 = sshll.u32 [#allocation5], 4
          %s235 = int_to_ptr.vmem [resolvable:$true] %s234
          %240 = dma.hbm_to_vmem [thread:$0]  %s1, 1024, %s235, [#allocation6], 64, 64, 4
        $region16: #{tpu_custom_call.1} parent=11 // pred_fallthru
          _
        // Predicated region
        $region17: #{tpu_custom_call.1} parent=11 // pred_check
          %p241 = pneg %p101
        $region18: #{tpu_custom_call.1} parent=11 // pred_check_branch
          %243 = sbr.rel (%p241) target = $region20
        $region19: #{tpu_custom_call.1} parent=11 // pred_region
          _
        $region20: #{tpu_custom_call.1} parent=11 // pred_fallthru
          _
        // Predicated region
        $region21: #{tpu_custom_call.1} parent=11 // pred_check
          %p244 = pneg %p122
        $region22: #{tpu_custom_call.1} parent=11 // pred_check_branch
          %246 = sbr.rel (%p244) target = $region24
        $region23: #{tpu_custom_call.1} parent=11 // pred_region
          %s248 = ssub.s32 9216, 9216
          %249 = vsyncadd [#allocation6], %s248
          %s250 = sshll.u32 [#allocation7], 4
          %s251 = int_to_ptr.vmem [resolvable:$true] %s250
          %256 = dma.hbm_to_vmem [thread:$0]  %s3, 9216, %s251, [#allocation6], 64, 64, 4
        $region24: #{tpu_custom_call.1} parent=11 // pred_fallthru
          _
        // Predicated region
        $region25: #{tpu_custom_call.1} parent=11 // pred_check
          %p257 = pneg %p143
        $region26: #{tpu_custom_call.1} parent=11 // pred_check_branch
          %259 = sbr.rel (%p257) target = $region28
        $region27: #{tpu_custom_call.1} parent=11 // pred_region
          _
        $region28: #{tpu_custom_call.1} parent=11 // pred_fallthru
          _
        // Predicated region
        $region29: #{tpu_custom_call.1} parent=11 // pred_check
          %p260 = pneg %p164
        $region30: #{tpu_custom_call.1} parent=11 // pred_check_branch
          %262 = sbr.rel (%p260) target = $region32
        $region31: #{tpu_custom_call.1} parent=11 // pred_region
          %s264 = ssub.s32 1024, 1024
          %265 = vsyncadd [#allocation9], %s264
          %s266 = sshll.u32 [#allocation8], 4
          %s267 = int_to_ptr.vmem [resolvable:$true] %s266
          %272 = dma.hbm_to_vmem [thread:$0]  %s5, 1024, %s267, [#allocation9], 64, 64, 4
        $region32: #{tpu_custom_call.1} parent=11 // pred_fallthru
          _
        // Predicated region
        $region33: #{tpu_custom_call.1} parent=11 // pred_check
          %p273 = pneg %p185
        $region34: #{tpu_custom_call.1} parent=11 // pred_check_branch
          %275 = sbr.rel (%p273) target = $region36
        $region35: #{tpu_custom_call.1} parent=11 // pred_region
          _
        $region36: #{tpu_custom_call.1} parent=11 // pred_fallthru
          _
      $region12: #{tpu_custom_call.1} parent=5 // pred_fallthru
        _
      %p276 = scmp.lt.s32.totalorder %s21, 2
      // Predicated region
      $region37: #{tpu_custom_call.1} parent=5 // pred_check
        %p277 = pneg %p276
      $region38: #{tpu_custom_call.1} parent=5 // pred_check_branch
        %279 = sbr.rel (%p277) target = $region40
      $region39: #{tpu_custom_call.1} parent=5 // pred_region
        // Predicated region
        $region41: #{tpu_custom_call.1} parent=39 // pred_check
          %p280 = pneg %p53
        $region42: #{tpu_custom_call.1} parent=39 // pred_check_branch
          %282 = sbr.rel (%p280) target = $region44
        $region43: #{tpu_custom_call.1} parent=39 // pred_region
          %s283 = sand.u32 %s43, 1
          %s284 = scalar_lea.sflag [#allocation3], %s283
          %s285 = sand.u32 %s43, 1
          %s286 = smul.addr %s285, 296
          %s287 = scalar_lea.vmem [#allocation2], %s286
          %s289 = ssub.s32 4736, 4736
          %290 = vsyncadd %s284, %s289
          %s291 = smul.addr %s28, 37
          %s292 = smul.addr %s291, 128
          %s293 = scalar_lea.hbm %s0, %s292
          %s294 = sshll.u32 %s287, 4
          %s295 = int_to_ptr.vmem [resolvable:$true] %s294
          %300 = dma.hbm_to_vmem [thread:$0]  %s293, 4736, %s295, %s284, 128, 128, 8
        $region44: #{tpu_custom_call.1} parent=39 // pred_fallthru
          _
      $region40: #{tpu_custom_call.1} parent=5 // pred_fallthru
        _
      %p301 = scmp.le.s32.totalorder 1, %s21
      %p302 = scmp.lt.s32.totalorder %s21, 3
      %p303 = pnand %p301, %p302
      %p304 = pneg %p303
      // Predicated region
      $region45: #{tpu_custom_call.1} parent=5 // pred_check
        _
      $region46: #{tpu_custom_call.1} parent=5 // pred_check_branch
        %306 = sbr.rel (%p303) target = $region48
      $region47: #{tpu_custom_call.1} parent=5 // pred_region
        %s307 = ssub.s32 %s21, 1
        %s308 = sand.u32 %s46, 1
        %s309 = scalar_lea.sflag [#allocation3], %s308
        %s310 = sand.u32 %s46, 1
        %s311 = smul.addr %s310, 296
        %s312 = scalar_lea.vmem [#allocation2], %s311
        // Predicated region
        $region49: #{tpu_custom_call.1} parent=47 // pred_check
          %p313 = pneg %p59
        $region50: #{tpu_custom_call.1} parent=47 // pred_check_branch
          %315 = sbr.rel (%p313) target = $region52
        $region51: #{tpu_custom_call.1} parent=47 // pred_region
          %316 = dma.done %s309, 4736
        $region52: #{tpu_custom_call.1} parent=47 // pred_fallthru
          _
        // Predicated region
        $region53: #{tpu_custom_call.1} parent=47 // pred_check
          %p317 = pneg %p80
        $region54: #{tpu_custom_call.1} parent=47 // pred_check_branch
          %319 = sbr.rel (%p317) target = $region56
        $region55: #{tpu_custom_call.1} parent=47 // pred_region
          %320 = dma.done [#allocation6], 1024
        $region56: #{tpu_custom_call.1} parent=47 // pred_fallthru
          _
        // Predicated region
        $region57: #{tpu_custom_call.1} parent=47 // pred_check
          %p321 = pneg %p122
        $region58: #{tpu_custom_call.1} parent=47 // pred_check_branch
          %323 = sbr.rel (%p321) target = $region60
        $region59: #{tpu_custom_call.1} parent=47 // pred_region
          %324 = dma.done [#allocation6], 9216
        $region60: #{tpu_custom_call.1} parent=47 // pred_fallthru
          _
        // Predicated region
        $region61: #{tpu_custom_call.1} parent=47 // pred_check
          %p325 = pneg %p164
        $region62: #{tpu_custom_call.1} parent=47 // pred_check_branch
          %327 = sbr.rel (%p325) target = $region64
        $region63: #{tpu_custom_call.1} parent=47 // pred_region
          %328 = dma.done [#allocation9], 1024
        $region64: #{tpu_custom_call.1} parent=47 // pred_fallthru
          _
        %s329 = sand.u32 %s46, 1
        %s330 = scalar_lea.sflag [#allocation3], %s329
        %s331 = sand.u32 %s46, 1
        %s332 = smul.addr %s331, 296
        %s333 = scalar_lea.vmem [#allocation2], %s332
        %p334 = pneg %p59
        %p335 = pneg %p56
        %p336 = pneg %p80
        %p337 = pneg %p77
        %p338 = pneg %p101
        %p339 = pneg %p98
        %p340 = pneg %p122
        %p341 = pneg %p119
        %p342 = pneg %p143
        %p343 = pneg %p140
        %p344 = pneg %p164
        %p345 = pneg %p161
        %p346 = pneg %p185
        %p347 = pneg %p182
        %p348 = pneg %p213
        %p349 = pneg %p210
        %s350 = sand.u32 %s200, 1
        %s351 = scalar_lea.sflag [#allocation4], %s350
        %s352 = sand.u32 %s200, 1
        %s353 = smul.addr %s352, 256
        %s354 = scalar_lea.vmem [#allocation10], %s353
        %s355 = smul.u32 32, %s31
        %s359 = smul.u32 %s31, 256
        %s360 = scalar_lea.vmem %s312, %s359 [#allocation2]
        %v361 = vld [vmem:[%s360] sm:$0xff]
        %v362 = vld [vmem:[%s360 + $0x8] sm:$0xff]
        %v363 = vld [vmem:[%s360 + $0x10] sm:$0xff]
        %v364 = vld [vmem:[%s360 + $0x18] sm:$0xff]
        %v365 = vld [vmem:[%s360 + $0x20] sm:$0xff]
        %v366 = vld [vmem:[%s360 + $0x28] sm:$0xff]
        %v367 = vld [vmem:[%s360 + $0x30] sm:$0xff]
        %v368 = vld [vmem:[%s360 + $0x38] sm:$0xff]
        %v369 = vld [vmem:[%s360 + $0x40] sm:$0xff]
        %v370 = vld [vmem:[%s360 + $0x48] sm:$0xff]
        %v371 = vld [vmem:[%s360 + $0x50] sm:$0xff]
        %v372 = vld [vmem:[%s360 + $0x58] sm:$0xff]
        %v373 = vld [vmem:[%s360 + $0x60] sm:$0xff]
        %v374 = vld [vmem:[%s360 + $0x68] sm:$0xff]
        %v375 = vld [vmem:[%s360 + $0x70] sm:$0xff]
        %v376 = vld [vmem:[%s360 + $0x78] sm:$0xff]
        %v377 = vld [vmem:[%s360 + $0x80] sm:$0xff]
        %v378 = vld [vmem:[%s360 + $0x88] sm:$0xff]
        %v379 = vld [vmem:[%s360 + $0x90] sm:$0xff]
        %v380 = vld [vmem:[%s360 + $0x98] sm:$0xff]
        %v381 = vld [vmem:[%s360 + $0xa0] sm:$0xff]
        %v382 = vld [vmem:[%s360 + $0xa8] sm:$0xff]
        %v383 = vld [vmem:[%s360 + $0xb0] sm:$0xff]
        %v384 = vld [vmem:[%s360 + $0xb8] sm:$0xff]
        %v385 = vld [vmem:[%s360 + $0xc0] sm:$0xff]
        %v386 = vld [vmem:[%s360 + $0xc8] sm:$0xff]
        %v387 = vld [vmem:[%s360 + $0xd0] sm:$0xff]
        %v388 = vld [vmem:[%s360 + $0xd8] sm:$0xff]
        %v389 = vld [vmem:[%s360 + $0xe0] sm:$0xff]
        %v390 = vld [vmem:[%s360 + $0xe8] sm:$0xff]
        %v391 = vld [vmem:[%s360 + $0xf0] sm:$0xff]
        %v392 = vld [vmem:[%s360 + $0xf8] sm:$0xff]
        %v393 = vld [vmem:[%s360 + $0x100] sm:$0xff]
        %v394 = vld [vmem:[%s360 + $0x108] sm:$0xff]
        %v395 = vld [vmem:[%s360 + $0x110] sm:$0xff]
        %v396 = vld [vmem:[%s360 + $0x118] sm:$0xff]
        %v397 = vld [vmem:[%s360 + $0x120] sm:$0x3]
        %v398 = vpack.c.bf16 %v362, %v361
        %v399 = vpack.c.bf16 %v364, %v363
        %v400 = vpack.c.bf16 %v366, %v365
        %v401 = vpack.c.bf16 %v368, %v367
        %v402 = vpack.c.bf16 %v370, %v369
        %v403 = vpack.c.bf16 %v372, %v371
        %v404 = vpack.c.bf16 %v374, %v373
        %v405 = vpack.c.bf16 %v376, %v375
        %v406 = vpack.c.bf16 %v378, %v377
        %v407 = vpack.c.bf16 %v380, %v379
        %v408 = vpack.c.bf16 %v382, %v381
        %v409 = vpack.c.bf16 %v384, %v383
        %v410 = vpack.c.bf16 %v386, %v385
        %v411 = vpack.c.bf16 %v388, %v387
        %v412 = vpack.c.bf16 %v390, %v389
        %v413 = vpack.c.bf16 %v392, %v391
        %v414 = vpack.c.bf16 %v394, %v393
        %v415 = vpack.c.bf16 %v396, %v395
        %v416 = vpack.c.bf16 %v397, %v397
        %v417 = vld [vmem:[#allocation5] sm:$0xf]
        %v418 = vld [vmem:[#allocation5 + $0x4] sm:$0xf]
        %v419 = vld [vmem:[#allocation5 + $0x8] sm:$0xf]
        %v420 = vld [vmem:[#allocation5 + $0xc] sm:$0xf]
        %v421 = vld [vmem:[#allocation5 + $0x10] sm:$0xf]
        %v422 = vld [vmem:[#allocation5 + $0x14] sm:$0xf]
        %v423 = vld [vmem:[#allocation5 + $0x18] sm:$0xf]
        %v424 = vld [vmem:[#allocation5 + $0x1c] sm:$0xf]
        %v425 = vld [vmem:[#allocation5 + $0x20] sm:$0xf]
        %v426 = vld [vmem:[#allocation5 + $0x24] sm:$0xf]
        %v427 = vld [vmem:[#allocation5 + $0x28] sm:$0xf]
        %v428 = vld [vmem:[#allocation5 + $0x2c] sm:$0xf]
        %v429 = vld [vmem:[#allocation5 + $0x30] sm:$0xf]
        %v430 = vld [vmem:[#allocation5 + $0x34] sm:$0xf]
        %v431 = vld [vmem:[#allocation5 + $0x38] sm:$0xf]
        %v432 = vld [vmem:[#allocation5 + $0x3c] sm:$0xf]
        %v433 = vld [vmem:[%s2] sm:$0x1]
        %v435 = vlaneseq
        %v436 = vshrl.u32 %v435, 7
        %v437 = vsub.s32 0, %v436
        %v438 = vrot.slane %v433, %v437
        %v456 = vunpack.c.l.b16 %v417
        %v457 = vunpack.c.l.b16 %v418
        %v458 = vunpack.c.l.b16 %v419
        %v459 = vunpack.c.l.b16 %v420
        %v460 = vunpack.c.l.b16 %v421
        %v461 = vunpack.c.l.b16 %v422
        %v462 = vunpack.c.l.b16 %v423
        %v463 = vunpack.c.l.b16 %v424
        %v464 = vunpack.c.l.b16 %v425
        %v465 = vunpack.c.l.b16 %v426
        %v466 = vunpack.c.l.b16 %v427
        %v467 = vunpack.c.l.b16 %v428
        %v468 = vunpack.c.l.b16 %v429
        %v469 = vunpack.c.l.b16 %v430
        %v470 = vunpack.c.l.b16 %v431
        %v471 = vunpack.c.l.b16 %v432
        %v472 = vpack.c.b16 %v457, %v456
        %v473 = vpack.c.b16 %v459, %v458
        %v474 = vpack.c.b16 %v461, %v460
        %v475 = vpack.c.b16 %v463, %v462
        %v476 = vpack.c.b16 %v465, %v464
        %v477 = vpack.c.b16 %v467, %v466
        %v478 = vpack.c.b16 %v469, %v468
        %v479 = vpack.c.b16 %v471, %v470
        %488 = vmatprep.subr.bf16.mxu0 0
        %489 = vmatpush1.bf16.msra.mxu0 %v479
        %490 = vmatprep.subr.bf16.mxu0 0
        %491 = vmatpush1.bf16.msra.mxu0 %v478
        %492 = vmatprep.subr.bf16.mxu0 0
        %493 = vmatpush1.bf16.msra.mxu0 %v477
        %494 = vmatprep.subr.bf16.mxu0 0
        %495 = vmatpush1.bf16.msra.mxu0 %v476
        %496 = vmatprep.subr.bf16.mxu0 0
        %497 = vmatpush1.bf16.msra.mxu0 %v475
        %498 = vmatprep.subr.bf16.mxu0 0
        %499 = vmatpush1.bf16.msra.mxu0 %v474
        %500 = vmatprep.subr.bf16.mxu0 0
        %501 = vmatpush1.bf16.msra.mxu0 %v473
        %502 = vmatprep.subr.bf16.mxu0 0
        %503 = vmatpush1.bf16.msra.mxu0 %v472
        %504 = vmatprep.subr.bf16.mxu0 0
        %505 = vmatpush2.bf16.msra.mxu0 0
        %506 = vmatprep.subr.bf16.mxu0 0
        %507 = vmatpush2.bf16.msra.mxu0 0
        %508 = vmatprep.subr.bf16.mxu0 0
        %509 = vmatpush2.bf16.msra.mxu0 0
        %510 = vmatprep.subr.bf16.mxu0 0
        %511 = vmatpush2.bf16.msra.mxu0 0
        %512 = vmatprep.subr.bf16.mxu0 0
        %513 = vmatpush2.bf16.msra.mxu0 0
        %514 = vmatprep.subr.bf16.mxu0 0
        %515 = vmatpush2.bf16.msra.mxu0 0
        %516 = vmatprep.subr.bf16.mxu0 0
        %517 = vmatpush2.bf16.msra.mxu0 0
        %518 = vmatprep.subr.bf16.mxu0 0
        %519 = vmatpush2.bf16.msra.mxu0 0
        %520 = vmatprep.mubr.bf16.mxu0 0
        %521 = vmatmul.mubr.bf16.gmra.mxu0 %v398
        %v522 = vpop.f32.mrf.mxu0
        %v523 = vadd.f32 %v438, %v522
        %v524 = vpop.f32.mrf.mxu0
        %v525 = vpop.f32.mrf.mxu0
        %v526 = vadd.f32 %v438, %v525
        %v527 = vpop.f32.mrf.mxu0
        %528 = vmatprep.mubr.bf16.mxu0 0
        %529 = vmatmul.mubr.bf16.gmra.mxu0 %v399
        %v530 = vpop.f32.mrf.mxu0
        %v531 = vadd.f32 %v438, %v530
        %v532 = vpop.f32.mrf.mxu0
        %v533 = vpop.f32.mrf.mxu0
        %v534 = vadd.f32 %v438, %v533
        %v535 = vpop.f32.mrf.mxu0
        %536 = vmatprep.mubr.bf16.mxu0 0
        %537 = vmatmul.mubr.bf16.gmra.mxu0 %v400
        %v538 = vpop.f32.mrf.mxu0
        %v539 = vadd.f32 %v438, %v538
        %v540 = vpop.f32.mrf.mxu0
        %v541 = vpop.f32.mrf.mxu0
        %v542 = vadd.f32 %v438, %v541
        %v543 = vpop.f32.mrf.mxu0
        %544 = vmatprep.mubr.bf16.mxu0 0
        %545 = vmatmul.mubr.bf16.gmra.mxu0 %v401
        %v546 = vpop.f32.mrf.mxu0
        %v547 = vadd.f32 %v438, %v546
        %v548 = vpop.f32.mrf.mxu0
        %v549 = vpop.f32.mrf.mxu0
        %v550 = vadd.f32 %v438, %v549
        %v551 = vpop.f32.mrf.mxu0
        %552 = vmatprep.mubr.bf16.mxu0 0
        %553 = vmatmul.mubr.bf16.gmra.mxu0 %v402
        %v554 = vpop.f32.mrf.mxu0
        %v555 = vadd.f32 %v438, %v554
        %v556 = vpop.f32.mrf.mxu0
        %v557 = vpop.f32.mrf.mxu0
        %v558 = vadd.f32 %v438, %v557
        %v559 = vpop.f32.mrf.mxu0
        %560 = vmatprep.mubr.bf16.mxu0 0
        %561 = vmatmul.mubr.bf16.gmra.mxu0 %v403
        %v562 = vpop.f32.mrf.mxu0
        %v563 = vadd.f32 %v438, %v562
        %v564 = vpop.f32.mrf.mxu0
        %v565 = vpop.f32.mrf.mxu0
        %v566 = vadd.f32 %v438, %v565
        %v567 = vpop.f32.mrf.mxu0
        %568 = vmatprep.mubr.bf16.mxu0 0
        %569 = vmatmul.mubr.bf16.gmra.mxu0 %v404
        %v570 = vpop.f32.mrf.mxu0
        %v571 = vadd.f32 %v438, %v570
        %v572 = vpop.f32.mrf.mxu0
        %v573 = vpop.f32.mrf.mxu0
        %v574 = vadd.f32 %v438, %v573
        %v575 = vpop.f32.mrf.mxu0
        %576 = vmatprep.mubr.bf16.mxu0 0
        %577 = vmatmul.mubr.bf16.gmra.mxu0 %v405
        %v578 = vpop.f32.mrf.mxu0
        %v579 = vadd.f32 %v438, %v578
        %v580 = vpop.f32.mrf.mxu0
        %v581 = vpop.f32.mrf.mxu0
        %v582 = vadd.f32 %v438, %v581
        %v583 = vpop.f32.mrf.mxu0
        %584 = vmatprep.mubr.bf16.mxu0 0
        %585 = vmatmul.mubr.bf16.gmra.mxu0 %v406
        %v586 = vpop.f32.mrf.mxu0
        %v587 = vadd.f32 %v438, %v586
        %v588 = vpop.f32.mrf.mxu0
        %v589 = vpop.f32.mrf.mxu0
        %v590 = vadd.f32 %v438, %v589
        %v591 = vpop.f32.mrf.mxu0
        %592 = vmatprep.mubr.bf16.mxu0 0
        %593 = vmatmul.mubr.bf16.gmra.mxu0 %v407
        %v594 = vpop.f32.mrf.mxu0
        %v595 = vadd.f32 %v438, %v594
        %v596 = vpop.f32.mrf.mxu0
        %v597 = vpop.f32.mrf.mxu0
        %v598 = vadd.f32 %v438, %v597
        %v599 = vpop.f32.mrf.mxu0
        %600 = vmatprep.mubr.bf16.mxu0 0
        %601 = vmatmul.mubr.bf16.gmra.mxu0 %v408
        %v602 = vpop.f32.mrf.mxu0
        %v603 = vadd.f32 %v438, %v602
        %v604 = vpop.f32.mrf.mxu0
        %v605 = vpop.f32.mrf.mxu0
        %v606 = vadd.f32 %v438, %v605
        %v607 = vpop.f32.mrf.mxu0
        %608 = vmatprep.mubr.bf16.mxu0 0
        %609 = vmatmul.mubr.bf16.gmra.mxu0 %v409
        %v610 = vpop.f32.mrf.mxu0
        %v611 = vadd.f32 %v438, %v610
        %v612 = vpop.f32.mrf.mxu0
        %v613 = vpop.f32.mrf.mxu0
        %v614 = vadd.f32 %v438, %v613
        %v615 = vpop.f32.mrf.mxu0
        %616 = vmatprep.mubr.bf16.mxu0 0
        %617 = vmatmul.mubr.bf16.gmra.mxu0 %v410
        %v618 = vpop.f32.mrf.mxu0
        %v619 = vadd.f32 %v438, %v618
        %v620 = vpop.f32.mrf.mxu0
        %v621 = vpop.f32.mrf.mxu0
        %v622 = vadd.f32 %v438, %v621
        %v623 = vpop.f32.mrf.mxu0
        %624 = vmatprep.mubr.bf16.mxu0 0
        %625 = vmatmul.mubr.bf16.gmra.mxu0 %v411
        %v626 = vpop.f32.mrf.mxu0
        %v627 = vadd.f32 %v438, %v626
        %v628 = vpop.f32.mrf.mxu0
        %v629 = vpop.f32.mrf.mxu0
        %v630 = vadd.f32 %v438, %v629
        %v631 = vpop.f32.mrf.mxu0
        %632 = vmatprep.mubr.bf16.mxu0 0
        %633 = vmatmul.mubr.bf16.gmra.mxu0 %v412
        %v634 = vpop.f32.mrf.mxu0
        %v635 = vadd.f32 %v438, %v634
        %v636 = vpop.f32.mrf.mxu0
        %v637 = vpop.f32.mrf.mxu0
        %v638 = vadd.f32 %v438, %v637
        %v639 = vpop.f32.mrf.mxu0
        %640 = vmatprep.mubr.bf16.mxu0 0
        %641 = vmatmul.mubr.bf16.gmra.mxu0 %v413
        %v642 = vpop.f32.mrf.mxu0
        %v643 = vadd.f32 %v438, %v642
        %v644 = vpop.f32.mrf.mxu0
        %v645 = vpop.f32.mrf.mxu0
        %v646 = vadd.f32 %v438, %v645
        %v647 = vpop.f32.mrf.mxu0
        %648 = vmatprep.mubr.bf16.mxu0 0
        %649 = vmatmul.mubr.bf16.gmra.mxu0 %v414
        %v650 = vpop.f32.mrf.mxu0
        %v651 = vadd.f32 %v438, %v650
        %v652 = vpop.f32.mrf.mxu0
        %v653 = vpop.f32.mrf.mxu0
        %v654 = vadd.f32 %v438, %v653
        %v655 = vpop.f32.mrf.mxu0
        %656 = vmatprep.mubr.bf16.mxu0 0
        %657 = vmatmul.mubr.bf16.gmra.mxu0 %v415
        %v658 = vpop.f32.mrf.mxu0
        %v659 = vadd.f32 %v438, %v658
        %v660 = vpop.f32.mrf.mxu0
        %v661 = vpop.f32.mrf.mxu0
        %v662 = vadd.f32 %v438, %v661
        %v663 = vpop.f32.mrf.mxu0
        %664 = vmatprep.mubr.bf16.mxu0 0
        %665 = vmatmul.mubr.bf16.gmra.mxu0 %v416
        %v666 = vpop.f32.mrf.mxu0
        %v667 = vadd.f32 %v438, %v666
        %v668 = vpop.f32.mrf.mxu0
        %v669 = vpop.f32.mrf.mxu0
        %v670 = vpop.f32.mrf.mxu0
        %671 = vdwg.mxu0
        %v672 = vmax.f32 %v523, 0.0
        %v673 = vmax.f32 %v526, 0.0
        %v674 = vmax.f32 %v531, 0.0
        %v675 = vmax.f32 %v534, 0.0
        %v676 = vmax.f32 %v539, 0.0
        %v677 = vmax.f32 %v542, 0.0
        %v678 = vmax.f32 %v547, 0.0
        %v679 = vmax.f32 %v550, 0.0
        %v680 = vmax.f32 %v555, 0.0
        %v681 = vmax.f32 %v558, 0.0
        %v682 = vmax.f32 %v563, 0.0
        %v683 = vmax.f32 %v566, 0.0
        %v684 = vmax.f32 %v571, 0.0
        %v685 = vmax.f32 %v574, 0.0
        %v686 = vmax.f32 %v579, 0.0
        %v687 = vmax.f32 %v582, 0.0
        %v688 = vmax.f32 %v587, 0.0
        %v689 = vmax.f32 %v590, 0.0
        %v690 = vmax.f32 %v595, 0.0
        %v691 = vmax.f32 %v598, 0.0
        %v692 = vmax.f32 %v603, 0.0
        %v693 = vmax.f32 %v606, 0.0
        %v694 = vmax.f32 %v611, 0.0
        %v695 = vmax.f32 %v614, 0.0
        %v696 = vmax.f32 %v619, 0.0
        %v697 = vmax.f32 %v622, 0.0
        %v698 = vmax.f32 %v627, 0.0
        %v699 = vmax.f32 %v630, 0.0
        %v700 = vmax.f32 %v635, 0.0
        %v701 = vmax.f32 %v638, 0.0
        %v702 = vmax.f32 %v643, 0.0
        %v703 = vmax.f32 %v646, 0.0
        %v704 = vmax.f32 %v651, 0.0
        %v705 = vmax.f32 %v654, 0.0
        %v706 = vmax.f32 %v659, 0.0
        %v707 = vmax.f32 %v662, 0.0
        %v708 = vmax.f32 %v667, 0.0
        %s709 = ssub.s32 %s359, 17
        %v710 = vlaneseq
        %v711 = vshrl.u32 %v710, 7
        %v712 = vadd.s32 %v711, 8
        %v713 = vadd.s32 %v711, 16
        %v714 = vadd.s32 %v711, 24
        %v715 = vadd.s32 %v711, 32
        %v716 = vadd.s32 %v711, 40
        %v717 = vadd.s32 %v711, 48
        %v718 = vadd.s32 %v711, 56
        %v719 = vadd.s32 %v711, 64
        %v720 = vadd.s32 %v711, 72
        %v721 = vadd.s32 %v711, 80
        %v722 = vadd.s32 %v711, 88
        %v723 = vadd.s32 %v711, 96
        %v724 = vadd.s32 %v711, 104
        %v725 = vadd.s32 %v711, 112
        %v726 = vadd.s32 %v711, 120
        %v727 = vadd.s32 %v711, 128
        %v728 = vadd.s32 %v711, 136
        %v729 = vadd.s32 %v711, 144
        %v730 = vadd.s32 %v711, 152
        %v731 = vadd.s32 %v711, 160
        %v732 = vadd.s32 %v711, 168
        %v733 = vadd.s32 %v711, 176
        %v734 = vadd.s32 %v711, 184
        %v735 = vadd.s32 %v711, 192
        %v736 = vadd.s32 %v711, 200
        %v737 = vadd.s32 %v711, 208
        %v738 = vadd.s32 %v711, 216
        %v739 = vadd.s32 %v711, 224
        %v740 = vadd.s32 %v711, 232
        %v741 = vadd.s32 %v711, 240
        %v742 = vadd.s32 %v711, 248
        %v743 = vadd.s32 %v711, 256
        %v744 = vadd.s32 %v711, 264
        %v745 = vadd.s32 %v711, 272
        %v746 = vadd.s32 %v711, 280
        %v747 = vadd.s32 %v711, 288
        %v748 = vstv %s709
        %v749 = vadd.s32 %v748, %v711
        %v750 = vadd.s32 %v748, %v712
        %v751 = vadd.s32 %v748, %v713
        %v752 = vadd.s32 %v748, %v714
        %v753 = vadd.s32 %v748, %v715
        %v754 = vadd.s32 %v748, %v716
        %v755 = vadd.s32 %v748, %v717
        %v756 = vadd.s32 %v748, %v718
        %v757 = vadd.s32 %v748, %v719
        %v758 = vadd.s32 %v748, %v720
        %v759 = vadd.s32 %v748, %v721
        %v760 = vadd.s32 %v748, %v722
        %v761 = vadd.s32 %v748, %v723
        %v762 = vadd.s32 %v748, %v724
        %v763 = vadd.s32 %v748, %v725
        %v764 = vadd.s32 %v748, %v726
        %v765 = vadd.s32 %v748, %v727
        %v766 = vadd.s32 %v748, %v728
        %v767 = vadd.s32 %v748, %v729
        %v768 = vadd.s32 %v748, %v730
        %v769 = vadd.s32 %v748, %v731
        %v770 = vadd.s32 %v748, %v732
        %v771 = vadd.s32 %v748, %v733
        %v772 = vadd.s32 %v748, %v734
        %v773 = vadd.s32 %v748, %v735
        %v774 = vadd.s32 %v748, %v736
        %v775 = vadd.s32 %v748, %v737
        %v776 = vadd.s32 %v748, %v738
        %v777 = vadd.s32 %v748, %v739
        %v778 = vadd.s32 %v748, %v740
        %v779 = vadd.s32 %v748, %v741
        %v780 = vadd.s32 %v748, %v742
        %v781 = vadd.s32 %v748, %v743
        %v782 = vadd.s32 %v748, %v744
        %v783 = vadd.s32 %v748, %v745
        %v784 = vadd.s32 %v748, %v746
        %v785 = vadd.s32 %v748, %v747
        %vm786 = vcmp.ge.s32.totalorder %v749, 0
        %vm787 = vcmp.ge.s32.totalorder %v750, 0
        %vm788 = vcmp.ge.s32.totalorder %v751, 0
        %vm789 = vcmp.ge.s32.totalorder %v752, 0
        %vm790 = vcmp.ge.s32.totalorder %v753, 0
        %vm791 = vcmp.ge.s32.totalorder %v754, 0
        %vm792 = vcmp.ge.s32.totalorder %v755, 0
        %vm793 = vcmp.ge.s32.totalorder %v756, 0
        %vm794 = vcmp.ge.s32.totalorder %v757, 0
        %vm795 = vcmp.ge.s32.totalorder %v758, 0
        %vm796 = vcmp.ge.s32.totalorder %v759, 0
        %vm797 = vcmp.ge.s32.totalorder %v760, 0
        %vm798 = vcmp.ge.s32.totalorder %v761, 0
        %vm799 = vcmp.ge.s32.totalorder %v762, 0
        %vm800 = vcmp.ge.s32.totalorder %v763, 0
        %vm801 = vcmp.ge.s32.totalorder %v764, 0
        %vm802 = vcmp.ge.s32.totalorder %v765, 0
        %vm803 = vcmp.ge.s32.totalorder %v766, 0
        %vm804 = vcmp.ge.s32.totalorder %v767, 0
        %vm805 = vcmp.ge.s32.totalorder %v768, 0
        %vm806 = vcmp.ge.s32.totalorder %v769, 0
        %vm807 = vcmp.ge.s32.totalorder %v770, 0
        %vm808 = vcmp.ge.s32.totalorder %v771, 0
        %vm809 = vcmp.ge.s32.totalorder %v772, 0
        %vm810 = vcmp.ge.s32.totalorder %v773, 0
        %vm811 = vcmp.ge.s32.totalorder %v774, 0
        %vm812 = vcmp.ge.s32.totalorder %v775, 0
        %vm813 = vcmp.ge.s32.totalorder %v776, 0
        %vm814 = vcmp.ge.s32.totalorder %v777, 0
        %vm815 = vcmp.ge.s32.totalorder %v778, 0
        %vm816 = vcmp.ge.s32.totalorder %v779, 0
        %vm817 = vcmp.ge.s32.totalorder %v780, 0
        %vm818 = vcmp.ge.s32.totalorder %v781, 0
        %vm819 = vcmp.ge.s32.totalorder %v782, 0
        %vm820 = vcmp.ge.s32.totalorder %v783, 0
        %vm821 = vcmp.ge.s32.totalorder %v784, 0
        %vm822 = vcmp.ge.s32.totalorder %v785, 0
        %vm823 = vcmp.lt.s32.totalorder %v749, 256
        %vm824 = vcmp.lt.s32.totalorder %v750, 256
        %vm825 = vcmp.lt.s32.totalorder %v751, 256
        %vm826 = vcmp.lt.s32.totalorder %v752, 256
        %vm827 = vcmp.lt.s32.totalorder %v753, 256
        %vm828 = vcmp.lt.s32.totalorder %v754, 256
        %vm829 = vcmp.lt.s32.totalorder %v755, 256
        %vm830 = vcmp.lt.s32.totalorder %v756, 256
        %vm831 = vcmp.lt.s32.totalorder %v757, 256
        %vm832 = vcmp.lt.s32.totalorder %v758, 256
        %vm833 = vcmp.lt.s32.totalorder %v759, 256
        %vm834 = vcmp.lt.s32.totalorder %v760, 256
        %vm835 = vcmp.lt.s32.totalorder %v761, 256
        %vm836 = vcmp.lt.s32.totalorder %v762, 256
        %vm837 = vcmp.lt.s32.totalorder %v763, 256
        %vm838 = vcmp.lt.s32.totalorder %v764, 256
        %vm839 = vcmp.lt.s32.totalorder %v765, 256
        %vm840 = vcmp.lt.s32.totalorder %v766, 256
        %vm841 = vcmp.lt.s32.totalorder %v767, 256
        %vm842 = vcmp.lt.s32.totalorder %v768, 256
        %vm843 = vcmp.lt.s32.totalorder %v769, 256
        %vm844 = vcmp.lt.s32.totalorder %v770, 256
        %vm845 = vcmp.lt.s32.totalorder %v771, 256
        %vm846 = vcmp.lt.s32.totalorder %v772, 256
        %vm847 = vcmp.lt.s32.totalorder %v773, 256
        %vm848 = vcmp.lt.s32.totalorder %v774, 256
        %vm849 = vcmp.lt.s32.totalorder %v775, 256
        %vm850 = vcmp.lt.s32.totalorder %v776, 256
        %vm851 = vcmp.lt.s32.totalorder %v777, 256
        %vm852 = vcmp.lt.s32.totalorder %v778, 256
        %vm853 = vcmp.lt.s32.totalorder %v779, 256
        %vm854 = vcmp.lt.s32.totalorder %v780, 256
        %vm855 = vcmp.lt.s32.totalorder %v781, 256
        %vm856 = vcmp.lt.s32.totalorder %v782, 256
        %vm857 = vcmp.lt.s32.totalorder %v783, 256
        %vm858 = vcmp.lt.s32.totalorder %v784, 256
        %vm859 = vcmp.lt.s32.totalorder %v785, 256
        %vm860 = vmand %vm786, %vm823
        %vm861 = vmand %vm787, %vm824
        %vm862 = vmand %vm788, %vm825
        %vm863 = vmand %vm789, %vm826
        %vm864 = vmand %vm790, %vm827
        %vm865 = vmand %vm791, %vm828
        %vm866 = vmand %vm792, %vm829
        %vm867 = vmand %vm793, %vm830
        %vm868 = vmand %vm794, %vm831
        %vm869 = vmand %vm795, %vm832
        %vm870 = vmand %vm796, %vm833
        %vm871 = vmand %vm797, %vm834
        %vm872 = vmand %vm798, %vm835
        %vm873 = vmand %vm799, %vm836
        %vm874 = vmand %vm800, %vm837
        %vm875 = vmand %vm801, %vm838
        %vm876 = vmand %vm802, %vm839
        %vm877 = vmand %vm803, %vm840
        %vm878 = vmand %vm804, %vm841
        %vm879 = vmand %vm805, %vm842
        %vm880 = vmand %vm806, %vm843
        %vm881 = vmand %vm807, %vm844
        %vm882 = vmand %vm808, %vm845
        %vm883 = vmand %vm809, %vm846
        %vm884 = vmand %vm810, %vm847
        %vm885 = vmand %vm811, %vm848
        %vm886 = vmand %vm812, %vm849
        %vm887 = vmand %vm813, %vm850
        %vm888 = vmand %vm814, %vm851
        %vm889 = vmand %vm815, %vm852
        %vm890 = vmand %vm816, %vm853
        %vm891 = vmand %vm817, %vm854
        %vm892 = vmand %vm818, %vm855
        %vm893 = vmand %vm819, %vm856
        %vm894 = vmand %vm820, %vm857
        %vm895 = vmand %vm821, %vm858
        %vm896 = vmand %vm822, %vm859
        %v897 = vsel %vm860, 1, 0
        %v898 = vsel %vm861, 1, 0
        %v899 = vsel %vm862, 1, 0
        %v900 = vsel %vm863, 1, 0
        %v901 = vsel %vm864, 1, 0
        %v902 = vsel %vm865, 1, 0
        %v903 = vsel %vm866, 1, 0
        %v904 = vsel %vm867, 1, 0
        %v905 = vsel %vm868, 1, 0
        %v906 = vsel %vm869, 1, 0
        %v907 = vsel %vm870, 1, 0
        %v908 = vsel %vm871, 1, 0
        %v909 = vsel %vm872, 1, 0
        %v910 = vsel %vm873, 1, 0
        %v911 = vsel %vm874, 1, 0
        %v912 = vsel %vm875, 1, 0
        %v913 = vsel %vm876, 1, 0
        %v914 = vsel %vm877, 1, 0
        %v915 = vsel %vm878, 1, 0
        %v916 = vsel %vm879, 1, 0
        %v917 = vsel %vm880, 1, 0
        %v918 = vsel %vm881, 1, 0
        %v919 = vsel %vm882, 1, 0
        %v920 = vsel %vm883, 1, 0
        %v921 = vsel %vm884, 1, 0
        %v922 = vsel %vm885, 1, 0
        %v923 = vsel %vm886, 1, 0
        %v924 = vsel %vm887, 1, 0
        %v925 = vsel %vm888, 1, 0
        %v926 = vsel %vm889, 1, 0
        %v927 = vsel %vm890, 1, 0
        %v928 = vsel %vm891, 1, 0
        %v929 = vsel %vm892, 1, 0
        %v930 = vsel %vm893, 1, 0
        %v931 = vsel %vm894, 1, 0
        %v932 = vsel %vm895, 1, 0
        %v933 = vsel %vm896, 1, 0
        %vm934 = vcmp.eq.s32.totalorder %v897, 1
        %vm935 = vcmp.eq.s32.totalorder %v898, 1
        %vm936 = vcmp.eq.s32.totalorder %v899, 1
        %vm937 = vcmp.eq.s32.totalorder %v900, 1
        %vm938 = vcmp.eq.s32.totalorder %v901, 1
        %vm939 = vcmp.eq.s32.totalorder %v902, 1
        %vm940 = vcmp.eq.s32.totalorder %v903, 1
        %vm941 = vcmp.eq.s32.totalorder %v904, 1
        %vm942 = vcmp.eq.s32.totalorder %v905, 1
        %vm943 = vcmp.eq.s32.totalorder %v906, 1
        %vm944 = vcmp.eq.s32.totalorder %v907, 1
        %vm945 = vcmp.eq.s32.totalorder %v908, 1
        %vm946 = vcmp.eq.s32.totalorder %v909, 1
        %vm947 = vcmp.eq.s32.totalorder %v910, 1
        %vm948 = vcmp.eq.s32.totalorder %v911, 1
        %vm949 = vcmp.eq.s32.totalorder %v912, 1
        %vm950 = vcmp.eq.s32.totalorder %v913, 1
        %vm951 = vcmp.eq.s32.totalorder %v914, 1
        %vm952 = vcmp.eq.s32.totalorder %v915, 1
        %vm953 = vcmp.eq.s32.totalorder %v916, 1
        %vm954 = vcmp.eq.s32.totalorder %v917, 1
        %vm955 = vcmp.eq.s32.totalorder %v918, 1
        %vm956 = vcmp.eq.s32.totalorder %v919, 1
        %vm957 = vcmp.eq.s32.totalorder %v920, 1
        %vm958 = vcmp.eq.s32.totalorder %v921, 1
        %vm959 = vcmp.eq.s32.totalorder %v922, 1
        %vm960 = vcmp.eq.s32.totalorder %v923, 1
        %vm961 = vcmp.eq.s32.totalorder %v924, 1
        %vm962 = vcmp.eq.s32.totalorder %v925, 1
        %vm963 = vcmp.eq.s32.totalorder %v926, 1
        %vm964 = vcmp.eq.s32.totalorder %v927, 1
        %vm965 = vcmp.eq.s32.totalorder %v928, 1
        %vm966 = vcmp.eq.s32.totalorder %v929, 1
        %vm967 = vcmp.eq.s32.totalorder %v930, 1
        %vm968 = vcmp.eq.s32.totalorder %v931, 1
        %vm969 = vcmp.eq.s32.totalorder %v932, 1
        %vm970 = vcmp.eq.s32.totalorder %v933, 1
        %v971 = vsel %vm934, %v672, 0.0
        %v972 = vsel %vm935, %v673, 0.0
        %v973 = vsel %vm936, %v674, 0.0
        %v974 = vsel %vm937, %v675, 0.0
        %v975 = vsel %vm938, %v676, 0.0
        %v976 = vsel %vm939, %v677, 0.0
        %v977 = vsel %vm940, %v678, 0.0
        %v978 = vsel %vm941, %v679, 0.0
        %v979 = vsel %vm942, %v680, 0.0
        %v980 = vsel %vm943, %v681, 0.0
        %v981 = vsel %vm944, %v682, 0.0
        %v982 = vsel %vm945, %v683, 0.0
        %v983 = vsel %vm946, %v684, 0.0
        %v984 = vsel %vm947, %v685, 0.0
        %v985 = vsel %vm948, %v686, 0.0
        %v986 = vsel %vm949, %v687, 0.0
        %v987 = vsel %vm950, %v688, 0.0
        %v988 = vsel %vm951, %v689, 0.0
        %v989 = vsel %vm952, %v690, 0.0
        %v990 = vsel %vm953, %v691, 0.0
        %v991 = vsel %vm954, %v692, 0.0
        %v992 = vsel %vm955, %v693, 0.0
        %v993 = vsel %vm956, %v694, 0.0
        %v994 = vsel %vm957, %v695, 0.0
        %v995 = vsel %vm958, %v696, 0.0
        %v996 = vsel %vm959, %v697, 0.0
        %v997 = vsel %vm960, %v698, 0.0
        %v998 = vsel %vm961, %v699, 0.0
        %v999 = vsel %vm962, %v700, 0.0
        %v1000 = vsel %vm963, %v701, 0.0
        %v1001 = vsel %vm964, %v702, 0.0
        %v1002 = vsel %vm965, %v703, 0.0
        %v1003 = vsel %vm966, %v704, 0.0
        %v1004 = vsel %vm967, %v705, 0.0
        %v1005 = vsel %vm968, %v706, 0.0
        %v1006 = vsel %vm969, %v707, 0.0
        %v1007 = vsel %vm970, %v708, 0.0
        %vm1008 = vcmp.lt.s32.totalorder %v749, 0
        %v1009 = vsub.s32 0, %v749
        %v1010 = vsel %vm1008, %v1009, %v749
        %v1011 = vshrl.u32 %v1010, 4
        %v1012 = vand.u32 %v1010, 15
        %v1013 = vsub.s32 0, %v1012
        %v1014 = vsel %vm1008, %v1013, %v1012
        %vm1015 = vcmp.lt.s32.totalorder %v750, 0
        %v1016 = vsub.s32 0, %v750
        %v1017 = vsel %vm1015, %v1016, %v750
        %v1018 = vshrl.u32 %v1017, 4
        %v1019 = vand.u32 %v1017, 15
        %v1020 = vsub.s32 0, %v1019
        %v1021 = vsel %vm1015, %v1020, %v1019
        %vm1022 = vcmp.lt.s32.totalorder %v751, 0
        %v1023 = vsub.s32 0, %v751
        %v1024 = vsel %vm1022, %v1023, %v751
        %v1025 = vshrl.u32 %v1024, 4
        %v1026 = vand.u32 %v1024, 15
        %v1027 = vsub.s32 0, %v1026
        %v1028 = vsel %vm1022, %v1027, %v1026
        %vm1029 = vcmp.lt.s32.totalorder %v752, 0
        %v1030 = vsub.s32 0, %v752
        %v1031 = vsel %vm1029, %v1030, %v752
        %v1032 = vshrl.u32 %v1031, 4
        %v1033 = vand.u32 %v1031, 15
        %v1034 = vsub.s32 0, %v1033
        %v1035 = vsel %vm1029, %v1034, %v1033
        %vm1036 = vcmp.lt.s32.totalorder %v753, 0
        %v1037 = vsub.s32 0, %v753
        %v1038 = vsel %vm1036, %v1037, %v753
        %v1039 = vshrl.u32 %v1038, 4
        %v1040 = vand.u32 %v1038, 15
        %v1041 = vsub.s32 0, %v1040
        %v1042 = vsel %vm1036, %v1041, %v1040
        %vm1043 = vcmp.lt.s32.totalorder %v754, 0
        %v1044 = vsub.s32 0, %v754
        %v1045 = vsel %vm1043, %v1044, %v754
        %v1046 = vshrl.u32 %v1045, 4
        %v1047 = vand.u32 %v1045, 15
        %v1048 = vsub.s32 0, %v1047
        %v1049 = vsel %vm1043, %v1048, %v1047
        %vm1050 = vcmp.lt.s32.totalorder %v755, 0
        %v1051 = vsub.s32 0, %v755
        %v1052 = vsel %vm1050, %v1051, %v755
        %v1053 = vshrl.u32 %v1052, 4
        %v1054 = vand.u32 %v1052, 15
        %v1055 = vsub.s32 0, %v1054
        %v1056 = vsel %vm1050, %v1055, %v1054
        %vm1057 = vcmp.lt.s32.totalorder %v756, 0
        %v1058 = vsub.s32 0, %v756
        %v1059 = vsel %vm1057, %v1058, %v756
        %v1060 = vshrl.u32 %v1059, 4
        %v1061 = vand.u32 %v1059, 15
        %v1062 = vsub.s32 0, %v1061
        %v1063 = vsel %vm1057, %v1062, %v1061
        %vm1064 = vcmp.lt.s32.totalorder %v757, 0
        %v1065 = vsub.s32 0, %v757
        %v1066 = vsel %vm1064, %v1065, %v757
        %v1067 = vshrl.u32 %v1066, 4
        %v1068 = vand.u32 %v1066, 15
        %v1069 = vsub.s32 0, %v1068
        %v1070 = vsel %vm1064, %v1069, %v1068
        %vm1071 = vcmp.lt.s32.totalorder %v758, 0
        %v1072 = vsub.s32 0, %v758
        %v1073 = vsel %vm1071, %v1072, %v758
        %v1074 = vshrl.u32 %v1073, 4
        %v1075 = vand.u32 %v1073, 15
        %v1076 = vsub.s32 0, %v1075
        %v1077 = vsel %vm1071, %v1076, %v1075
        %vm1078 = vcmp.lt.s32.totalorder %v759, 0
        %v1079 = vsub.s32 0, %v759
        %v1080 = vsel %vm1078, %v1079, %v759
        %v1081 = vshrl.u32 %v1080, 4
        %v1082 = vand.u32 %v1080, 15
        %v1083 = vsub.s32 0, %v1082
        %v1084 = vsel %vm1078, %v1083, %v1082
        %vm1085 = vcmp.lt.s32.totalorder %v760, 0
        %v1086 = vsub.s32 0, %v760
        %v1087 = vsel %vm1085, %v1086, %v760
        %v1088 = vshrl.u32 %v1087, 4
        %v1089 = vand.u32 %v1087, 15
        %v1090 = vsub.s32 0, %v1089
        %v1091 = vsel %vm1085, %v1090, %v1089
        %vm1092 = vcmp.lt.s32.totalorder %v761, 0
        %v1093 = vsub.s32 0, %v761
        %v1094 = vsel %vm1092, %v1093, %v761
        %v1095 = vshrl.u32 %v1094, 4
        %v1096 = vand.u32 %v1094, 15
        %v1097 = vsub.s32 0, %v1096
        %v1098 = vsel %vm1092, %v1097, %v1096
        %vm1099 = vcmp.lt.s32.totalorder %v762, 0
        %v1100 = vsub.s32 0, %v762
        %v1101 = vsel %vm1099, %v1100, %v762
        %v1102 = vshrl.u32 %v1101, 4
        %v1103 = vand.u32 %v1101, 15
        %v1104 = vsub.s32 0, %v1103
        %v1105 = vsel %vm1099, %v1104, %v1103
        %vm1106 = vcmp.lt.s32.totalorder %v763, 0
        %v1107 = vsub.s32 0, %v763
        %v1108 = vsel %vm1106, %v1107, %v763
        %v1109 = vshrl.u32 %v1108, 4
        %v1110 = vand.u32 %v1108, 15
        %v1111 = vsub.s32 0, %v1110
        %v1112 = vsel %vm1106, %v1111, %v1110
        %vm1113 = vcmp.lt.s32.totalorder %v764, 0
        %v1114 = vsub.s32 0, %v764
        %v1115 = vsel %vm1113, %v1114, %v764
        %v1116 = vshrl.u32 %v1115, 4
        %v1117 = vand.u32 %v1115, 15
        %v1118 = vsub.s32 0, %v1117
        %v1119 = vsel %vm1113, %v1118, %v1117
        %vm1120 = vcmp.lt.s32.totalorder %v765, 0
        %v1121 = vsub.s32 0, %v765
        %v1122 = vsel %vm1120, %v1121, %v765
        %v1123 = vshrl.u32 %v1122, 4
        %v1124 = vand.u32 %v1122, 15
        %v1125 = vsub.s32 0, %v1124
        %v1126 = vsel %vm1120, %v1125, %v1124
        %vm1127 = vcmp.lt.s32.totalorder %v766, 0
        %v1128 = vsub.s32 0, %v766
        %v1129 = vsel %vm1127, %v1128, %v766
        %v1130 = vshrl.u32 %v1129, 4
        %v1131 = vand.u32 %v1129, 15
        %v1132 = vsub.s32 0, %v1131
        %v1133 = vsel %vm1127, %v1132, %v1131
        %vm1134 = vcmp.lt.s32.totalorder %v767, 0
        %v1135 = vsub.s32 0, %v767
        %v1136 = vsel %vm1134, %v1135, %v767
        %v1137 = vshrl.u32 %v1136, 4
        %v1138 = vand.u32 %v1136, 15
        %v1139 = vsub.s32 0, %v1138
        %v1140 = vsel %vm1134, %v1139, %v1138
        %vm1141 = vcmp.lt.s32.totalorder %v768, 0
        %v1142 = vsub.s32 0, %v768
        %v1143 = vsel %vm1141, %v1142, %v768
        %v1144 = vshrl.u32 %v1143, 4
        %v1145 = vand.u32 %v1143, 15
        %v1146 = vsub.s32 0, %v1145
        %v1147 = vsel %vm1141, %v1146, %v1145
        %vm1148 = vcmp.lt.s32.totalorder %v769, 0
        %v1149 = vsub.s32 0, %v769
        %v1150 = vsel %vm1148, %v1149, %v769
        %v1151 = vshrl.u32 %v1150, 4
        %v1152 = vand.u32 %v1150, 15
        %v1153 = vsub.s32 0, %v1152
        %v1154 = vsel %vm1148, %v1153, %v1152
        %vm1155 = vcmp.lt.s32.totalorder %v770, 0
        %v1156 = vsub.s32 0, %v770
        %v1157 = vsel %vm1155, %v1156, %v770
        %v1158 = vshrl.u32 %v1157, 4
        %v1159 = vand.u32 %v1157, 15
        %v1160 = vsub.s32 0, %v1159
        %v1161 = vsel %vm1155, %v1160, %v1159
        %vm1162 = vcmp.lt.s32.totalorder %v771, 0
        %v1163 = vsub.s32 0, %v771
        %v1164 = vsel %vm1162, %v1163, %v771
        %v1165 = vshrl.u32 %v1164, 4
        %v1166 = vand.u32 %v1164, 15
        %v1167 = vsub.s32 0, %v1166
        %v1168 = vsel %vm1162, %v1167, %v1166
        %vm1169 = vcmp.lt.s32.totalorder %v772, 0
        %v1170 = vsub.s32 0, %v772
        %v1171 = vsel %vm1169, %v1170, %v772
        %v1172 = vshrl.u32 %v1171, 4
        %v1173 = vand.u32 %v1171, 15
        %v1174 = vsub.s32 0, %v1173
        %v1175 = vsel %vm1169, %v1174, %v1173
        %vm1176 = vcmp.lt.s32.totalorder %v773, 0
        %v1177 = vsub.s32 0, %v773
        %v1178 = vsel %vm1176, %v1177, %v773
        %v1179 = vshrl.u32 %v1178, 4
        %v1180 = vand.u32 %v1178, 15
        %v1181 = vsub.s32 0, %v1180
        %v1182 = vsel %vm1176, %v1181, %v1180
        %vm1183 = vcmp.lt.s32.totalorder %v774, 0
        %v1184 = vsub.s32 0, %v774
        %v1185 = vsel %vm1183, %v1184, %v774
        %v1186 = vshrl.u32 %v1185, 4
        %v1187 = vand.u32 %v1185, 15
        %v1188 = vsub.s32 0, %v1187
        %v1189 = vsel %vm1183, %v1188, %v1187
        %vm1190 = vcmp.lt.s32.totalorder %v775, 0
        %v1191 = vsub.s32 0, %v775
        %v1192 = vsel %vm1190, %v1191, %v775
        %v1193 = vshrl.u32 %v1192, 4
        %v1194 = vand.u32 %v1192, 15
        %v1195 = vsub.s32 0, %v1194
        %v1196 = vsel %vm1190, %v1195, %v1194
        %vm1197 = vcmp.lt.s32.totalorder %v776, 0
        %v1198 = vsub.s32 0, %v776
        %v1199 = vsel %vm1197, %v1198, %v776
        %v1200 = vshrl.u32 %v1199, 4
        %v1201 = vand.u32 %v1199, 15
        %v1202 = vsub.s32 0, %v1201
        %v1203 = vsel %vm1197, %v1202, %v1201
        %vm1204 = vcmp.lt.s32.totalorder %v777, 0
        %v1205 = vsub.s32 0, %v777
        %v1206 = vsel %vm1204, %v1205, %v777
        %v1207 = vshrl.u32 %v1206, 4
        %v1208 = vand.u32 %v1206, 15
        %v1209 = vsub.s32 0, %v1208
        %v1210 = vsel %vm1204, %v1209, %v1208
        %vm1211 = vcmp.lt.s32.totalorder %v778, 0
        %v1212 = vsub.s32 0, %v778
        %v1213 = vsel %vm1211, %v1212, %v778
        %v1214 = vshrl.u32 %v1213, 4
        %v1215 = vand.u32 %v1213, 15
        %v1216 = vsub.s32 0, %v1215
        %v1217 = vsel %vm1211, %v1216, %v1215
        %vm1218 = vcmp.lt.s32.totalorder %v779, 0
        %v1219 = vsub.s32 0, %v779
        %v1220 = vsel %vm1218, %v1219, %v779
        %v1221 = vshrl.u32 %v1220, 4
        %v1222 = vand.u32 %v1220, 15
        %v1223 = vsub.s32 0, %v1222
        %v1224 = vsel %vm1218, %v1223, %v1222
        %vm1225 = vcmp.lt.s32.totalorder %v780, 0
        %v1226 = vsub.s32 0, %v780
        %v1227 = vsel %vm1225, %v1226, %v780
        %v1228 = vshrl.u32 %v1227, 4
        %v1229 = vand.u32 %v1227, 15
        %v1230 = vsub.s32 0, %v1229
        %v1231 = vsel %vm1225, %v1230, %v1229
        %vm1232 = vcmp.lt.s32.totalorder %v781, 0
        %v1233 = vsub.s32 0, %v781
        %v1234 = vsel %vm1232, %v1233, %v781
        %v1235 = vshrl.u32 %v1234, 4
        %v1236 = vand.u32 %v1234, 15
        %v1237 = vsub.s32 0, %v1236
        %v1238 = vsel %vm1232, %v1237, %v1236
        %vm1239 = vcmp.lt.s32.totalorder %v782, 0
        %v1240 = vsub.s32 0, %v782
        %v1241 = vsel %vm1239, %v1240, %v782
        %v1242 = vshrl.u32 %v1241, 4
        %v1243 = vand.u32 %v1241, 15
        %v1244 = vsub.s32 0, %v1243
        %v1245 = vsel %vm1239, %v1244, %v1243
        %vm1246 = vcmp.lt.s32.totalorder %v783, 0
        %v1247 = vsub.s32 0, %v783
        %v1248 = vsel %vm1246, %v1247, %v783
        %v1249 = vshrl.u32 %v1248, 4
        %v1250 = vand.u32 %v1248, 15
        %v1251 = vsub.s32 0, %v1250
        %v1252 = vsel %vm1246, %v1251, %v1250
        %vm1253 = vcmp.lt.s32.totalorder %v784, 0
        %v1254 = vsub.s32 0, %v784
        %v1255 = vsel %vm1253, %v1254, %v784
        %v1256 = vshrl.u32 %v1255, 4
        %v1257 = vand.u32 %v1255, 15
        %v1258 = vsub.s32 0, %v1257
        %v1259 = vsel %vm1253, %v1258, %v1257
        %vm1260 = vcmp.lt.s32.totalorder %v785, 0
        %v1261 = vsub.s32 0, %v785
        %v1262 = vsel %vm1260, %v1261, %v785
        %v1263 = vshrl.u32 %v1262, 4
        %v1264 = vand.u32 %v1262, 15
        %v1265 = vsub.s32 0, %v1264
        %v1266 = vsel %vm1260, %v1265, %v1264
        %vm1267 = vcmp.ne.s32.totalorder %v1014, 0
        %vm1268 = vcmp.ne.s32.totalorder %v1021, 0
        %vm1269 = vcmp.ne.s32.totalorder %v1028, 0
        %vm1270 = vcmp.ne.s32.totalorder %v1035, 0
        %vm1271 = vcmp.ne.s32.totalorder %v1042, 0
        %vm1272 = vcmp.ne.s32.totalorder %v1049, 0
        %vm1273 = vcmp.ne.s32.totalorder %v1056, 0
        %vm1274 = vcmp.ne.s32.totalorder %v1063, 0
        %vm1275 = vcmp.ne.s32.totalorder %v1070, 0
        %vm1276 = vcmp.ne.s32.totalorder %v1077, 0
        %vm1277 = vcmp.ne.s32.totalorder %v1084, 0
        %vm1278 = vcmp.ne.s32.totalorder %v1091, 0
        %vm1279 = vcmp.ne.s32.totalorder %v1098, 0
        %vm1280 = vcmp.ne.s32.totalorder %v1105, 0
        %vm1281 = vcmp.ne.s32.totalorder %v1112, 0
        %vm1282 = vcmp.ne.s32.totalorder %v1119, 0
        %vm1283 = vcmp.ne.s32.totalorder %v1126, 0
        %vm1284 = vcmp.ne.s32.totalorder %v1133, 0
        %vm1285 = vcmp.ne.s32.totalorder %v1140, 0
        %vm1286 = vcmp.ne.s32.totalorder %v1147, 0
        %vm1287 = vcmp.ne.s32.totalorder %v1154, 0
        %vm1288 = vcmp.ne.s32.totalorder %v1161, 0
        %vm1289 = vcmp.ne.s32.totalorder %v1168, 0
        %vm1290 = vcmp.ne.s32.totalorder %v1175, 0
        %vm1291 = vcmp.ne.s32.totalorder %v1182, 0
        %vm1292 = vcmp.ne.s32.totalorder %v1189, 0
        %vm1293 = vcmp.ne.s32.totalorder %v1196, 0
        %vm1294 = vcmp.ne.s32.totalorder %v1203, 0
        %vm1295 = vcmp.ne.s32.totalorder %v1210, 0
        %vm1296 = vcmp.ne.s32.totalorder %v1217, 0
        %vm1297 = vcmp.ne.s32.totalorder %v1224, 0
        %vm1298 = vcmp.ne.s32.totalorder %v1231, 0
        %vm1299 = vcmp.ne.s32.totalorder %v1238, 0
        %vm1300 = vcmp.ne.s32.totalorder %v1245, 0
        %vm1301 = vcmp.ne.s32.totalorder %v1252, 0
        %vm1302 = vcmp.ne.s32.totalorder %v1259, 0
        %vm1303 = vcmp.ne.s32.totalorder %v1266, 0
        %vm1304 = vcmp.lt.s32.totalorder %v1014, 0
        %vm1305 = vcmp.lt.s32.totalorder %v1021, 0
        %vm1306 = vcmp.lt.s32.totalorder %v1028, 0
        %vm1307 = vcmp.lt.s32.totalorder %v1035, 0
        %vm1308 = vcmp.lt.s32.totalorder %v1042, 0
        %vm1309 = vcmp.lt.s32.totalorder %v1049, 0
        %vm1310 = vcmp.lt.s32.totalorder %v1056, 0
        %vm1311 = vcmp.lt.s32.totalorder %v1063, 0
        %vm1312 = vcmp.lt.s32.totalorder %v1070, 0
        %vm1313 = vcmp.lt.s32.totalorder %v1077, 0
        %vm1314 = vcmp.lt.s32.totalorder %v1084, 0
        %vm1315 = vcmp.lt.s32.totalorder %v1091, 0
        %vm1316 = vcmp.lt.s32.totalorder %v1098, 0
        %vm1317 = vcmp.lt.s32.totalorder %v1105, 0
        %vm1318 = vcmp.lt.s32.totalorder %v1112, 0
        %vm1319 = vcmp.lt.s32.totalorder %v1119, 0
        %vm1320 = vcmp.lt.s32.totalorder %v1126, 0
        %vm1321 = vcmp.lt.s32.totalorder %v1133, 0
        %vm1322 = vcmp.lt.s32.totalorder %v1140, 0
        %vm1323 = vcmp.lt.s32.totalorder %v1147, 0
        %vm1324 = vcmp.lt.s32.totalorder %v1154, 0
        %vm1325 = vcmp.lt.s32.totalorder %v1161, 0
        %vm1326 = vcmp.lt.s32.totalorder %v1168, 0
        %vm1327 = vcmp.lt.s32.totalorder %v1175, 0
        %vm1328 = vcmp.lt.s32.totalorder %v1182, 0
        %vm1329 = vcmp.lt.s32.totalorder %v1189, 0
        %vm1330 = vcmp.lt.s32.totalorder %v1196, 0
        %vm1331 = vcmp.lt.s32.totalorder %v1203, 0
        %vm1332 = vcmp.lt.s32.totalorder %v1210, 0
        %vm1333 = vcmp.lt.s32.totalorder %v1217, 0
        %vm1334 = vcmp.lt.s32.totalorder %v1224, 0
        %vm1335 = vcmp.lt.s32.totalorder %v1231, 0
        %vm1336 = vcmp.lt.s32.totalorder %v1238, 0
        %vm1337 = vcmp.lt.s32.totalorder %v1245, 0
        %vm1338 = vcmp.lt.s32.totalorder %v1252, 0
        %vm1339 = vcmp.lt.s32.totalorder %v1259, 0
        %vm1340 = vcmp.lt.s32.totalorder %v1266, 0
        %vm1341 = vmand %vm1304, %vm1267
        %vm1342 = vmand %vm1305, %vm1268
        %vm1343 = vmand %vm1306, %vm1269
        %vm1344 = vmand %vm1307, %vm1270
        %vm1345 = vmand %vm1308, %vm1271
        %vm1346 = vmand %vm1309, %vm1272
        %vm1347 = vmand %vm1310, %vm1273
        %vm1348 = vmand %vm1311, %vm1274
        %vm1349 = vmand %vm1312, %vm1275
        %vm1350 = vmand %vm1313, %vm1276
        %vm1351 = vmand %vm1314, %vm1277
        %vm1352 = vmand %vm1315, %vm1278
        %vm1353 = vmand %vm1316, %vm1279
        %vm1354 = vmand %vm1317, %vm1280
        %vm1355 = vmand %vm1318, %vm1281
        %vm1356 = vmand %vm1319, %vm1282
        %vm1357 = vmand %vm1320, %vm1283
        %vm1358 = vmand %vm1321, %vm1284
        %vm1359 = vmand %vm1322, %vm1285
        %vm1360 = vmand %vm1323, %vm1286
        %vm1361 = vmand %vm1324, %vm1287
        %vm1362 = vmand %vm1325, %vm1288
        %vm1363 = vmand %vm1326, %vm1289
        %vm1364 = vmand %vm1327, %vm1290
        %vm1365 = vmand %vm1328, %vm1291
        %vm1366 = vmand %vm1329, %vm1292
        %vm1367 = vmand %vm1330, %vm1293
        %vm1368 = vmand %vm1331, %vm1294
        %vm1369 = vmand %vm1332, %vm1295
        %vm1370 = vmand %vm1333, %vm1296
        %vm1371 = vmand %vm1334, %vm1297
        %vm1372 = vmand %vm1335, %vm1298
        %vm1373 = vmand %vm1336, %vm1299
        %vm1374 = vmand %vm1337, %vm1300
        %vm1375 = vmand %vm1338, %vm1301
        %vm1376 = vmand %vm1339, %vm1302
        %vm1377 = vmand %vm1340, %vm1303
        %v1378 = vadd.s32 %v1014, 16
        %v1379 = vadd.s32 %v1021, 16
        %v1380 = vadd.s32 %v1028, 16
        %v1381 = vadd.s32 %v1035, 16
        %v1382 = vadd.s32 %v1042, 16
        %v1383 = vadd.s32 %v1049, 16
        %v1384 = vadd.s32 %v1056, 16
        %v1385 = vadd.s32 %v1063, 16
        %v1386 = vadd.s32 %v1070, 16
        %v1387 = vadd.s32 %v1077, 16
        %v1388 = vadd.s32 %v1084, 16
        %v1389 = vadd.s32 %v1091, 16
        %v1390 = vadd.s32 %v1098, 16
        %v1391 = vadd.s32 %v1105, 16
        %v1392 = vadd.s32 %v1112, 16
        %v1393 = vadd.s32 %v1119, 16
        %v1394 = vadd.s32 %v1126, 16
        %v1395 = vadd.s32 %v1133, 16
        %v1396 = vadd.s32 %v1140, 16
        %v1397 = vadd.s32 %v1147, 16
        %v1398 = vadd.s32 %v1154, 16
        %v1399 = vadd.s32 %v1161, 16
        %v1400 = vadd.s32 %v1168, 16
        %v1401 = vadd.s32 %v1175, 16
        %v1402 = vadd.s32 %v1182, 16
        %v1403 = vadd.s32 %v1189, 16
        %v1404 = vadd.s32 %v1196, 16
        %v1405 = vadd.s32 %v1203, 16
        %v1406 = vadd.s32 %v1210, 16
        %v1407 = vadd.s32 %v1217, 16
        %v1408 = vadd.s32 %v1224, 16
        %v1409 = vadd.s32 %v1231, 16
        %v1410 = vadd.s32 %v1238, 16
        %v1411 = vadd.s32 %v1245, 16
        %v1412 = vadd.s32 %v1252, 16
        %v1413 = vadd.s32 %v1259, 16
        %v1414 = vadd.s32 %v1266, 16
        %v1415 = vsel %vm1341, %v1378, %v1014
        %v1416 = vsel %vm1342, %v1379, %v1021
        %v1417 = vsel %vm1343, %v1380, %v1028
        %v1418 = vsel %vm1344, %v1381, %v1035
        %v1419 = vsel %vm1345, %v1382, %v1042
        %v1420 = vsel %vm1346, %v1383, %v1049
        %v1421 = vsel %vm1347, %v1384, %v1056
        %v1422 = vsel %vm1348, %v1385, %v1063
        %v1423 = vsel %vm1349, %v1386, %v1070
        %v1424 = vsel %vm1350, %v1387, %v1077
        %v1425 = vsel %vm1351, %v1388, %v1084
        %v1426 = vsel %vm1352, %v1389, %v1091
        %v1427 = vsel %vm1353, %v1390, %v1098
        %v1428 = vsel %vm1354, %v1391, %v1105
        %v1429 = vsel %vm1355, %v1392, %v1112
        %v1430 = vsel %vm1356, %v1393, %v1119
        %v1431 = vsel %vm1357, %v1394, %v1126
        %v1432 = vsel %vm1358, %v1395, %v1133
        %v1433 = vsel %vm1359, %v1396, %v1140
        %v1434 = vsel %vm1360, %v1397, %v1147
        %v1435 = vsel %vm1361, %v1398, %v1154
        %v1436 = vsel %vm1362, %v1399, %v1161
        %v1437 = vsel %vm1363, %v1400, %v1168
        %v1438 = vsel %vm1364, %v1401, %v1175
        %v1439 = vsel %vm1365, %v1402, %v1182
        %v1440 = vsel %vm1366, %v1403, %v1189
        %v1441 = vsel %vm1367, %v1404, %v1196
        %v1442 = vsel %vm1368, %v1405, %v1203
        %v1443 = vsel %vm1369, %v1406, %v1210
        %v1444 = vsel %vm1370, %v1407, %v1217
        %v1445 = vsel %vm1371, %v1408, %v1224
        %v1446 = vsel %vm1372, %v1409, %v1231
        %v1447 = vsel %vm1373, %v1410, %v1238
        %v1448 = vsel %vm1374, %v1411, %v1245
        %v1449 = vsel %vm1375, %v1412, %v1252
        %v1450 = vsel %vm1376, %v1413, %v1259
        %v1451 = vsel %vm1377, %v1414, %v1266
        %v1452 = vpack.c.bf16 %v972, %v971
        %v1453 = vpack.c.bf16 %v974, %v973
        %v1454 = vpack.c.bf16 %v976, %v975
        %v1455 = vpack.c.bf16 %v978, %v977
        %v1456 = vpack.c.bf16 %v980, %v979
        %v1457 = vpack.c.bf16 %v982, %v981
        %v1458 = vpack.c.bf16 %v984, %v983
        %v1459 = vpack.c.bf16 %v986, %v985
        %v1460 = vpack.c.bf16 %v988, %v987
        %v1461 = vpack.c.bf16 %v990, %v989
        %v1462 = vpack.c.bf16 %v992, %v991
        %v1463 = vpack.c.bf16 %v994, %v993
        %v1464 = vpack.c.bf16 %v996, %v995
        %v1465 = vpack.c.bf16 %v998, %v997
        %v1466 = vpack.c.bf16 %v1000, %v999
        %v1467 = vpack.c.bf16 %v1002, %v1001
        %v1468 = vpack.c.bf16 %v1004, %v1003
        %v1469 = vpack.c.bf16 %v1006, %v1005
        %v1470 = vpack.c.bf16 %v1007, %v1007
        %vm1471 = vcmp.ne.s32.totalorder %v1415, 15
        %vm1472 = vcmp.ne.s32.totalorder %v1416, 15
        %vm1473 = vcmp.ne.s32.totalorder %v1417, 15
        %vm1474 = vcmp.ne.s32.totalorder %v1418, 15
        %vm1475 = vcmp.ne.s32.totalorder %v1419, 15
        %vm1476 = vcmp.ne.s32.totalorder %v1420, 15
        %vm1477 = vcmp.ne.s32.totalorder %v1421, 15
        %vm1478 = vcmp.ne.s32.totalorder %v1422, 15
        %vm1479 = vcmp.ne.s32.totalorder %v1423, 15
        %vm1480 = vcmp.ne.s32.totalorder %v1424, 15
        %vm1481 = vcmp.ne.s32.totalorder %v1425, 15
        %vm1482 = vcmp.ne.s32.totalorder %v1426, 15
        %vm1483 = vcmp.ne.s32.totalorder %v1427, 15
        %vm1484 = vcmp.ne.s32.totalorder %v1428, 15
        %vm1485 = vcmp.ne.s32.totalorder %v1429, 15
        %vm1486 = vcmp.ne.s32.totalorder %v1430, 15
        %vm1487 = vcmp.ne.s32.totalorder %v1431, 15
        %vm1488 = vcmp.ne.s32.totalorder %v1432, 15
        %vm1489 = vcmp.ne.s32.totalorder %v1433, 15
        %vm1490 = vcmp.ne.s32.totalorder %v1434, 15
        %vm1491 = vcmp.ne.s32.totalorder %v1435, 15
        %vm1492 = vcmp.ne.s32.totalorder %v1436, 15
        %vm1493 = vcmp.ne.s32.totalorder %v1437, 15
        %vm1494 = vcmp.ne.s32.totalorder %v1438, 15
        %vm1495 = vcmp.ne.s32.totalorder %v1439, 15
        %vm1496 = vcmp.ne.s32.totalorder %v1440, 15
        %vm1497 = vcmp.ne.s32.totalorder %v1441, 15
        %vm1498 = vcmp.ne.s32.totalorder %v1442, 15
        %vm1499 = vcmp.ne.s32.totalorder %v1443, 15
        %vm1500 = vcmp.ne.s32.totalorder %v1444, 15
        %vm1501 = vcmp.ne.s32.totalorder %v1445, 15
        %vm1502 = vcmp.ne.s32.totalorder %v1446, 15
        %vm1503 = vcmp.ne.s32.totalorder %v1447, 15
        %vm1504 = vcmp.ne.s32.totalorder %v1448, 15
        %vm1505 = vcmp.ne.s32.totalorder %v1449, 15
        %vm1506 = vcmp.ne.s32.totalorder %v1450, 15
        %v1507 = vsel %vm1471, 1, 0
        %v1508 = vsel %vm1472, 1, 0
        %v1509 = vsel %vm1473, 1, 0
        %v1510 = vsel %vm1474, 1, 0
        %v1511 = vsel %vm1475, 1, 0
        %v1512 = vsel %vm1476, 1, 0
        %v1513 = vsel %vm1477, 1, 0
        %v1514 = vsel %vm1478, 1, 0
        %v1515 = vsel %vm1479, 1, 0
        %v1516 = vsel %vm1480, 1, 0
        %v1517 = vsel %vm1481, 1, 0
        %v1518 = vsel %vm1482, 1, 0
        %v1519 = vsel %vm1483, 1, 0
        %v1520 = vsel %vm1484, 1, 0
        %v1521 = vsel %vm1485, 1, 0
        %v1522 = vsel %vm1486, 1, 0
        %v1523 = vsel %vm1487, 1, 0
        %v1524 = vsel %vm1488, 1, 0
        %v1525 = vsel %vm1489, 1, 0
        %v1526 = vsel %vm1490, 1, 0
        %v1527 = vsel %vm1491, 1, 0
        %v1528 = vsel %vm1492, 1, 0
        %v1529 = vsel %vm1493, 1, 0
        %v1530 = vsel %vm1494, 1, 0
        %v1531 = vsel %vm1495, 1, 0
        %v1532 = vsel %vm1496, 1, 0
        %v1533 = vsel %vm1497, 1, 0
        %v1534 = vsel %vm1498, 1, 0
        %v1535 = vsel %vm1499, 1, 0
        %v1536 = vsel %vm1500, 1, 0
        %v1537 = vsel %vm1501, 1, 0
        %v1538 = vsel %vm1502, 1, 0
        %v1539 = vsel %vm1503, 1, 0
        %v1540 = vsel %vm1504, 1, 0
        %v1541 = vsel %vm1505, 1, 0
        %v1542 = vsel %vm1506, 1, 0
        %vm1543 = vcmp.eq.s32.totalorder %v1507, 1
        %vm1544 = vcmp.eq.s32.totalorder %v1508, 1
        %vm1545 = vcmp.eq.s32.totalorder %v1509, 1
        %vm1546 = vcmp.eq.s32.totalorder %v1510, 1
        %vm1547 = vcmp.eq.s32.totalorder %v1511, 1
        %vm1548 = vcmp.eq.s32.totalorder %v1512, 1
        %vm1549 = vcmp.eq.s32.totalorder %v1513, 1
        %vm1550 = vcmp.eq.s32.totalorder %v1514, 1
        %vm1551 = vcmp.eq.s32.totalorder %v1515, 1
        %vm1552 = vcmp.eq.s32.totalorder %v1516, 1
        %vm1553 = vcmp.eq.s32.totalorder %v1517, 1
        %vm1554 = vcmp.eq.s32.totalorder %v1518, 1
        %vm1555 = vcmp.eq.s32.totalorder %v1519, 1
        %vm1556 = vcmp.eq.s32.totalorder %v1520, 1
        %vm1557 = vcmp.eq.s32.totalorder %v1521, 1
        %vm1558 = vcmp.eq.s32.totalorder %v1522, 1
        %vm1559 = vcmp.eq.s32.totalorder %v1523, 1
        %vm1560 = vcmp.eq.s32.totalorder %v1524, 1
        %vm1561 = vcmp.eq.s32.totalorder %v1525, 1
        %vm1562 = vcmp.eq.s32.totalorder %v1526, 1
        %vm1563 = vcmp.eq.s32.totalorder %v1527, 1
        %vm1564 = vcmp.eq.s32.totalorder %v1528, 1
        %vm1565 = vcmp.eq.s32.totalorder %v1529, 1
        %vm1566 = vcmp.eq.s32.totalorder %v1530, 1
        %vm1567 = vcmp.eq.s32.totalorder %v1531, 1
        %vm1568 = vcmp.eq.s32.totalorder %v1532, 1
        %vm1569 = vcmp.eq.s32.totalorder %v1533, 1
        %vm1570 = vcmp.eq.s32.totalorder %v1534, 1
        %vm1571 = vcmp.eq.s32.totalorder %v1535, 1
        %vm1572 = vcmp.eq.s32.totalorder %v1536, 1
        %vm1573 = vcmp.eq.s32.totalorder %v1537, 1
        %vm1574 = vcmp.eq.s32.totalorder %v1538, 1
        %vm1575 = vcmp.eq.s32.totalorder %v1539, 1
        %vm1576 = vcmp.eq.s32.totalorder %v1540, 1
        %vm1577 = vcmp.eq.s32.totalorder %v1541, 1
        %vm1578 = vcmp.eq.s32.totalorder %v1542, 1
        %vm1579 = vmpackc.low %vm1543, %vm1543
        %vm1580 = vmpackc.low %vm1544, %vm1544
        %vm1581 = vmpackc.low %vm1545, %vm1545
        %vm1582 = vmpackc.low %vm1546, %vm1546
        %vm1583 = vmpackc.low %vm1547, %vm1547
        %vm1584 = vmpackc.low %vm1548, %vm1548
        %vm1585 = vmpackc.low %vm1549, %vm1549
        %vm1586 = vmpackc.low %vm1550, %vm1550
        %vm1587 = vmpackc.low %vm1551, %vm1551
        %vm1588 = vmpackc.low %vm1552, %vm1552
        %vm1589 = vmpackc.low %vm1553, %vm1553
        %vm1590 = vmpackc.low %vm1554, %vm1554
        %vm1591 = vmpackc.low %vm1555, %vm1555
        %vm1592 = vmpackc.low %vm1556, %vm1556
        %vm1593 = vmpackc.low %vm1557, %vm1557
        %vm1594 = vmpackc.low %vm1558, %vm1558
        %vm1595 = vmpackc.low %vm1559, %vm1559
        %vm1596 = vmpackc.low %vm1560, %vm1560
        %vm1597 = vmpackc.low %vm1561, %vm1561
        %vm1598 = vmpackc.low %vm1562, %vm1562
        %vm1599 = vmpackc.low %vm1563, %vm1563
        %vm1600 = vmpackc.low %vm1564, %vm1564
        %vm1601 = vmpackc.low %vm1565, %vm1565
        %vm1602 = vmpackc.low %vm1566, %vm1566
        %vm1603 = vmpackc.low %vm1567, %vm1567
        %vm1604 = vmpackc.low %vm1568, %vm1568
        %vm1605 = vmpackc.low %vm1569, %vm1569
        %vm1606 = vmpackc.low %vm1570, %vm1570
        %vm1607 = vmpackc.low %vm1571, %vm1571
        %vm1608 = vmpackc.low %vm1572, %vm1572
        %vm1609 = vmpackc.low %vm1573, %vm1573
        %vm1610 = vmpackc.low %vm1574, %vm1574
        %vm1611 = vmpackc.low %vm1575, %vm1575
        %vm1612 = vmpackc.low %vm1576, %vm1576
        %vm1613 = vmpackc.low %vm1577, %vm1577
        %vm1614 = vmpackc.low %vm1578, %vm1578
        %v1615 = vsel %vm1579, 65537, 0
        %v1616 = vsel %vm1580, 65537, 0
        %v1617 = vsel %vm1581, 65537, 0
        %v1618 = vsel %vm1582, 65537, 0
        %v1619 = vsel %vm1583, 65537, 0
        %v1620 = vsel %vm1584, 65537, 0
        %v1621 = vsel %vm1585, 65537, 0
        %v1622 = vsel %vm1586, 65537, 0
        %v1623 = vsel %vm1587, 65537, 0
        %v1624 = vsel %vm1588, 65537, 0
        %v1625 = vsel %vm1589, 65537, 0
        %v1626 = vsel %vm1590, 65537, 0
        %v1627 = vsel %vm1591, 65537, 0
        %v1628 = vsel %vm1592, 65537, 0
        %v1629 = vsel %vm1593, 65537, 0
        %v1630 = vsel %vm1594, 65537, 0
        %v1631 = vsel %vm1595, 65537, 0
        %v1632 = vsel %vm1596, 65537, 0
        %v1633 = vsel %vm1597, 65537, 0
        %v1634 = vsel %vm1598, 65537, 0
        %v1635 = vsel %vm1599, 65537, 0
        %v1636 = vsel %vm1600, 65537, 0
        %v1637 = vsel %vm1601, 65537, 0
        %v1638 = vsel %vm1602, 65537, 0
        %v1639 = vsel %vm1603, 65537, 0
        %v1640 = vsel %vm1604, 65537, 0
        %v1641 = vsel %vm1605, 65537, 0
        %v1642 = vsel %vm1606, 65537, 0
        %v1643 = vsel %vm1607, 65537, 0
        %v1644 = vsel %vm1608, 65537, 0
        %v1645 = vsel %vm1609, 65537, 0
        %v1646 = vsel %vm1610, 65537, 0
        %v1647 = vsel %vm1611, 65537, 0
        %v1648 = vsel %vm1612, 65537, 0
        %v1649 = vsel %vm1613, 65537, 0
        %v1650 = vsel %vm1614, 65537, 0
        %v1651 = vunpack.c.l.b16 %v1615
        %v1652 = vunpack.c.l.b16 %v1616
        %v1653 = vunpack.c.l.b16 %v1617
        %v1654 = vunpack.c.l.b16 %v1618
        %v1655 = vunpack.c.l.b16 %v1619
        %v1656 = vunpack.c.l.b16 %v1620
        %v1657 = vunpack.c.l.b16 %v1621
        %v1658 = vunpack.c.l.b16 %v1622
        %v1659 = vunpack.c.l.b16 %v1623
        %v1660 = vunpack.c.l.b16 %v1624
        %v1661 = vunpack.c.l.b16 %v1625
        %v1662 = vunpack.c.l.b16 %v1626
        %v1663 = vunpack.c.l.b16 %v1627
        %v1664 = vunpack.c.l.b16 %v1628
        %v1665 = vunpack.c.l.b16 %v1629
        %v1666 = vunpack.c.l.b16 %v1630
        %v1667 = vunpack.c.l.b16 %v1631
        %v1668 = vunpack.c.l.b16 %v1632
        %v1669 = vunpack.c.l.b16 %v1633
        %v1670 = vunpack.c.l.b16 %v1634
        %v1671 = vunpack.c.l.b16 %v1635
        %v1672 = vunpack.c.l.b16 %v1636
        %v1673 = vunpack.c.l.b16 %v1637
        %v1674 = vunpack.c.l.b16 %v1638
        %v1675 = vunpack.c.l.b16 %v1639
        %v1676 = vunpack.c.l.b16 %v1640
        %v1677 = vunpack.c.l.b16 %v1641
        %v1678 = vunpack.c.l.b16 %v1642
        %v1679 = vunpack.c.l.b16 %v1643
        %v1680 = vunpack.c.l.b16 %v1644
        %v1681 = vunpack.c.l.b16 %v1645
        %v1682 = vunpack.c.l.b16 %v1646
        %v1683 = vunpack.c.l.b16 %v1647
        %v1684 = vunpack.c.l.b16 %v1648
        %v1685 = vunpack.c.l.b16 %v1649
        %v1686 = vunpack.c.l.b16 %v1650
        %v1687 = vpack.c.b16 %v1652, %v1651
        %v1688 = vpack.c.b16 %v1654, %v1653
        %v1689 = vpack.c.b16 %v1656, %v1655
        %v1690 = vpack.c.b16 %v1658, %v1657
        %v1691 = vpack.c.b16 %v1660, %v1659
        %v1692 = vpack.c.b16 %v1662, %v1661
        %v1693 = vpack.c.b16 %v1664, %v1663
        %v1694 = vpack.c.b16 %v1666, %v1665
        %v1695 = vpack.c.b16 %v1668, %v1667
        %v1696 = vpack.c.b16 %v1670, %v1669
        %v1697 = vpack.c.b16 %v1672, %v1671
        %v1698 = vpack.c.b16 %v1674, %v1673
        %v1699 = vpack.c.b16 %v1676, %v1675
        %v1700 = vpack.c.b16 %v1678, %v1677
        %v1701 = vpack.c.b16 %v1680, %v1679
        %v1702 = vpack.c.b16 %v1682, %v1681
        %v1703 = vpack.c.b16 %v1684, %v1683
        %v1704 = vpack.c.b16 %v1686, %v1685
        %vm1705 = vcmp.ne.s16.totalorder %v1687, 0
        %vm1706 = vcmp.ne.s16.totalorder %v1688, 0
        %vm1707 = vcmp.ne.s16.totalorder %v1689, 0
        %vm1708 = vcmp.ne.s16.totalorder %v1690, 0
        %vm1709 = vcmp.ne.s16.totalorder %v1691, 0
        %vm1710 = vcmp.ne.s16.totalorder %v1692, 0
        %vm1711 = vcmp.ne.s16.totalorder %v1693, 0
        %vm1712 = vcmp.ne.s16.totalorder %v1694, 0
        %vm1713 = vcmp.ne.s16.totalorder %v1695, 0
        %vm1714 = vcmp.ne.s16.totalorder %v1696, 0
        %vm1715 = vcmp.ne.s16.totalorder %v1697, 0
        %vm1716 = vcmp.ne.s16.totalorder %v1698, 0
        %vm1717 = vcmp.ne.s16.totalorder %v1699, 0
        %vm1718 = vcmp.ne.s16.totalorder %v1700, 0
        %vm1719 = vcmp.ne.s16.totalorder %v1701, 0
        %vm1720 = vcmp.ne.s16.totalorder %v1702, 0
        %vm1721 = vcmp.ne.s16.totalorder %v1703, 0
        %vm1722 = vcmp.ne.s16.totalorder %v1704, 0
        %v1723 = vsel %vm1705, %v1452, 0
        %v1724 = vsel %vm1706, %v1453, 0
        %v1725 = vsel %vm1707, %v1454, 0
        %v1726 = vsel %vm1708, %v1455, 0
        %v1727 = vsel %vm1709, %v1456, 0
        %v1728 = vsel %vm1710, %v1457, 0
        %v1729 = vsel %vm1711, %v1458, 0
        %v1730 = vsel %vm1712, %v1459, 0
        %v1731 = vsel %vm1713, %v1460, 0
        %v1732 = vsel %vm1714, %v1461, 0
        %v1733 = vsel %vm1715, %v1462, 0
        %v1734 = vsel %vm1716, %v1463, 0
        %v1735 = vsel %vm1717, %v1464, 0
        %v1736 = vsel %vm1718, %v1465, 0
        %v1737 = vsel %vm1719, %v1466, 0
        %v1738 = vsel %vm1720, %v1467, 0
        %v1739 = vsel %vm1721, %v1468, 0
        %v1740 = vsel %vm1722, %v1469, 0
        %vm1741 = vcmp.ne.s32.totalorder %v1415, 0
        %vm1742 = vcmp.ne.s32.totalorder %v1416, 0
        %vm1743 = vcmp.ne.s32.totalorder %v1417, 0
        %vm1744 = vcmp.ne.s32.totalorder %v1418, 0
        %vm1745 = vcmp.ne.s32.totalorder %v1419, 0
        %vm1746 = vcmp.ne.s32.totalorder %v1420, 0
        %vm1747 = vcmp.ne.s32.totalorder %v1421, 0
        %vm1748 = vcmp.ne.s32.totalorder %v1422, 0
        %vm1749 = vcmp.ne.s32.totalorder %v1423, 0
        %vm1750 = vcmp.ne.s32.totalorder %v1424, 0
        %vm1751 = vcmp.ne.s32.totalorder %v1425, 0
        %vm1752 = vcmp.ne.s32.totalorder %v1426, 0
        %vm1753 = vcmp.ne.s32.totalorder %v1427, 0
        %vm1754 = vcmp.ne.s32.totalorder %v1428, 0
        %vm1755 = vcmp.ne.s32.totalorder %v1429, 0
        %vm1756 = vcmp.ne.s32.totalorder %v1430, 0
        %vm1757 = vcmp.ne.s32.totalorder %v1431, 0
        %vm1758 = vcmp.ne.s32.totalorder %v1432, 0
        %vm1759 = vcmp.ne.s32.totalorder %v1433, 0
        %vm1760 = vcmp.ne.s32.totalorder %v1434, 0
        %vm1761 = vcmp.ne.s32.totalorder %v1435, 0
        %vm1762 = vcmp.ne.s32.totalorder %v1436, 0
        %vm1763 = vcmp.ne.s32.totalorder %v1437, 0
        %vm1764 = vcmp.ne.s32.totalorder %v1438, 0
        %vm1765 = vcmp.ne.s32.totalorder %v1439, 0
        %vm1766 = vcmp.ne.s32.totalorder %v1440, 0
        %vm1767 = vcmp.ne.s32.totalorder %v1441, 0
        %vm1768 = vcmp.ne.s32.totalorder %v1442, 0
        %vm1769 = vcmp.ne.s32.totalorder %v1443, 0
        %vm1770 = vcmp.ne.s32.totalorder %v1444, 0
        %vm1771 = vcmp.ne.s32.totalorder %v1445, 0
        %vm1772 = vcmp.ne.s32.totalorder %v1446, 0
        %vm1773 = vcmp.ne.s32.totalorder %v1447, 0
        %vm1774 = vcmp.ne.s32.totalorder %v1448, 0
        %vm1775 = vcmp.ne.s32.totalorder %v1449, 0
        %vm1776 = vcmp.ne.s32.totalorder %v1450, 0
        %vm1777 = vcmp.ne.s32.totalorder %v1451, 0
        %v1778 = vsel %vm1741, 1, 0
        %v1779 = vsel %vm1742, 1, 0
        %v1780 = vsel %vm1743, 1, 0
        %v1781 = vsel %vm1744, 1, 0
        %v1782 = vsel %vm1745, 1, 0
        %v1783 = vsel %vm1746, 1, 0
        %v1784 = vsel %vm1747, 1, 0
        %v1785 = vsel %vm1748, 1, 0
        %v1786 = vsel %vm1749, 1, 0
        %v1787 = vsel %vm1750, 1, 0
        %v1788 = vsel %vm1751, 1, 0
        %v1789 = vsel %vm1752, 1, 0
        %v1790 = vsel %vm1753, 1, 0
        %v1791 = vsel %vm1754, 1, 0
        %v1792 = vsel %vm1755, 1, 0
        %v1793 = vsel %vm1756, 1, 0
        %v1794 = vsel %vm1757, 1, 0
        %v1795 = vsel %vm1758, 1, 0
        %v1796 = vsel %vm1759, 1, 0
        %v1797 = vsel %vm1760, 1, 0
        %v1798 = vsel %vm1761, 1, 0
        %v1799 = vsel %vm1762, 1, 0
        %v1800 = vsel %vm1763, 1, 0
        %v1801 = vsel %vm1764, 1, 0
        %v1802 = vsel %vm1765, 1, 0
        %v1803 = vsel %vm1766, 1, 0
        %v1804 = vsel %vm1767, 1, 0
        %v1805 = vsel %vm1768, 1, 0
        %v1806 = vsel %vm1769, 1, 0
        %v1807 = vsel %vm1770, 1, 0
        %v1808 = vsel %vm1771, 1, 0
        %v1809 = vsel %vm1772, 1, 0
        %v1810 = vsel %vm1773, 1, 0
        %v1811 = vsel %vm1774, 1, 0
        %v1812 = vsel %vm1775, 1, 0
        %v1813 = vsel %vm1776, 1, 0
        %v1814 = vsel %vm1777, 1, 0
        %vm1815 = vcmp.eq.s32.totalorder %v1778, 1
        %vm1816 = vcmp.eq.s32.totalorder %v1779, 1
        %vm1817 = vcmp.eq.s32.totalorder %v1780, 1
        %vm1818 = vcmp.eq.s32.totalorder %v1781, 1
        %vm1819 = vcmp.eq.s32.totalorder %v1782, 1
        %vm1820 = vcmp.eq.s32.totalorder %v1783, 1
        %vm1821 = vcmp.eq.s32.totalorder %v1784, 1
        %vm1822 = vcmp.eq.s32.totalorder %v1785, 1
        %vm1823 = vcmp.eq.s32.totalorder %v1786, 1
        %vm1824 = vcmp.eq.s32.totalorder %v1787, 1
        %vm1825 = vcmp.eq.s32.totalorder %v1788, 1
        %vm1826 = vcmp.eq.s32.totalorder %v1789, 1
        %vm1827 = vcmp.eq.s32.totalorder %v1790, 1
        %vm1828 = vcmp.eq.s32.totalorder %v1791, 1
        %vm1829 = vcmp.eq.s32.totalorder %v1792, 1
        %vm1830 = vcmp.eq.s32.totalorder %v1793, 1
        %vm1831 = vcmp.eq.s32.totalorder %v1794, 1
        %vm1832 = vcmp.eq.s32.totalorder %v1795, 1
        %vm1833 = vcmp.eq.s32.totalorder %v1796, 1
        %vm1834 = vcmp.eq.s32.totalorder %v1797, 1
        %vm1835 = vcmp.eq.s32.totalorder %v1798, 1
        %vm1836 = vcmp.eq.s32.totalorder %v1799, 1
        %vm1837 = vcmp.eq.s32.totalorder %v1800, 1
        %vm1838 = vcmp.eq.s32.totalorder %v1801, 1
        %vm1839 = vcmp.eq.s32.totalorder %v1802, 1
        %vm1840 = vcmp.eq.s32.totalorder %v1803, 1
        %vm1841 = vcmp.eq.s32.totalorder %v1804, 1
        %vm1842 = vcmp.eq.s32.totalorder %v1805, 1
        %vm1843 = vcmp.eq.s32.totalorder %v1806, 1
        %vm1844 = vcmp.eq.s32.totalorder %v1807, 1
        %vm1845 = vcmp.eq.s32.totalorder %v1808, 1
        %vm1846 = vcmp.eq.s32.totalorder %v1809, 1
        %vm1847 = vcmp.eq.s32.totalorder %v1810, 1
        %vm1848 = vcmp.eq.s32.totalorder %v1811, 1
        %vm1849 = vcmp.eq.s32.totalorder %v1812, 1
        %vm1850 = vcmp.eq.s32.totalorder %v1813, 1
        %vm1851 = vcmp.eq.s32.totalorder %v1814, 1
        %vm1852 = vmpackc.low %vm1815, %vm1815
        %vm1853 = vmpackc.low %vm1816, %vm1816
        %vm1854 = vmpackc.low %vm1817, %vm1817
        %vm1855 = vmpackc.low %vm1818, %vm1818
        %vm1856 = vmpackc.low %vm1819, %vm1819
        %vm1857 = vmpackc.low %vm1820, %vm1820
        %vm1858 = vmpackc.low %vm1821, %vm1821
        %vm1859 = vmpackc.low %vm1822, %vm1822
        %vm1860 = vmpackc.low %vm1823, %vm1823
        %vm1861 = vmpackc.low %vm1824, %vm1824
        %vm1862 = vmpackc.low %vm1825, %vm1825
        %vm1863 = vmpackc.low %vm1826, %vm1826
        %vm1864 = vmpackc.low %vm1827, %vm1827
        %vm1865 = vmpackc.low %vm1828, %vm1828
        %vm1866 = vmpackc.low %vm1829, %vm1829
        %vm1867 = vmpackc.low %vm1830, %vm1830
        %vm1868 = vmpackc.low %vm1831, %vm1831
        %vm1869 = vmpackc.low %vm1832, %vm1832
        %vm1870 = vmpackc.low %vm1833, %vm1833
        %vm1871 = vmpackc.low %vm1834, %vm1834
        %vm1872 = vmpackc.low %vm1835, %vm1835
        %vm1873 = vmpackc.low %vm1836, %vm1836
        %vm1874 = vmpackc.low %vm1837, %vm1837
        %vm1875 = vmpackc.low %vm1838, %vm1838
        %vm1876 = vmpackc.low %vm1839, %vm1839
        %vm1877 = vmpackc.low %vm1840, %vm1840
        %vm1878 = vmpackc.low %vm1841, %vm1841
        %vm1879 = vmpackc.low %vm1842, %vm1842
        %vm1880 = vmpackc.low %vm1843, %vm1843
        %vm1881 = vmpackc.low %vm1844, %vm1844
        %vm1882 = vmpackc.low %vm1845, %vm1845
        %vm1883 = vmpackc.low %vm1846, %vm1846
        %vm1884 = vmpackc.low %vm1847, %vm1847
        %vm1885 = vmpackc.low %vm1848, %vm1848
        %vm1886 = vmpackc.low %vm1849, %vm1849
        %vm1887 = vmpackc.low %vm1850, %vm1850
        %vm1888 = vmpackc.low %vm1851, %vm1851
        %v1889 = vsel %vm1852, 65537, 0
        %v1890 = vsel %vm1853, 65537, 0
        %v1891 = vsel %vm1854, 65537, 0
        %v1892 = vsel %vm1855, 65537, 0
        %v1893 = vsel %vm1856, 65537, 0
        %v1894 = vsel %vm1857, 65537, 0
        %v1895 = vsel %vm1858, 65537, 0
        %v1896 = vsel %vm1859, 65537, 0
        %v1897 = vsel %vm1860, 65537, 0
        %v1898 = vsel %vm1861, 65537, 0
        %v1899 = vsel %vm1862, 65537, 0
        %v1900 = vsel %vm1863, 65537, 0
        %v1901 = vsel %vm1864, 65537, 0
        %v1902 = vsel %vm1865, 65537, 0
        %v1903 = vsel %vm1866, 65537, 0
        %v1904 = vsel %vm1867, 65537, 0
        %v1905 = vsel %vm1868, 65537, 0
        %v1906 = vsel %vm1869, 65537, 0
        %v1907 = vsel %vm1870, 65537, 0
        %v1908 = vsel %vm1871, 65537, 0
        %v1909 = vsel %vm1872, 65537, 0
        %v1910 = vsel %vm1873, 65537, 0
        %v1911 = vsel %vm1874, 65537, 0
        %v1912 = vsel %vm1875, 65537, 0
        %v1913 = vsel %vm1876, 65537, 0
        %v1914 = vsel %vm1877, 65537, 0
        %v1915 = vsel %vm1878, 65537, 0
        %v1916 = vsel %vm1879, 65537, 0
        %v1917 = vsel %vm1880, 65537, 0
        %v1918 = vsel %vm1881, 65537, 0
        %v1919 = vsel %vm1882, 65537, 0
        %v1920 = vsel %vm1883, 65537, 0
        %v1921 = vsel %vm1884, 65537, 0
        %v1922 = vsel %vm1885, 65537, 0
        %v1923 = vsel %vm1886, 65537, 0
        %v1924 = vsel %vm1887, 65537, 0
        %v1925 = vsel %vm1888, 65537, 0
        %v1926 = vunpack.c.l.b16 %v1889
        %v1927 = vunpack.c.l.b16 %v1890
        %v1928 = vunpack.c.l.b16 %v1891
        %v1929 = vunpack.c.l.b16 %v1892
        %v1930 = vunpack.c.l.b16 %v1893
        %v1931 = vunpack.c.l.b16 %v1894
        %v1932 = vunpack.c.l.b16 %v1895
        %v1933 = vunpack.c.l.b16 %v1896
        %v1934 = vunpack.c.l.b16 %v1897
        %v1935 = vunpack.c.l.b16 %v1898
        %v1936 = vunpack.c.l.b16 %v1899
        %v1937 = vunpack.c.l.b16 %v1900
        %v1938 = vunpack.c.l.b16 %v1901
        %v1939 = vunpack.c.l.b16 %v1902
        %v1940 = vunpack.c.l.b16 %v1903
        %v1941 = vunpack.c.l.b16 %v1904
        %v1942 = vunpack.c.l.b16 %v1905
        %v1943 = vunpack.c.l.b16 %v1906
        %v1944 = vunpack.c.l.b16 %v1907
        %v1945 = vunpack.c.l.b16 %v1908
        %v1946 = vunpack.c.l.b16 %v1909
        %v1947 = vunpack.c.l.b16 %v1910
        %v1948 = vunpack.c.l.b16 %v1911
        %v1949 = vunpack.c.l.b16 %v1912
        %v1950 = vunpack.c.l.b16 %v1913
        %v1951 = vunpack.c.l.b16 %v1914
        %v1952 = vunpack.c.l.b16 %v1915
        %v1953 = vunpack.c.l.b16 %v1916
        %v1954 = vunpack.c.l.b16 %v1917
        %v1955 = vunpack.c.l.b16 %v1918
        %v1956 = vunpack.c.l.b16 %v1919
        %v1957 = vunpack.c.l.b16 %v1920
        %v1958 = vunpack.c.l.b16 %v1921
        %v1959 = vunpack.c.l.b16 %v1922
        %v1960 = vunpack.c.l.b16 %v1923
        %v1961 = vunpack.c.l.b16 %v1924
        %v1962 = vunpack.c.l.b16 %v1925
        %v1963 = vpack.c.b16 %v1927, %v1926
        %v1964 = vpack.c.b16 %v1929, %v1928
        %v1965 = vpack.c.b16 %v1931, %v1930
        %v1966 = vpack.c.b16 %v1933, %v1932
        %v1967 = vpack.c.b16 %v1935, %v1934
        %v1968 = vpack.c.b16 %v1937, %v1936
        %v1969 = vpack.c.b16 %v1939, %v1938
        %v1970 = vpack.c.b16 %v1941, %v1940
        %v1971 = vpack.c.b16 %v1943, %v1942
        %v1972 = vpack.c.b16 %v1945, %v1944
        %v1973 = vpack.c.b16 %v1947, %v1946
        %v1974 = vpack.c.b16 %v1949, %v1948
        %v1975 = vpack.c.b16 %v1951, %v1950
        %v1976 = vpack.c.b16 %v1953, %v1952
        %v1977 = vpack.c.b16 %v1955, %v1954
        %v1978 = vpack.c.b16 %v1957, %v1956
        %v1979 = vpack.c.b16 %v1959, %v1958
        %v1980 = vpack.c.b16 %v1961, %v1960
        %v1981 = vpack.c.b16 %v1962, %v1962
        %vm1982 = vcmp.ne.s16.totalorder %v1963, 0
        %vm1983 = vcmp.ne.s16.totalorder %v1964, 0
        %vm1984 = vcmp.ne.s16.totalorder %v1965, 0
        %vm1985 = vcmp.ne.s16.totalorder %v1966, 0
        %vm1986 = vcmp.ne.s16.totalorder %v1967, 0
        %vm1987 = vcmp.ne.s16.totalorder %v1968, 0
        %vm1988 = vcmp.ne.s16.totalorder %v1969, 0
        %vm1989 = vcmp.ne.s16.totalorder %v1970, 0
        %vm1990 = vcmp.ne.s16.totalorder %v1971, 0
        %vm1991 = vcmp.ne.s16.totalorder %v1972, 0
        %vm1992 = vcmp.ne.s16.totalorder %v1973, 0
        %vm1993 = vcmp.ne.s16.totalorder %v1974, 0
        %vm1994 = vcmp.ne.s16.totalorder %v1975, 0
        %vm1995 = vcmp.ne.s16.totalorder %v1976, 0
        %vm1996 = vcmp.ne.s16.totalorder %v1977, 0
        %vm1997 = vcmp.ne.s16.totalorder %v1978, 0
        %vm1998 = vcmp.ne.s16.totalorder %v1979, 0
        %vm1999 = vcmp.ne.s16.totalorder %v1980, 0
        %vm2000 = vcmp.ne.s16.totalorder %v1981, 0
        %v2001 = vsel %vm1982, %v1452, 0
        %v2002 = vsel %vm1983, %v1453, 0
        %v2003 = vsel %vm1984, %v1454, 0
        %v2004 = vsel %vm1985, %v1455, 0
        %v2005 = vsel %vm1986, %v1456, 0
        %v2006 = vsel %vm1987, %v1457, 0
        %v2007 = vsel %vm1988, %v1458, 0
        %v2008 = vsel %vm1989, %v1459, 0
        %v2009 = vsel %vm1990, %v1460, 0
        %v2010 = vsel %vm1991, %v1461, 0
        %v2011 = vsel %vm1992, %v1462, 0
        %v2012 = vsel %vm1993, %v1463, 0
        %v2013 = vsel %vm1994, %v1464, 0
        %v2014 = vsel %vm1995, %v1465, 0
        %v2015 = vsel %vm1996, %v1466, 0
        %v2016 = vsel %vm1997, %v1467, 0
        %v2017 = vsel %vm1998, %v1468, 0
        %v2018 = vsel %vm1999, %v1469, 0
        %v2019 = vsel %vm2000, %v1470, 0
        %vm2020 = vsmask.f32 7424
        %v2022 = vshrl.u32 %v1452, 16
        %v2024 = vshll.u32 %v1452, 16
        %v2026 = vrot.slane %v2024, 1
        %v2027 = vor.u32 %v2022, %v2026
        %v2029 = vshll.u32 %v1453, 16
        %v2031 = vrot.slane %v2029, 1
        %v2032 = vsel %vm2020, %v2027, %v2031
        %v2033 = vshrl.u32 %v1453, 16
        %v2035 = vor.u32 %v2033, %v2031
        %v2037 = vshll.u32 %v1454, 16
        %v2039 = vrot.slane %v2037, 1
        %v2040 = vsel %vm2020, %v2035, %v2039
        %v2041 = vshrl.u32 %v1454, 16
        %v2043 = vor.u32 %v2041, %v2039
        %v2045 = vshll.u32 %v1455, 16
        %v2047 = vrot.slane %v2045, 1
        %v2048 = vsel %vm2020, %v2043, %v2047
        %v2049 = vshrl.u32 %v1455, 16
        %v2051 = vor.u32 %v2049, %v2047
        %v2053 = vshll.u32 %v1456, 16
        %v2055 = vrot.slane %v2053, 1
        %v2056 = vsel %vm2020, %v2051, %v2055
        %v2057 = vshrl.u32 %v1456, 16
        %v2059 = vor.u32 %v2057, %v2055
        %v2061 = vshll.u32 %v1457, 16
        %v2063 = vrot.slane %v2061, 1
        %v2064 = vsel %vm2020, %v2059, %v2063
        %v2065 = vshrl.u32 %v1457, 16
        %v2067 = vor.u32 %v2065, %v2063
        %v2069 = vshll.u32 %v1458, 16
        %v2071 = vrot.slane %v2069, 1
        %v2072 = vsel %vm2020, %v2067, %v2071
        %v2073 = vshrl.u32 %v1458, 16
        %v2075 = vor.u32 %v2073, %v2071
        %v2077 = vshll.u32 %v1459, 16
        %v2079 = vrot.slane %v2077, 1
        %v2080 = vsel %vm2020, %v2075, %v2079
        %v2081 = vshrl.u32 %v1459, 16
        %v2083 = vor.u32 %v2081, %v2079
        %v2085 = vshll.u32 %v1460, 16
        %v2087 = vrot.slane %v2085, 1
        %v2088 = vsel %vm2020, %v2083, %v2087
        %v2089 = vshrl.u32 %v1460, 16
        %v2091 = vor.u32 %v2089, %v2087
        %v2093 = vshll.u32 %v1461, 16
        %v2095 = vrot.slane %v2093, 1
        %v2096 = vsel %vm2020, %v2091, %v2095
        %v2097 = vshrl.u32 %v1461, 16
        %v2099 = vor.u32 %v2097, %v2095
        %v2101 = vshll.u32 %v1462, 16
        %v2103 = vrot.slane %v2101, 1
        %v2104 = vsel %vm2020, %v2099, %v2103
        %v2105 = vshrl.u32 %v1462, 16
        %v2107 = vor.u32 %v2105, %v2103
        %v2109 = vshll.u32 %v1463, 16
        %v2111 = vrot.slane %v2109, 1
        %v2112 = vsel %vm2020, %v2107, %v2111
        %v2113 = vshrl.u32 %v1463, 16
        %v2115 = vor.u32 %v2113, %v2111
        %v2117 = vshll.u32 %v1464, 16
        %v2119 = vrot.slane %v2117, 1
        %v2120 = vsel %vm2020, %v2115, %v2119
        %v2121 = vshrl.u32 %v1464, 16
        %v2123 = vor.u32 %v2121, %v2119
        %v2125 = vshll.u32 %v1465, 16
        %v2127 = vrot.slane %v2125, 1
        %v2128 = vsel %vm2020, %v2123, %v2127
        %v2129 = vshrl.u32 %v1465, 16
        %v2131 = vor.u32 %v2129, %v2127
        %v2133 = vshll.u32 %v1466, 16
        %v2135 = vrot.slane %v2133, 1
        %v2136 = vsel %vm2020, %v2131, %v2135
        %v2137 = vshrl.u32 %v1466, 16
        %v2139 = vor.u32 %v2137, %v2135
        %v2141 = vshll.u32 %v1467, 16
        %v2143 = vrot.slane %v2141, 1
        %v2144 = vsel %vm2020, %v2139, %v2143
        %v2145 = vshrl.u32 %v1467, 16
        %v2147 = vor.u32 %v2145, %v2143
        %v2149 = vshll.u32 %v1468, 16
        %v2151 = vrot.slane %v2149, 1
        %v2152 = vsel %vm2020, %v2147, %v2151
        %vm2186 = vcmask 1046528
        %v2187 = vrot.slane %v2001, 1
        %v2188 = vrot.slane %v2002, 1
        %v2189 = vsel %vm2186, %v2187, %v2188
        %v2190 = vrot.slane %v2003, 1
        %v2191 = vsel %vm2186, %v2188, %v2190
        %v2192 = vrot.slane %v2004, 1
        %v2193 = vsel %vm2186, %v2190, %v2192
        %v2194 = vrot.slane %v2005, 1
        %v2195 = vsel %vm2186, %v2192, %v2194
        %v2196 = vrot.slane %v2006, 1
        %v2197 = vsel %vm2186, %v2194, %v2196
        %v2198 = vrot.slane %v2007, 1
        %v2199 = vsel %vm2186, %v2196, %v2198
        %v2200 = vrot.slane %v2008, 1
        %v2201 = vsel %vm2186, %v2198, %v2200
        %v2202 = vrot.slane %v2009, 1
        %v2203 = vsel %vm2186, %v2200, %v2202
        %v2204 = vrot.slane %v2010, 1
        %v2205 = vsel %vm2186, %v2202, %v2204
        %v2206 = vrot.slane %v2011, 1
        %v2207 = vsel %vm2186, %v2204, %v2206
        %v2208 = vrot.slane %v2012, 1
        %v2209 = vsel %vm2186, %v2206, %v2208
        %v2210 = vrot.slane %v2013, 1
        %v2211 = vsel %vm2186, %v2208, %v2210
        %v2212 = vrot.slane %v2014, 1
        %v2213 = vsel %vm2186, %v2210, %v2212
        %v2214 = vrot.slane %v2015, 1
        %v2215 = vsel %vm2186, %v2212, %v2214
        %v2216 = vrot.slane %v2016, 1
        %v2217 = vsel %vm2186, %v2214, %v2216
        %v2218 = vrot.slane %v2017, 1
        %v2219 = vsel %vm2186, %v2216, %v2218
        %v2236 = vshrl.u32 %v1468, 16
        %v2238 = vor.u32 %v2236, %v2151
        %v2240 = vshll.u32 %v1469, 16
        %v2242 = vrot.slane %v2240, 1
        %v2243 = vsel %vm2020, %v2238, %v2242
        %v2246 = vrot.slane %v2018, 1
        %v2247 = vsel %vm2186, %v2218, %v2246
        %v2249 = vshrl.u32 %v1469, 16
        %v2251 = vor.u32 %v2249, %v2242
        %v2253 = vshll.u32 %v1470, 16
        %v2255 = vrot.slane %v2253, 1
        %v2256 = vsel %vm2020, %v2251, %v2255
        %v2259 = vrot.slane %v2019, 1
        %v2260 = vsel %vm2186, %v2246, %v2259
        %v2262 = vld [vmem:[#allocation7] sm:$0xf]
        %v2263 = vld [vmem:[#allocation7 + $0x4] sm:$0xf]
        %v2264 = vld [vmem:[#allocation7 + $0x8] sm:$0xf]
        %v2265 = vld [vmem:[#allocation7 + $0xc] sm:$0xf]
        %v2266 = vld [vmem:[#allocation7 + $0x10] sm:$0xf]
        %v2267 = vld [vmem:[#allocation7 + $0x14] sm:$0xf]
        %v2268 = vld [vmem:[#allocation7 + $0x18] sm:$0xf]
        %v2269 = vld [vmem:[#allocation7 + $0x1c] sm:$0xf]
        %v2270 = vld [vmem:[#allocation7 + $0x20] sm:$0xf]
        %v2271 = vld [vmem:[#allocation7 + $0x24] sm:$0xf]
        %v2272 = vld [vmem:[#allocation7 + $0x28] sm:$0xf]
        %v2273 = vld [vmem:[#allocation7 + $0x2c] sm:$0xf]
        %v2274 = vld [vmem:[#allocation7 + $0x30] sm:$0xf]
        %v2275 = vld [vmem:[#allocation7 + $0x34] sm:$0xf]
        %v2276 = vld [vmem:[#allocation7 + $0x38] sm:$0xf]
        %v2277 = vld [vmem:[#allocation7 + $0x3c] sm:$0xf]
        %v2278 = vld [vmem:[#allocation7 + $0x40] sm:$0xf]
        %v2279 = vld [vmem:[#allocation7 + $0x44] sm:$0xf]
        %v2280 = vld [vmem:[#allocation7 + $0x48] sm:$0xf]
        %v2281 = vld [vmem:[#allocation7 + $0x4c] sm:$0xf]
        %v2282 = vld [vmem:[#allocation7 + $0x50] sm:$0xf]
        %v2283 = vld [vmem:[#allocation7 + $0x54] sm:$0xf]
        %v2284 = vld [vmem:[#allocation7 + $0x58] sm:$0xf]
        %v2285 = vld [vmem:[#allocation7 + $0x5c] sm:$0xf]
        %v2286 = vld [vmem:[#allocation7 + $0x60] sm:$0xf]
        %v2287 = vld [vmem:[#allocation7 + $0x64] sm:$0xf]
        %v2288 = vld [vmem:[#allocation7 + $0x68] sm:$0xf]
        %v2289 = vld [vmem:[#allocation7 + $0x6c] sm:$0xf]
        %v2290 = vld [vmem:[#allocation7 + $0x70] sm:$0xf]
        %v2291 = vld [vmem:[#allocation7 + $0x74] sm:$0xf]
        %v2292 = vld [vmem:[#allocation7 + $0x78] sm:$0xf]
        %v2293 = vld [vmem:[#allocation7 + $0x7c] sm:$0xf]
        %v2294 = vld [vmem:[#allocation7 + $0x80] sm:$0xf]
        %v2295 = vld [vmem:[#allocation7 + $0x84] sm:$0xf]
        %v2296 = vld [vmem:[#allocation7 + $0x88] sm:$0xf]
        %v2297 = vld [vmem:[#allocation7 + $0x8c] sm:$0xf]
        %v2298 = vld [vmem:[#allocation7 + $0x90] sm:$0xf]
        %v2299 = vld [vmem:[#allocation7 + $0x94] sm:$0xf]
        %v2300 = vld [vmem:[#allocation7 + $0x98] sm:$0xf]
        %v2301 = vld [vmem:[#allocation7 + $0x9c] sm:$0xf]
        %v2302 = vld [vmem:[#allocation7 + $0xa0] sm:$0xf]
        %v2303 = vld [vmem:[#allocation7 + $0xa4] sm:$0xf]
        %v2304 = vld [vmem:[#allocation7 + $0xa8] sm:$0xf]
        %v2305 = vld [vmem:[#allocation7 + $0xac] sm:$0xf]
        %v2306 = vld [vmem:[#allocation7 + $0xb0] sm:$0xf]
        %v2307 = vld [vmem:[#allocation7 + $0xb4] sm:$0xf]
        %v2308 = vld [vmem:[#allocation7 + $0xb8] sm:$0xf]
        %v2309 = vld [vmem:[#allocation7 + $0xbc] sm:$0xf]
        %v2310 = vld [vmem:[#allocation7 + $0xc0] sm:$0xf]
        %v2311 = vld [vmem:[#allocation7 + $0xc4] sm:$0xf]
        %v2312 = vld [vmem:[#allocation7 + $0xc8] sm:$0xf]
        %v2313 = vld [vmem:[#allocation7 + $0xcc] sm:$0xf]
        %v2314 = vld [vmem:[#allocation7 + $0xd0] sm:$0xf]
        %v2315 = vld [vmem:[#allocation7 + $0xd4] sm:$0xf]
        %v2316 = vld [vmem:[#allocation7 + $0xd8] sm:$0xf]
        %v2317 = vld [vmem:[#allocation7 + $0xdc] sm:$0xf]
        %v2318 = vld [vmem:[#allocation7 + $0xe0] sm:$0xf]
        %v2319 = vld [vmem:[#allocation7 + $0xe4] sm:$0xf]
        %v2320 = vld [vmem:[#allocation7 + $0xe8] sm:$0xf]
        %v2321 = vld [vmem:[#allocation7 + $0xec] sm:$0xf]
        %v2322 = vld [vmem:[#allocation7 + $0xf0] sm:$0xf]
        %v2323 = vld [vmem:[#allocation7 + $0xf4] sm:$0xf]
        %v2324 = vld [vmem:[#allocation7 + $0xf8] sm:$0xf]
        %v2325 = vld [vmem:[#allocation7 + $0xfc] sm:$0xf]
        %v2326 = vld [vmem:[#allocation7 + $0x100] sm:$0xf]
        %v2327 = vld [vmem:[#allocation7 + $0x104] sm:$0xf]
        %v2328 = vld [vmem:[#allocation7 + $0x108] sm:$0xf]
        %v2329 = vld [vmem:[#allocation7 + $0x10c] sm:$0xf]
        %v2330 = vld [vmem:[#allocation7 + $0x110] sm:$0xf]
        %v2331 = vld [vmem:[#allocation7 + $0x114] sm:$0xf]
        %v2332 = vld [vmem:[#allocation7 + $0x118] sm:$0xf]
        %v2333 = vld [vmem:[#allocation7 + $0x11c] sm:$0xf]
        %v2334 = vld [vmem:[#allocation7 + $0x120] sm:$0xf]
        %v2335 = vld [vmem:[#allocation7 + $0x124] sm:$0xf]
        %v2336 = vld [vmem:[#allocation7 + $0x128] sm:$0xf]
        %v2337 = vld [vmem:[#allocation7 + $0x12c] sm:$0xf]
        %v2338 = vld [vmem:[#allocation7 + $0x130] sm:$0xf]
        %v2339 = vld [vmem:[#allocation7 + $0x134] sm:$0xf]
        %v2340 = vld [vmem:[#allocation7 + $0x138] sm:$0xf]
        %v2341 = vld [vmem:[#allocation7 + $0x13c] sm:$0xf]
        %v2342 = vld [vmem:[#allocation7 + $0x140] sm:$0xf]
        %v2343 = vld [vmem:[#allocation7 + $0x144] sm:$0xf]
        %v2344 = vld [vmem:[#allocation7 + $0x148] sm:$0xf]
        %v2345 = vld [vmem:[#allocation7 + $0x14c] sm:$0xf]
        %v2346 = vld [vmem:[#allocation7 + $0x150] sm:$0xf]
        %v2347 = vld [vmem:[#allocation7 + $0x154] sm:$0xf]
        %v2348 = vld [vmem:[#allocation7 + $0x158] sm:$0xf]
        %v2349 = vld [vmem:[#allocation7 + $0x15c] sm:$0xf]
        %v2350 = vld [vmem:[#allocation7 + $0x160] sm:$0xf]
        %v2351 = vld [vmem:[#allocation7 + $0x164] sm:$0xf]
        %v2352 = vld [vmem:[#allocation7 + $0x168] sm:$0xf]
        %v2353 = vld [vmem:[#allocation7 + $0x16c] sm:$0xf]
        %v2354 = vld [vmem:[#allocation7 + $0x170] sm:$0xf]
        %v2355 = vld [vmem:[#allocation7 + $0x174] sm:$0xf]
        %v2356 = vld [vmem:[#allocation7 + $0x178] sm:$0xf]
        %v2357 = vld [vmem:[#allocation7 + $0x17c] sm:$0xf]
        %v2358 = vld [vmem:[#allocation7 + $0x180] sm:$0xf]
        %v2359 = vld [vmem:[#allocation7 + $0x184] sm:$0xf]
        %v2360 = vld [vmem:[#allocation7 + $0x188] sm:$0xf]
        %v2361 = vld [vmem:[#allocation7 + $0x18c] sm:$0xf]
        %v2362 = vld [vmem:[#allocation7 + $0x190] sm:$0xf]
        %v2363 = vld [vmem:[#allocation7 + $0x194] sm:$0xf]
        %v2364 = vld [vmem:[#allocation7 + $0x198] sm:$0xf]
        %v2365 = vld [vmem:[#allocation7 + $0x19c] sm:$0xf]
        %v2366 = vld [vmem:[#allocation7 + $0x1a0] sm:$0xf]
        %v2367 = vld [vmem:[#allocation7 + $0x1a4] sm:$0xf]
        %v2368 = vld [vmem:[#allocation7 + $0x1a8] sm:$0xf]
        %v2369 = vld [vmem:[#allocation7 + $0x1ac] sm:$0xf]
        %v2370 = vld [vmem:[#allocation7 + $0x1b0] sm:$0xf]
        %v2371 = vld [vmem:[#allocation7 + $0x1b4] sm:$0xf]
        %v2372 = vld [vmem:[#allocation7 + $0x1b8] sm:$0xf]
        %v2373 = vld [vmem:[#allocation7 + $0x1bc] sm:$0xf]
        %v2374 = vld [vmem:[#allocation7 + $0x1c0] sm:$0xf]
        %v2375 = vld [vmem:[#allocation7 + $0x1c4] sm:$0xf]
        %v2376 = vld [vmem:[#allocation7 + $0x1c8] sm:$0xf]
        %v2377 = vld [vmem:[#allocation7 + $0x1cc] sm:$0xf]
        %v2378 = vld [vmem:[#allocation7 + $0x1d0] sm:$0xf]
        %v2379 = vld [vmem:[#allocation7 + $0x1d4] sm:$0xf]
        %v2380 = vld [vmem:[#allocation7 + $0x1d8] sm:$0xf]
        %v2381 = vld [vmem:[#allocation7 + $0x1dc] sm:$0xf]
        %v2382 = vld [vmem:[#allocation7 + $0x1e0] sm:$0xf]
        %v2383 = vld [vmem:[#allocation7 + $0x1e4] sm:$0xf]
        %v2384 = vld [vmem:[#allocation7 + $0x1e8] sm:$0xf]
        %v2385 = vld [vmem:[#allocation7 + $0x1ec] sm:$0xf]
        %v2386 = vld [vmem:[#allocation7 + $0x1f0] sm:$0xf]
        %v2387 = vld [vmem:[#allocation7 + $0x1f4] sm:$0xf]
        %v2388 = vld [vmem:[#allocation7 + $0x1f8] sm:$0xf]
        %v2389 = vld [vmem:[#allocation7 + $0x1fc] sm:$0xf]
        %v2390 = vld [vmem:[#allocation7 + $0x200] sm:$0xf]
        %v2391 = vld [vmem:[#allocation7 + $0x204] sm:$0xf]
        %v2392 = vld [vmem:[#allocation7 + $0x208] sm:$0xf]
        %v2393 = vld [vmem:[#allocation7 + $0x20c] sm:$0xf]
        %v2394 = vld [vmem:[#allocation7 + $0x210] sm:$0xf]
        %v2395 = vld [vmem:[#allocation7 + $0x214] sm:$0xf]
        %v2396 = vld [vmem:[#allocation7 + $0x218] sm:$0xf]
        %v2397 = vld [vmem:[#allocation7 + $0x21c] sm:$0xf]
        %v2398 = vld [vmem:[#allocation7 + $0x220] sm:$0xf]
        %v2399 = vld [vmem:[#allocation7 + $0x224] sm:$0xf]
        %v2400 = vld [vmem:[#allocation7 + $0x228] sm:$0xf]
        %v2401 = vld [vmem:[#allocation7 + $0x22c] sm:$0xf]
        %v2402 = vld [vmem:[#allocation7 + $0x230] sm:$0xf]
        %v2403 = vld [vmem:[#allocation7 + $0x234] sm:$0xf]
        %v2404 = vld [vmem:[#allocation7 + $0x238] sm:$0xf]
        %v2405 = vld [vmem:[#allocation7 + $0x23c] sm:$0xf]
        %v2406 = vld [vmem:[%s4] sm:$0x1]
        %v2408 = vlaneseq
        %v2409 = vshrl.u32 %v2408, 7
        %v2410 = vsub.s32 0, %v2409
        %v2411 = vrot.slane %v2406, %v2410
        %v2557 = vunpack.c.l.b16 %v2262
        %v2558 = vunpack.c.l.b16 %v2263
        %v2559 = vunpack.c.l.b16 %v2264
        %v2560 = vunpack.c.l.b16 %v2265
        %v2561 = vunpack.c.l.b16 %v2266
        %v2562 = vunpack.c.l.b16 %v2267
        %v2563 = vunpack.c.l.b16 %v2268
        %v2564 = vunpack.c.l.b16 %v2269
        %v2565 = vunpack.c.l.b16 %v2270
        %v2566 = vunpack.c.l.b16 %v2271
        %v2567 = vunpack.c.l.b16 %v2272
        %v2568 = vunpack.c.l.b16 %v2273
        %v2569 = vunpack.c.l.b16 %v2274
        %v2570 = vunpack.c.l.b16 %v2275
        %v2571 = vunpack.c.l.b16 %v2276
        %v2572 = vunpack.c.l.b16 %v2277
        %v2573 = vunpack.c.l.b16 %v2278
        %v2574 = vunpack.c.l.b16 %v2279
        %v2575 = vunpack.c.l.b16 %v2280
        %v2576 = vunpack.c.l.b16 %v2281
        %v2577 = vunpack.c.l.b16 %v2282
        %v2578 = vunpack.c.l.b16 %v2283
        %v2579 = vunpack.c.l.b16 %v2284
        %v2580 = vunpack.c.l.b16 %v2285
        %v2581 = vunpack.c.l.b16 %v2286
        %v2582 = vunpack.c.l.b16 %v2287
        %v2583 = vunpack.c.l.b16 %v2288
        %v2584 = vunpack.c.l.b16 %v2289
        %v2585 = vunpack.c.l.b16 %v2290
        %v2586 = vunpack.c.l.b16 %v2291
        %v2587 = vunpack.c.l.b16 %v2292
        %v2588 = vunpack.c.l.b16 %v2293
        %v2589 = vunpack.c.l.b16 %v2294
        %v2590 = vunpack.c.l.b16 %v2295
        %v2591 = vunpack.c.l.b16 %v2296
        %v2592 = vunpack.c.l.b16 %v2297
        %v2593 = vunpack.c.l.b16 %v2298
        %v2594 = vunpack.c.l.b16 %v2299
        %v2595 = vunpack.c.l.b16 %v2300
        %v2596 = vunpack.c.l.b16 %v2301
        %v2597 = vunpack.c.l.b16 %v2302
        %v2598 = vunpack.c.l.b16 %v2303
        %v2599 = vunpack.c.l.b16 %v2304
        %v2600 = vunpack.c.l.b16 %v2305
        %v2601 = vunpack.c.l.b16 %v2306
        %v2602 = vunpack.c.l.b16 %v2307
        %v2603 = vunpack.c.l.b16 %v2308
        %v2604 = vunpack.c.l.b16 %v2309
        %v2605 = vunpack.c.l.b16 %v2310
        %v2606 = vunpack.c.l.b16 %v2311
        %v2607 = vunpack.c.l.b16 %v2312
        %v2608 = vunpack.c.l.b16 %v2313
        %v2609 = vunpack.c.l.b16 %v2314
        %v2610 = vunpack.c.l.b16 %v2315
        %v2611 = vunpack.c.l.b16 %v2316
        %v2612 = vunpack.c.l.b16 %v2317
        %v2613 = vunpack.c.l.b16 %v2318
        %v2614 = vunpack.c.l.b16 %v2319
        %v2615 = vunpack.c.l.b16 %v2320
        %v2616 = vunpack.c.l.b16 %v2321
        %v2617 = vunpack.c.l.b16 %v2322
        %v2618 = vunpack.c.l.b16 %v2323
        %v2619 = vunpack.c.l.b16 %v2324
        %v2620 = vunpack.c.l.b16 %v2325
        %v2621 = vunpack.c.l.b16 %v2326
        %v2622 = vunpack.c.l.b16 %v2327
        %v2623 = vunpack.c.l.b16 %v2328
        %v2624 = vunpack.c.l.b16 %v2329
        %v2625 = vunpack.c.l.b16 %v2330
        %v2626 = vunpack.c.l.b16 %v2331
        %v2627 = vunpack.c.l.b16 %v2332
        %v2628 = vunpack.c.l.b16 %v2333
        %v2629 = vunpack.c.l.b16 %v2334
        %v2630 = vunpack.c.l.b16 %v2335
        %v2631 = vunpack.c.l.b16 %v2336
        %v2632 = vunpack.c.l.b16 %v2337
        %v2633 = vunpack.c.l.b16 %v2338
        %v2634 = vunpack.c.l.b16 %v2339
        %v2635 = vunpack.c.l.b16 %v2340
        %v2636 = vunpack.c.l.b16 %v2341
        %v2637 = vunpack.c.l.b16 %v2342
        %v2638 = vunpack.c.l.b16 %v2343
        %v2639 = vunpack.c.l.b16 %v2344
        %v2640 = vunpack.c.l.b16 %v2345
        %v2641 = vunpack.c.l.b16 %v2346
        %v2642 = vunpack.c.l.b16 %v2347
        %v2643 = vunpack.c.l.b16 %v2348
        %v2644 = vunpack.c.l.b16 %v2349
        %v2645 = vunpack.c.l.b16 %v2350
        %v2646 = vunpack.c.l.b16 %v2351
        %v2647 = vunpack.c.l.b16 %v2352
        %v2648 = vunpack.c.l.b16 %v2353
        %v2649 = vunpack.c.l.b16 %v2354
        %v2650 = vunpack.c.l.b16 %v2355
        %v2651 = vunpack.c.l.b16 %v2356
        %v2652 = vunpack.c.l.b16 %v2357
        %v2653 = vunpack.c.l.b16 %v2358
        %v2654 = vunpack.c.l.b16 %v2359
        %v2655 = vunpack.c.l.b16 %v2360
        %v2656 = vunpack.c.l.b16 %v2361
        %v2657 = vunpack.c.l.b16 %v2362
        %v2658 = vunpack.c.l.b16 %v2363
        %v2659 = vunpack.c.l.b16 %v2364
        %v2660 = vunpack.c.l.b16 %v2365
        %v2661 = vunpack.c.l.b16 %v2366
        %v2662 = vunpack.c.l.b16 %v2367
        %v2663 = vunpack.c.l.b16 %v2368
        %v2664 = vunpack.c.l.b16 %v2369
        %v2665 = vunpack.c.l.b16 %v2370
        %v2666 = vunpack.c.l.b16 %v2371
        %v2667 = vunpack.c.l.b16 %v2372
        %v2668 = vunpack.c.l.b16 %v2373
        %v2669 = vunpack.c.l.b16 %v2374
        %v2670 = vunpack.c.l.b16 %v2375
        %v2671 = vunpack.c.l.b16 %v2376
        %v2672 = vunpack.c.l.b16 %v2377
        %v2673 = vunpack.c.l.b16 %v2378
        %v2674 = vunpack.c.l.b16 %v2379
        %v2675 = vunpack.c.l.b16 %v2380
        %v2676 = vunpack.c.l.b16 %v2381
        %v2677 = vunpack.c.l.b16 %v2382
        %v2678 = vunpack.c.l.b16 %v2383
        %v2679 = vunpack.c.l.b16 %v2384
        %v2680 = vunpack.c.l.b16 %v2385
        %v2681 = vunpack.c.l.b16 %v2386
        %v2682 = vunpack.c.l.b16 %v2387
        %v2683 = vunpack.c.l.b16 %v2388
        %v2684 = vunpack.c.l.b16 %v2389
        %v2685 = vunpack.c.l.b16 %v2390
        %v2686 = vunpack.c.l.b16 %v2391
        %v2687 = vunpack.c.l.b16 %v2392
        %v2688 = vunpack.c.l.b16 %v2393
        %v2689 = vunpack.c.l.b16 %v2394
        %v2690 = vunpack.c.l.b16 %v2395
        %v2691 = vunpack.c.l.b16 %v2396
        %v2692 = vunpack.c.l.b16 %v2397
        %v2693 = vunpack.c.l.b16 %v2398
        %v2694 = vunpack.c.l.b16 %v2399
        %v2695 = vunpack.c.l.b16 %v2400
        %v2696 = vunpack.c.l.b16 %v2401
        %v2697 = vunpack.c.l.b16 %v2402
        %v2698 = vunpack.c.l.b16 %v2403
        %v2699 = vunpack.c.l.b16 %v2404
        %v2700 = vunpack.c.l.b16 %v2405
        %v2701 = vpack.c.b16 %v2558, %v2557
        %v2702 = vpack.c.b16 %v2560, %v2559
        %v2703 = vpack.c.b16 %v2562, %v2561
        %v2704 = vpack.c.b16 %v2564, %v2563
        %v2705 = vpack.c.b16 %v2566, %v2565
        %v2706 = vpack.c.b16 %v2568, %v2567
        %v2707 = vpack.c.b16 %v2570, %v2569
        %v2708 = vpack.c.b16 %v2572, %v2571
        %v2709 = vpack.c.b16 %v2574, %v2573
        %v2710 = vpack.c.b16 %v2576, %v2575
        %v2711 = vpack.c.b16 %v2578, %v2577
        %v2712 = vpack.c.b16 %v2580, %v2579
        %v2713 = vpack.c.b16 %v2582, %v2581
        %v2714 = vpack.c.b16 %v2584, %v2583
        %v2715 = vpack.c.b16 %v2586, %v2585
        %v2716 = vpack.c.b16 %v2588, %v2587
        %v2717 = vpack.c.b16 %v2590, %v2589
        %v2718 = vpack.c.b16 %v2592, %v2591
        %v2719 = vpack.c.b16 %v2594, %v2593
        %v2720 = vpack.c.b16 %v2596, %v2595
        %v2721 = vpack.c.b16 %v2598, %v2597
        %v2722 = vpack.c.b16 %v2600, %v2599
        %v2723 = vpack.c.b16 %v2602, %v2601
        %v2724 = vpack.c.b16 %v2604, %v2603
        %v2725 = vpack.c.b16 %v2606, %v2605
        %v2726 = vpack.c.b16 %v2608, %v2607
        %v2727 = vpack.c.b16 %v2610, %v2609
        %v2728 = vpack.c.b16 %v2612, %v2611
        %v2729 = vpack.c.b16 %v2614, %v2613
        %v2730 = vpack.c.b16 %v2616, %v2615
        %v2731 = vpack.c.b16 %v2618, %v2617
        %v2732 = vpack.c.b16 %v2620, %v2619
        %v2733 = vpack.c.b16 %v2622, %v2621
        %v2734 = vpack.c.b16 %v2624, %v2623
        %v2735 = vpack.c.b16 %v2626, %v2625
        %v2736 = vpack.c.b16 %v2628, %v2627
        %v2737 = vpack.c.b16 %v2630, %v2629
        %v2738 = vpack.c.b16 %v2632, %v2631
        %v2739 = vpack.c.b16 %v2634, %v2633
        %v2740 = vpack.c.b16 %v2636, %v2635
        %v2741 = vpack.c.b16 %v2638, %v2637
        %v2742 = vpack.c.b16 %v2640, %v2639
        %v2743 = vpack.c.b16 %v2642, %v2641
        %v2744 = vpack.c.b16 %v2644, %v2643
        %v2745 = vpack.c.b16 %v2646, %v2645
        %v2746 = vpack.c.b16 %v2648, %v2647
        %v2747 = vpack.c.b16 %v2650, %v2649
        %v2748 = vpack.c.b16 %v2652, %v2651
        %v2749 = vpack.c.b16 %v2654, %v2653
        %v2750 = vpack.c.b16 %v2656, %v2655
        %v2751 = vpack.c.b16 %v2658, %v2657
        %v2752 = vpack.c.b16 %v2660, %v2659
        %v2753 = vpack.c.b16 %v2662, %v2661
        %v2754 = vpack.c.b16 %v2664, %v2663
        %v2755 = vpack.c.b16 %v2666, %v2665
        %v2756 = vpack.c.b16 %v2668, %v2667
        %v2757 = vpack.c.b16 %v2670, %v2669
        %v2758 = vpack.c.b16 %v2672, %v2671
        %v2759 = vpack.c.b16 %v2674, %v2673
        %v2760 = vpack.c.b16 %v2676, %v2675
        %v2761 = vpack.c.b16 %v2678, %v2677
        %v2762 = vpack.c.b16 %v2680, %v2679
        %v2763 = vpack.c.b16 %v2682, %v2681
        %v2764 = vpack.c.b16 %v2684, %v2683
        %v2765 = vpack.c.b16 %v2686, %v2685
        %v2766 = vpack.c.b16 %v2688, %v2687
        %v2767 = vpack.c.b16 %v2690, %v2689
        %v2768 = vpack.c.b16 %v2692, %v2691
        %v2769 = vpack.c.b16 %v2694, %v2693
        %v2770 = vpack.c.b16 %v2696, %v2695
        %v2771 = vpack.c.b16 %v2698, %v2697
        %v2772 = vpack.c.b16 %v2700, %v2699
        %2845 = vmatprep.subr.bf16.mxu0 0
        %2846 = vmatpush1.bf16.msra.mxu0 %v2708
        %2847 = vmatprep.subr.bf16.mxu0 0
        %2848 = vmatpush1.bf16.msra.mxu0 %v2707
        %2849 = vmatprep.subr.bf16.mxu0 0
        %2850 = vmatpush1.bf16.msra.mxu0 %v2706
        %2851 = vmatprep.subr.bf16.mxu0 0
        %2852 = vmatpush1.bf16.msra.mxu0 %v2705
        %2853 = vmatprep.subr.bf16.mxu0 0
        %2854 = vmatpush1.bf16.msra.mxu0 %v2704
        %2855 = vmatprep.subr.bf16.mxu0 0
        %2856 = vmatpush1.bf16.msra.mxu0 %v2703
        %2857 = vmatprep.subr.bf16.mxu0 0
        %2858 = vmatpush1.bf16.msra.mxu0 %v2702
        %2859 = vmatprep.subr.bf16.mxu0 0
        %2860 = vmatpush1.bf16.msra.mxu0 %v2701
        %2861 = vmatprep.subr.bf16.mxu0 0
        %2862 = vmatpush2.bf16.msra.mxu0 %v2716
        %2863 = vmatprep.subr.bf16.mxu0 0
        %2864 = vmatpush2.bf16.msra.mxu0 %v2715
        %2865 = vmatprep.subr.bf16.mxu0 0
        %2866 = vmatpush2.bf16.msra.mxu0 %v2714
        %2867 = vmatprep.subr.bf16.mxu0 0
        %2868 = vmatpush2.bf16.msra.mxu0 %v2713
        %2869 = vmatprep.subr.bf16.mxu0 0
        %2870 = vmatpush2.bf16.msra.mxu0 %v2712
        %2871 = vmatprep.subr.bf16.mxu0 0
        %2872 = vmatpush2.bf16.msra.mxu0 %v2711
        %2873 = vmatprep.subr.bf16.mxu0 0
        %2874 = vmatpush2.bf16.msra.mxu0 %v2710
        %2875 = vmatprep.subr.bf16.mxu0 0
        %2876 = vmatpush2.bf16.msra.mxu0 %v2709
        %2877 = vmatprep.mubr.bf16.mxu0 %v2032
        %2878 = vmatmul.mubr.bf16.gmra.mxu0 %v1723
        %v2879 = vpop.f32.mrf.mxu0
        %v2880 = vadd.f32 %v2411, %v2879
        %v2881 = vpop.f32.mrf.mxu0
        %v2882 = vpop.f32.mrf.mxu0
        %v2883 = vadd.f32 %v2411, %v2882
        %v2884 = vpop.f32.mrf.mxu0
        %2885 = vmatprep.mubr.bf16.mxu0 %v2040
        %2886 = vmatmul.mubr.bf16.gmra.mxu0 %v1724
        %v2887 = vpop.f32.mrf.mxu0
        %v2888 = vadd.f32 %v2411, %v2887
        %v2889 = vpop.f32.mrf.mxu0
        %v2890 = vpop.f32.mrf.mxu0
        %v2891 = vadd.f32 %v2411, %v2890
        %v2892 = vpop.f32.mrf.mxu0
        %2893 = vmatprep.mubr.bf16.mxu0 %v2048
        %2894 = vmatmul.mubr.bf16.gmra.mxu0 %v1725
        %v2895 = vpop.f32.mrf.mxu0
        %v2896 = vadd.f32 %v2411, %v2895
        %v2897 = vpop.f32.mrf.mxu0
        %v2898 = vpop.f32.mrf.mxu0
        %v2899 = vadd.f32 %v2411, %v2898
        %v2900 = vpop.f32.mrf.mxu0
        %2901 = vmatprep.mubr.bf16.mxu0 %v2056
        %2902 = vmatmul.mubr.bf16.gmra.mxu0 %v1726
        %v2903 = vpop.f32.mrf.mxu0
        %v2904 = vadd.f32 %v2411, %v2903
        %v2905 = vpop.f32.mrf.mxu0
        %v2906 = vpop.f32.mrf.mxu0
        %v2907 = vadd.f32 %v2411, %v2906
        %v2908 = vpop.f32.mrf.mxu0
        %2909 = vmatprep.mubr.bf16.mxu0 %v2064
        %2910 = vmatmul.mubr.bf16.gmra.mxu0 %v1727
        %v2911 = vpop.f32.mrf.mxu0
        %v2912 = vadd.f32 %v2411, %v2911
        %v2913 = vpop.f32.mrf.mxu0
        %v2914 = vpop.f32.mrf.mxu0
        %v2915 = vadd.f32 %v2411, %v2914
        %v2916 = vpop.f32.mrf.mxu0
        %2917 = vmatprep.mubr.bf16.mxu0 %v2072
        %2918 = vmatmul.mubr.bf16.gmra.mxu0 %v1728
        %v2919 = vpop.f32.mrf.mxu0
        %v2920 = vadd.f32 %v2411, %v2919
        %v2921 = vpop.f32.mrf.mxu0
        %v2922 = vpop.f32.mrf.mxu0
        %v2923 = vadd.f32 %v2411, %v2922
        %v2924 = vpop.f32.mrf.mxu0
        %2925 = vmatprep.mubr.bf16.mxu0 %v2080
        %2926 = vmatmul.mubr.bf16.gmra.mxu0 %v1729
        %v2927 = vpop.f32.mrf.mxu0
        %v2928 = vadd.f32 %v2411, %v2927
        %v2929 = vpop.f32.mrf.mxu0
        %v2930 = vpop.f32.mrf.mxu0
        %v2931 = vadd.f32 %v2411, %v2930
        %v2932 = vpop.f32.mrf.mxu0
        %2933 = vmatprep.mubr.bf16.mxu0 %v2088
        %2934 = vmatmul.mubr.bf16.gmra.mxu0 %v1730
        %v2935 = vpop.f32.mrf.mxu0
        %v2936 = vadd.f32 %v2411, %v2935
        %v2937 = vpop.f32.mrf.mxu0
        %v2938 = vpop.f32.mrf.mxu0
        %v2939 = vadd.f32 %v2411, %v2938
        %v2940 = vpop.f32.mrf.mxu0
        %2941 = vmatprep.mubr.bf16.mxu0 %v2096
        %2942 = vmatmul.mubr.bf16.gmra.mxu0 %v1731
        %v2943 = vpop.f32.mrf.mxu0
        %v2944 = vadd.f32 %v2411, %v2943
        %v2945 = vpop.f32.mrf.mxu0
        %v2946 = vpop.f32.mrf.mxu0
        %v2947 = vadd.f32 %v2411, %v2946
        %v2948 = vpop.f32.mrf.mxu0
        %2949 = vmatprep.mubr.bf16.mxu0 %v2104
        %2950 = vmatmul.mubr.bf16.gmra.mxu0 %v1732
        %v2951 = vpop.f32.mrf.mxu0
        %v2952 = vadd.f32 %v2411, %v2951
        %v2953 = vpop.f32.mrf.mxu0
        %v2954 = vpop.f32.mrf.mxu0
        %v2955 = vadd.f32 %v2411, %v2954
        %v2956 = vpop.f32.mrf.mxu0
        %2957 = vmatprep.mubr.bf16.mxu0 %v2112
        %2958 = vmatmul.mubr.bf16.gmra.mxu0 %v1733
        %v2959 = vpop.f32.mrf.mxu0
        %v2960 = vadd.f32 %v2411, %v2959
        %v2961 = vpop.f32.mrf.mxu0
        %v2962 = vpop.f32.mrf.mxu0
        %v2963 = vadd.f32 %v2411, %v2962
        %v2964 = vpop.f32.mrf.mxu0
        %2965 = vmatprep.mubr.bf16.mxu0 %v2120
        %2966 = vmatmul.mubr.bf16.gmra.mxu0 %v1734
        %v2967 = vpop.f32.mrf.mxu0
        %v2968 = vadd.f32 %v2411, %v2967
        %v2969 = vpop.f32.mrf.mxu0
        %v2970 = vpop.f32.mrf.mxu0
        %v2971 = vadd.f32 %v2411, %v2970
        %v2972 = vpop.f32.mrf.mxu0
        %2973 = vmatprep.mubr.bf16.mxu0 %v2128
        %2974 = vmatmul.mubr.bf16.gmra.mxu0 %v1735
        %v2975 = vpop.f32.mrf.mxu0
        %v2976 = vadd.f32 %v2411, %v2975
        %v2977 = vpop.f32.mrf.mxu0
        %v2978 = vpop.f32.mrf.mxu0
        %v2979 = vadd.f32 %v2411, %v2978
        %v2980 = vpop.f32.mrf.mxu0
        %2981 = vmatprep.mubr.bf16.mxu0 %v2136
        %2982 = vmatmul.mubr.bf16.gmra.mxu0 %v1736
        %v2983 = vpop.f32.mrf.mxu0
        %v2984 = vadd.f32 %v2411, %v2983
        %v2985 = vpop.f32.mrf.mxu0
        %v2986 = vpop.f32.mrf.mxu0
        %v2987 = vadd.f32 %v2411, %v2986
        %v2988 = vpop.f32.mrf.mxu0
        %2989 = vmatprep.mubr.bf16.mxu0 %v2144
        %2990 = vmatmul.mubr.bf16.gmra.mxu0 %v1737
        %v2991 = vpop.f32.mrf.mxu0
        %v2992 = vadd.f32 %v2411, %v2991
        %v2993 = vpop.f32.mrf.mxu0
        %v2994 = vpop.f32.mrf.mxu0
        %v2995 = vadd.f32 %v2411, %v2994
        %v2996 = vpop.f32.mrf.mxu0
        %2997 = vmatprep.mubr.bf16.mxu0 %v2152
        %2998 = vmatmul.mubr.bf16.gmra.mxu0 %v1738
        %v2999 = vpop.f32.mrf.mxu0
        %v3000 = vadd.f32 %v2411, %v2999
        %v3001 = vpop.f32.mrf.mxu0
        %v3002 = vpop.f32.mrf.mxu0
        %v3003 = vadd.f32 %v2411, %v3002
        %v3004 = vpop.f32.mrf.mxu0
        %3005 = vdwg.mxu0
        %3006 = vmatprep.subr.bf16.mxu0 0
        %3007 = vmatpush1.bf16.msra.mxu0 %v2724
        %3008 = vmatprep.subr.bf16.mxu0 0
        %3009 = vmatpush1.bf16.msra.mxu0 %v2723
        %3010 = vmatprep.subr.bf16.mxu0 0
        %3011 = vmatpush1.bf16.msra.mxu0 %v2722
        %3012 = vmatprep.subr.bf16.mxu0 0
        %3013 = vmatpush1.bf16.msra.mxu0 %v2721
        %3014 = vmatprep.subr.bf16.mxu0 0
        %3015 = vmatpush1.bf16.msra.mxu0 %v2720
        %3016 = vmatprep.subr.bf16.mxu0 0
        %3017 = vmatpush1.bf16.msra.mxu0 %v2719
        %3018 = vmatprep.subr.bf16.mxu0 0
        %3019 = vmatpush1.bf16.msra.mxu0 %v2718
        %3020 = vmatprep.subr.bf16.mxu0 0
        %3021 = vmatpush1.bf16.msra.mxu0 %v2717
        %3022 = vmatprep.subr.bf16.mxu0 0
        %3023 = vmatpush2.bf16.msra.mxu0 %v2732
        %3024 = vmatprep.subr.bf16.mxu0 0
        %3025 = vmatpush2.bf16.msra.mxu0 %v2731
        %3026 = vmatprep.subr.bf16.mxu0 0
        %3027 = vmatpush2.bf16.msra.mxu0 %v2730
        %3028 = vmatprep.subr.bf16.mxu0 0
        %3029 = vmatpush2.bf16.msra.mxu0 %v2729
        %3030 = vmatprep.subr.bf16.mxu0 0
        %3031 = vmatpush2.bf16.msra.mxu0 %v2728
        %3032 = vmatprep.subr.bf16.mxu0 0
        %3033 = vmatpush2.bf16.msra.mxu0 %v2727
        %3034 = vmatprep.subr.bf16.mxu0 0
        %3035 = vmatpush2.bf16.msra.mxu0 %v2726
        %3036 = vmatprep.subr.bf16.mxu0 0
        %3037 = vmatpush2.bf16.msra.mxu0 %v2725
        %3038 = vmatprep.mubr.bf16.mxu0 %v1724
        %3039 = vmatmul.mubr.bf16.gmra.mxu0 %v2189
        %v3040 = vpop.f32.mrf.mxu0
        %v3041 = vadd.f32 %v2880, %v3040
        %v3042 = vpop.f32.mrf.mxu0
        %v3043 = vpop.f32.mrf.mxu0
        %v3044 = vadd.f32 %v2883, %v3043
        %v3045 = vpop.f32.mrf.mxu0
        %3046 = vmatprep.mubr.bf16.mxu0 %v1725
        %3047 = vmatmul.mubr.bf16.gmra.mxu0 %v2191
        %v3048 = vpop.f32.mrf.mxu0
        %v3049 = vadd.f32 %v2888, %v3048
        %v3050 = vpop.f32.mrf.mxu0
        %v3051 = vpop.f32.mrf.mxu0
        %v3052 = vadd.f32 %v2891, %v3051
        %v3053 = vpop.f32.mrf.mxu0
        %3054 = vmatprep.mubr.bf16.mxu0 %v1726
        %3055 = vmatmul.mubr.bf16.gmra.mxu0 %v2193
        %v3056 = vpop.f32.mrf.mxu0
        %v3057 = vadd.f32 %v2896, %v3056
        %v3058 = vpop.f32.mrf.mxu0
        %v3059 = vpop.f32.mrf.mxu0
        %v3060 = vadd.f32 %v2899, %v3059
        %v3061 = vpop.f32.mrf.mxu0
        %3062 = vmatprep.mubr.bf16.mxu0 %v1727
        %3063 = vmatmul.mubr.bf16.gmra.mxu0 %v2195
        %v3064 = vpop.f32.mrf.mxu0
        %v3065 = vadd.f32 %v2904, %v3064
        %v3066 = vpop.f32.mrf.mxu0
        %v3067 = vpop.f32.mrf.mxu0
        %v3068 = vadd.f32 %v2907, %v3067
        %v3069 = vpop.f32.mrf.mxu0
        %3070 = vmatprep.mubr.bf16.mxu0 %v1728
        %3071 = vmatmul.mubr.bf16.gmra.mxu0 %v2197
        %v3072 = vpop.f32.mrf.mxu0
        %v3073 = vadd.f32 %v2912, %v3072
        %v3074 = vpop.f32.mrf.mxu0
        %v3075 = vpop.f32.mrf.mxu0
        %v3076 = vadd.f32 %v2915, %v3075
        %v3077 = vpop.f32.mrf.mxu0
        %3078 = vmatprep.mubr.bf16.mxu0 %v1729
        %3079 = vmatmul.mubr.bf16.gmra.mxu0 %v2199
        %v3080 = vpop.f32.mrf.mxu0
        %v3081 = vadd.f32 %v2920, %v3080
        %v3082 = vpop.f32.mrf.mxu0
        %v3083 = vpop.f32.mrf.mxu0
        %v3084 = vadd.f32 %v2923, %v3083
        %v3085 = vpop.f32.mrf.mxu0
        %3086 = vmatprep.mubr.bf16.mxu0 %v1730
        %3087 = vmatmul.mubr.bf16.gmra.mxu0 %v2201
        %v3088 = vpop.f32.mrf.mxu0
        %v3089 = vadd.f32 %v2928, %v3088
        %v3090 = vpop.f32.mrf.mxu0
        %v3091 = vpop.f32.mrf.mxu0
        %v3092 = vadd.f32 %v2931, %v3091
        %v3093 = vpop.f32.mrf.mxu0
        %3094 = vmatprep.mubr.bf16.mxu0 %v1731
        %3095 = vmatmul.mubr.bf16.gmra.mxu0 %v2203
        %v3096 = vpop.f32.mrf.mxu0
        %v3097 = vadd.f32 %v2936, %v3096
        %v3098 = vpop.f32.mrf.mxu0
        %v3099 = vpop.f32.mrf.mxu0
        %v3100 = vadd.f32 %v2939, %v3099
        %v3101 = vpop.f32.mrf.mxu0
        %3102 = vmatprep.mubr.bf16.mxu0 %v1732
        %3103 = vmatmul.mubr.bf16.gmra.mxu0 %v2205
        %v3104 = vpop.f32.mrf.mxu0
        %v3105 = vadd.f32 %v2944, %v3104
        %v3106 = vpop.f32.mrf.mxu0
        %v3107 = vpop.f32.mrf.mxu0
        %v3108 = vadd.f32 %v2947, %v3107
        %v3109 = vpop.f32.mrf.mxu0
        %3110 = vmatprep.mubr.bf16.mxu0 %v1733
        %3111 = vmatmul.mubr.bf16.gmra.mxu0 %v2207
        %v3112 = vpop.f32.mrf.mxu0
        %v3113 = vadd.f32 %v2952, %v3112
        %v3114 = vpop.f32.mrf.mxu0
        %v3115 = vpop.f32.mrf.mxu0
        %v3116 = vadd.f32 %v2955, %v3115
        %v3117 = vpop.f32.mrf.mxu0
        %3118 = vmatprep.mubr.bf16.mxu0 %v1734
        %3119 = vmatmul.mubr.bf16.gmra.mxu0 %v2209
        %v3120 = vpop.f32.mrf.mxu0
        %v3121 = vadd.f32 %v2960, %v3120
        %v3122 = vpop.f32.mrf.mxu0
        %v3123 = vpop.f32.mrf.mxu0
        %v3124 = vadd.f32 %v2963, %v3123
        %v3125 = vpop.f32.mrf.mxu0
        %3126 = vmatprep.mubr.bf16.mxu0 %v1735
        %3127 = vmatmul.mubr.bf16.gmra.mxu0 %v2211
        %v3128 = vpop.f32.mrf.mxu0
        %v3129 = vadd.f32 %v2968, %v3128
        %v3130 = vpop.f32.mrf.mxu0
        %v3131 = vpop.f32.mrf.mxu0
        %v3132 = vadd.f32 %v2971, %v3131
        %v3133 = vpop.f32.mrf.mxu0
        %3134 = vmatprep.mubr.bf16.mxu0 %v1736
        %3135 = vmatmul.mubr.bf16.gmra.mxu0 %v2213
        %v3136 = vpop.f32.mrf.mxu0
        %v3137 = vadd.f32 %v2976, %v3136
        %v3138 = vpop.f32.mrf.mxu0
        %v3139 = vpop.f32.mrf.mxu0
        %v3140 = vadd.f32 %v2979, %v3139
        %v3141 = vpop.f32.mrf.mxu0
        %3142 = vmatprep.mubr.bf16.mxu0 %v1737
        %3143 = vmatmul.mubr.bf16.gmra.mxu0 %v2215
        %v3144 = vpop.f32.mrf.mxu0
        %v3145 = vadd.f32 %v2984, %v3144
        %v3146 = vpop.f32.mrf.mxu0
        %v3147 = vpop.f32.mrf.mxu0
        %v3148 = vadd.f32 %v2987, %v3147
        %v3149 = vpop.f32.mrf.mxu0
        %3150 = vmatprep.mubr.bf16.mxu0 %v1738
        %3151 = vmatmul.mubr.bf16.gmra.mxu0 %v2217
        %v3152 = vpop.f32.mrf.mxu0
        %v3153 = vadd.f32 %v2992, %v3152
        %v3154 = vpop.f32.mrf.mxu0
        %v3155 = vpop.f32.mrf.mxu0
        %v3156 = vadd.f32 %v2995, %v3155
        %v3157 = vpop.f32.mrf.mxu0
        %3158 = vmatprep.mubr.bf16.mxu0 %v1739
        %3159 = vmatmul.mubr.bf16.gmra.mxu0 %v2219
        %v3160 = vpop.f32.mrf.mxu0
        %v3161 = vadd.f32 %v3000, %v3160
        %v3162 = vpop.f32.mrf.mxu0
        %v3163 = vpop.f32.mrf.mxu0
        %v3164 = vadd.f32 %v3003, %v3163
        %v3165 = vpop.f32.mrf.mxu0
        %3166 = vdwg.mxu0
        %3167 = vmatprep.subr.bf16.mxu0 0
        %3168 = vmatpush1.bf16.msra.mxu0 %v2740
        %3169 = vmatprep.subr.bf16.mxu0 0
        %3170 = vmatpush1.bf16.msra.mxu0 %v2739
        %3171 = vmatprep.subr.bf16.mxu0 0
        %3172 = vmatpush1.bf16.msra.mxu0 %v2738
        %3173 = vmatprep.subr.bf16.mxu0 0
        %3174 = vmatpush1.bf16.msra.mxu0 %v2737
        %3175 = vmatprep.subr.bf16.mxu0 0
        %3176 = vmatpush1.bf16.msra.mxu0 %v2736
        %3177 = vmatprep.subr.bf16.mxu0 0
        %3178 = vmatpush1.bf16.msra.mxu0 %v2735
        %3179 = vmatprep.subr.bf16.mxu0 0
        %3180 = vmatpush1.bf16.msra.mxu0 %v2734
        %3181 = vmatprep.subr.bf16.mxu0 0
        %3182 = vmatpush1.bf16.msra.mxu0 %v2733
        %3183 = vmatprep.subr.bf16.mxu0 0
        %3184 = vmatpush2.bf16.msra.mxu0 %v2748
        %3185 = vmatprep.subr.bf16.mxu0 0
        %3186 = vmatpush2.bf16.msra.mxu0 %v2747
        %3187 = vmatprep.subr.bf16.mxu0 0
        %3188 = vmatpush2.bf16.msra.mxu0 %v2746
        %3189 = vmatprep.subr.bf16.mxu0 0
        %3190 = vmatpush2.bf16.msra.mxu0 %v2745
        %3191 = vmatprep.subr.bf16.mxu0 0
        %3192 = vmatpush2.bf16.msra.mxu0 %v2744
        %3193 = vmatprep.subr.bf16.mxu0 0
        %3194 = vmatpush2.bf16.msra.mxu0 %v2743
        %3195 = vmatprep.subr.bf16.mxu0 0
        %3196 = vmatpush2.bf16.msra.mxu0 %v2742
        %3197 = vmatprep.subr.bf16.mxu0 0
        %3198 = vmatpush2.bf16.msra.mxu0 %v2741
        %3199 = vmatprep.mubr.bf16.mxu0 %v2191
        %3200 = vmatmul.mubr.bf16.gmra.mxu0 %v2040
        %v3201 = vpop.f32.mrf.mxu0
        %v3202 = vadd.f32 %v3041, %v3201
        %v3203 = vpop.f32.mrf.mxu0
        %v3204 = vpop.f32.mrf.mxu0
        %v3205 = vadd.f32 %v3044, %v3204
        %v3206 = vpop.f32.mrf.mxu0
        %3207 = vmatprep.mubr.bf16.mxu0 %v2193
        %3208 = vmatmul.mubr.bf16.gmra.mxu0 %v2048
        %v3209 = vpop.f32.mrf.mxu0
        %v3210 = vadd.f32 %v3049, %v3209
        %v3211 = vpop.f32.mrf.mxu0
        %v3212 = vpop.f32.mrf.mxu0
        %v3213 = vadd.f32 %v3052, %v3212
        %v3214 = vpop.f32.mrf.mxu0
        %3215 = vmatprep.mubr.bf16.mxu0 %v2195
        %3216 = vmatmul.mubr.bf16.gmra.mxu0 %v2056
        %v3217 = vpop.f32.mrf.mxu0
        %v3218 = vadd.f32 %v3057, %v3217
        %v3219 = vpop.f32.mrf.mxu0
        %v3220 = vpop.f32.mrf.mxu0
        %v3221 = vadd.f32 %v3060, %v3220
        %v3222 = vpop.f32.mrf.mxu0
        %3223 = vmatprep.mubr.bf16.mxu0 %v2197
        %3224 = vmatmul.mubr.bf16.gmra.mxu0 %v2064
        %v3225 = vpop.f32.mrf.mxu0
        %v3226 = vadd.f32 %v3065, %v3225
        %v3227 = vpop.f32.mrf.mxu0
        %v3228 = vpop.f32.mrf.mxu0
        %v3229 = vadd.f32 %v3068, %v3228
        %v3230 = vpop.f32.mrf.mxu0
        %3231 = vmatprep.mubr.bf16.mxu0 %v2199
        %3232 = vmatmul.mubr.bf16.gmra.mxu0 %v2072
        %v3233 = vpop.f32.mrf.mxu0
        %v3234 = vadd.f32 %v3073, %v3233
        %v3235 = vpop.f32.mrf.mxu0
        %v3236 = vpop.f32.mrf.mxu0
        %v3237 = vadd.f32 %v3076, %v3236
        %v3238 = vpop.f32.mrf.mxu0
        %3239 = vmatprep.mubr.bf16.mxu0 %v2201
        %3240 = vmatmul.mubr.bf16.gmra.mxu0 %v2080
        %v3241 = vpop.f32.mrf.mxu0
        %v3242 = vadd.f32 %v3081, %v3241
        %v3243 = vpop.f32.mrf.mxu0
        %v3244 = vpop.f32.mrf.mxu0
        %v3245 = vadd.f32 %v3084, %v3244
        %v3246 = vpop.f32.mrf.mxu0
        %3247 = vmatprep.mubr.bf16.mxu0 %v2203
        %3248 = vmatmul.mubr.bf16.gmra.mxu0 %v2088
        %v3249 = vpop.f32.mrf.mxu0
        %v3250 = vadd.f32 %v3089, %v3249
        %v3251 = vpop.f32.mrf.mxu0
        %v3252 = vpop.f32.mrf.mxu0
        %v3253 = vadd.f32 %v3092, %v3252
        %v3254 = vpop.f32.mrf.mxu0
        %3255 = vmatprep.mubr.bf16.mxu0 %v2205
        %3256 = vmatmul.mubr.bf16.gmra.mxu0 %v2096
        %v3257 = vpop.f32.mrf.mxu0
        %v3258 = vadd.f32 %v3097, %v3257
        %v3259 = vpop.f32.mrf.mxu0
        %v3260 = vpop.f32.mrf.mxu0
        %v3261 = vadd.f32 %v3100, %v3260
        %v3262 = vpop.f32.mrf.mxu0
        %3263 = vmatprep.mubr.bf16.mxu0 %v2207
        %3264 = vmatmul.mubr.bf16.gmra.mxu0 %v2104
        %v3265 = vpop.f32.mrf.mxu0
        %v3266 = vadd.f32 %v3105, %v3265
        %v3267 = vpop.f32.mrf.mxu0
        %v3268 = vpop.f32.mrf.mxu0
        %v3269 = vadd.f32 %v3108, %v3268
        %v3270 = vpop.f32.mrf.mxu0
        %3271 = vmatprep.mubr.bf16.mxu0 %v2209
        %3272 = vmatmul.mubr.bf16.gmra.mxu0 %v2112
        %v3273 = vpop.f32.mrf.mxu0
        %v3274 = vadd.f32 %v3113, %v3273
        %v3275 = vpop.f32.mrf.mxu0
        %v3276 = vpop.f32.mrf.mxu0
        %v3277 = vadd.f32 %v3116, %v3276
        %v3278 = vpop.f32.mrf.mxu0
        %3279 = vmatprep.mubr.bf16.mxu0 %v2211
        %3280 = vmatmul.mubr.bf16.gmra.mxu0 %v2120
        %v3281 = vpop.f32.mrf.mxu0
        %v3282 = vadd.f32 %v3121, %v3281
        %v3283 = vpop.f32.mrf.mxu0
        %v3284 = vpop.f32.mrf.mxu0
        %v3285 = vadd.f32 %v3124, %v3284
        %v3286 = vpop.f32.mrf.mxu0
        %3287 = vmatprep.mubr.bf16.mxu0 %v2213
        %3288 = vmatmul.mubr.bf16.gmra.mxu0 %v2128
        %v3289 = vpop.f32.mrf.mxu0
        %v3290 = vadd.f32 %v3129, %v3289
        %v3291 = vpop.f32.mrf.mxu0
        %v3292 = vpop.f32.mrf.mxu0
        %v3293 = vadd.f32 %v3132, %v3292
        %v3294 = vpop.f32.mrf.mxu0
        %3295 = vmatprep.mubr.bf16.mxu0 %v2215
        %3296 = vmatmul.mubr.bf16.gmra.mxu0 %v2136
        %v3297 = vpop.f32.mrf.mxu0
        %v3298 = vadd.f32 %v3137, %v3297
        %v3299 = vpop.f32.mrf.mxu0
        %v3300 = vpop.f32.mrf.mxu0
        %v3301 = vadd.f32 %v3140, %v3300
        %v3302 = vpop.f32.mrf.mxu0
        %3303 = vmatprep.mubr.bf16.mxu0 %v2217
        %3304 = vmatmul.mubr.bf16.gmra.mxu0 %v2144
        %v3305 = vpop.f32.mrf.mxu0
        %v3306 = vadd.f32 %v3145, %v3305
        %v3307 = vpop.f32.mrf.mxu0
        %v3308 = vpop.f32.mrf.mxu0
        %v3309 = vadd.f32 %v3148, %v3308
        %v3310 = vpop.f32.mrf.mxu0
        %3311 = vmatprep.mubr.bf16.mxu0 %v2219
        %3312 = vmatmul.mubr.bf16.gmra.mxu0 %v2152
        %v3313 = vpop.f32.mrf.mxu0
        %v3314 = vadd.f32 %v3153, %v3313
        %v3315 = vpop.f32.mrf.mxu0
        %v3316 = vpop.f32.mrf.mxu0
        %v3317 = vadd.f32 %v3156, %v3316
        %v3318 = vpop.f32.mrf.mxu0
        %3319 = vmatprep.mubr.bf16.mxu0 %v2247
        %3320 = vmatmul.mubr.bf16.gmra.mxu0 %v2243
        %v3321 = vpop.f32.mrf.mxu0
        %v3322 = vadd.f32 %v3161, %v3321
        %v3323 = vpop.f32.mrf.mxu0
        %v3324 = vpop.f32.mrf.mxu0
        %v3325 = vadd.f32 %v3164, %v3324
        %v3326 = vpop.f32.mrf.mxu0
        %3327 = vdwg.mxu0
        %3328 = vmatprep.subr.bf16.mxu0 0
        %3329 = vmatpush1.bf16.msra.mxu0 %v2756
        %3330 = vmatprep.subr.bf16.mxu0 0
        %3331 = vmatpush1.bf16.msra.mxu0 %v2755
        %3332 = vmatprep.subr.bf16.mxu0 0
        %3333 = vmatpush1.bf16.msra.mxu0 %v2754
        %3334 = vmatprep.subr.bf16.mxu0 0
        %3335 = vmatpush1.bf16.msra.mxu0 %v2753
        %3336 = vmatprep.subr.bf16.mxu0 0
        %3337 = vmatpush1.bf16.msra.mxu0 %v2752
        %3338 = vmatprep.subr.bf16.mxu0 0
        %3339 = vmatpush1.bf16.msra.mxu0 %v2751
        %3340 = vmatprep.subr.bf16.mxu0 0
        %3341 = vmatpush1.bf16.msra.mxu0 %v2750
        %3342 = vmatprep.subr.bf16.mxu0 0
        %3343 = vmatpush1.bf16.msra.mxu0 %v2749
        %3344 = vmatprep.subr.bf16.mxu0 0
        %3345 = vmatpush2.bf16.msra.mxu0 %v2764
        %3346 = vmatprep.subr.bf16.mxu0 0
        %3347 = vmatpush2.bf16.msra.mxu0 %v2763
        %3348 = vmatprep.subr.bf16.mxu0 0
        %3349 = vmatpush2.bf16.msra.mxu0 %v2762
        %3350 = vmatprep.subr.bf16.mxu0 0
        %3351 = vmatpush2.bf16.msra.mxu0 %v2761
        %3352 = vmatprep.subr.bf16.mxu0 0
        %3353 = vmatpush2.bf16.msra.mxu0 %v2760
        %3354 = vmatprep.subr.bf16.mxu0 0
        %3355 = vmatpush2.bf16.msra.mxu0 %v2759
        %3356 = vmatprep.subr.bf16.mxu0 0
        %3357 = vmatpush2.bf16.msra.mxu0 %v2758
        %3358 = vmatprep.subr.bf16.mxu0 0
        %3359 = vmatpush2.bf16.msra.mxu0 %v2757
        %3360 = vmatprep.mubr.bf16.mxu0 %v2048
        %3361 = vmatmul.mubr.bf16.gmra.mxu0 %v1725
        %v3362 = vpop.f32.mrf.mxu0
        %v3363 = vadd.f32 %v3202, %v3362
        %v3364 = vpop.f32.mrf.mxu0
        %v3365 = vpop.f32.mrf.mxu0
        %v3366 = vadd.f32 %v3205, %v3365
        %v3367 = vpop.f32.mrf.mxu0
        %3368 = vmatprep.mubr.bf16.mxu0 %v2056
        %3369 = vmatmul.mubr.bf16.gmra.mxu0 %v1726
        %v3370 = vpop.f32.mrf.mxu0
        %v3371 = vadd.f32 %v3210, %v3370
        %v3372 = vpop.f32.mrf.mxu0
        %v3373 = vpop.f32.mrf.mxu0
        %v3374 = vadd.f32 %v3213, %v3373
        %v3375 = vpop.f32.mrf.mxu0
        %3376 = vmatprep.mubr.bf16.mxu0 %v2064
        %3377 = vmatmul.mubr.bf16.gmra.mxu0 %v1727
        %v3378 = vpop.f32.mrf.mxu0
        %v3379 = vadd.f32 %v3218, %v3378
        %v3380 = vpop.f32.mrf.mxu0
        %v3381 = vpop.f32.mrf.mxu0
        %v3382 = vadd.f32 %v3221, %v3381
        %v3383 = vpop.f32.mrf.mxu0
        %3384 = vmatprep.mubr.bf16.mxu0 %v2072
        %3385 = vmatmul.mubr.bf16.gmra.mxu0 %v1728
        %v3386 = vpop.f32.mrf.mxu0
        %v3387 = vadd.f32 %v3226, %v3386
        %v3388 = vpop.f32.mrf.mxu0
        %v3389 = vpop.f32.mrf.mxu0
        %v3390 = vadd.f32 %v3229, %v3389
        %v3391 = vpop.f32.mrf.mxu0
        %3392 = vmatprep.mubr.bf16.mxu0 %v2080
        %3393 = vmatmul.mubr.bf16.gmra.mxu0 %v1729
        %v3394 = vpop.f32.mrf.mxu0
        %v3395 = vadd.f32 %v3234, %v3394
        %v3396 = vpop.f32.mrf.mxu0
        %v3397 = vpop.f32.mrf.mxu0
        %v3398 = vadd.f32 %v3237, %v3397
        %v3399 = vpop.f32.mrf.mxu0
        %3400 = vmatprep.mubr.bf16.mxu0 %v2088
        %3401 = vmatmul.mubr.bf16.gmra.mxu0 %v1730
        %v3402 = vpop.f32.mrf.mxu0
        %v3403 = vadd.f32 %v3242, %v3402
        %v3404 = vpop.f32.mrf.mxu0
        %v3405 = vpop.f32.mrf.mxu0
        %v3406 = vadd.f32 %v3245, %v3405
        %v3407 = vpop.f32.mrf.mxu0
        %3408 = vmatprep.mubr.bf16.mxu0 %v2096
        %3409 = vmatmul.mubr.bf16.gmra.mxu0 %v1731
        %v3410 = vpop.f32.mrf.mxu0
        %v3411 = vadd.f32 %v3250, %v3410
        %v3412 = vpop.f32.mrf.mxu0
        %v3413 = vpop.f32.mrf.mxu0
        %v3414 = vadd.f32 %v3253, %v3413
        %v3415 = vpop.f32.mrf.mxu0
        %3416 = vmatprep.mubr.bf16.mxu0 %v2104
        %3417 = vmatmul.mubr.bf16.gmra.mxu0 %v1732
        %v3418 = vpop.f32.mrf.mxu0
        %v3419 = vadd.f32 %v3258, %v3418
        %v3420 = vpop.f32.mrf.mxu0
        %v3421 = vpop.f32.mrf.mxu0
        %v3422 = vadd.f32 %v3261, %v3421
        %v3423 = vpop.f32.mrf.mxu0
        %3424 = vmatprep.mubr.bf16.mxu0 %v2112
        %3425 = vmatmul.mubr.bf16.gmra.mxu0 %v1733
        %v3426 = vpop.f32.mrf.mxu0
        %v3427 = vadd.f32 %v3266, %v3426
        %v3428 = vpop.f32.mrf.mxu0
        %v3429 = vpop.f32.mrf.mxu0
        %v3430 = vadd.f32 %v3269, %v3429
        %v3431 = vpop.f32.mrf.mxu0
        %3432 = vmatprep.mubr.bf16.mxu0 %v2120
        %3433 = vmatmul.mubr.bf16.gmra.mxu0 %v1734
        %v3434 = vpop.f32.mrf.mxu0
        %v3435 = vadd.f32 %v3274, %v3434
        %v3436 = vpop.f32.mrf.mxu0
        %v3437 = vpop.f32.mrf.mxu0
        %v3438 = vadd.f32 %v3277, %v3437
        %v3439 = vpop.f32.mrf.mxu0
        %3440 = vmatprep.mubr.bf16.mxu0 %v2128
        %3441 = vmatmul.mubr.bf16.gmra.mxu0 %v1735
        %v3442 = vpop.f32.mrf.mxu0
        %v3443 = vadd.f32 %v3282, %v3442
        %v3444 = vpop.f32.mrf.mxu0
        %v3445 = vpop.f32.mrf.mxu0
        %v3446 = vadd.f32 %v3285, %v3445
        %v3447 = vpop.f32.mrf.mxu0
        %3448 = vmatprep.mubr.bf16.mxu0 %v2136
        %3449 = vmatmul.mubr.bf16.gmra.mxu0 %v1736
        %v3450 = vpop.f32.mrf.mxu0
        %v3451 = vadd.f32 %v3290, %v3450
        %v3452 = vpop.f32.mrf.mxu0
        %v3453 = vpop.f32.mrf.mxu0
        %v3454 = vadd.f32 %v3293, %v3453
        %v3455 = vpop.f32.mrf.mxu0
        %3456 = vmatprep.mubr.bf16.mxu0 %v2144
        %3457 = vmatmul.mubr.bf16.gmra.mxu0 %v1737
        %v3458 = vpop.f32.mrf.mxu0
        %v3459 = vadd.f32 %v3298, %v3458
        %v3460 = vpop.f32.mrf.mxu0
        %v3461 = vpop.f32.mrf.mxu0
        %v3462 = vadd.f32 %v3301, %v3461
        %v3463 = vpop.f32.mrf.mxu0
        %3464 = vmatprep.mubr.bf16.mxu0 %v2152
        %3465 = vmatmul.mubr.bf16.gmra.mxu0 %v1738
        %v3466 = vpop.f32.mrf.mxu0
        %v3467 = vadd.f32 %v3306, %v3466
        %v3468 = vpop.f32.mrf.mxu0
        %v3469 = vpop.f32.mrf.mxu0
        %v3470 = vadd.f32 %v3309, %v3469
        %v3471 = vpop.f32.mrf.mxu0
        %3472 = vmatprep.mubr.bf16.mxu0 %v2243
        %3473 = vmatmul.mubr.bf16.gmra.mxu0 %v1739
        %v3474 = vpop.f32.mrf.mxu0
        %v3475 = vadd.f32 %v3314, %v3474
        %v3476 = vpop.f32.mrf.mxu0
        %v3477 = vpop.f32.mrf.mxu0
        %v3478 = vadd.f32 %v3317, %v3477
        %v3479 = vpop.f32.mrf.mxu0
        %3480 = vmatprep.mubr.bf16.mxu0 %v2256
        %3481 = vmatmul.mubr.bf16.gmra.mxu0 %v1740
        %v3482 = vpop.f32.mrf.mxu0
        %v3483 = vadd.f32 %v3322, %v3482
        %v3484 = vpop.f32.mrf.mxu0
        %v3485 = vpop.f32.mrf.mxu0
        %v3486 = vadd.f32 %v3325, %v3485
        %v3487 = vpop.f32.mrf.mxu0
        %3488 = vdwg.mxu0
        %3489 = vmatprep.subr.bf16.mxu0 0
        %3490 = vmatpush1.bf16.msra.mxu0 %v2772
        %3491 = vmatprep.subr.bf16.mxu0 0
        %3492 = vmatpush1.bf16.msra.mxu0 %v2771
        %3493 = vmatprep.subr.bf16.mxu0 0
        %3494 = vmatpush1.bf16.msra.mxu0 %v2770
        %3495 = vmatprep.subr.bf16.mxu0 0
        %3496 = vmatpush1.bf16.msra.mxu0 %v2769
        %3497 = vmatprep.subr.bf16.mxu0 0
        %3498 = vmatpush1.bf16.msra.mxu0 %v2768
        %3499 = vmatprep.subr.bf16.mxu0 0
        %3500 = vmatpush1.bf16.msra.mxu0 %v2767
        %3501 = vmatprep.subr.bf16.mxu0 0
        %3502 = vmatpush1.bf16.msra.mxu0 %v2766
        %3503 = vmatprep.subr.bf16.mxu0 0
        %3504 = vmatpush1.bf16.msra.mxu0 %v2765
        %3505 = vmatprep.subr.bf16.mxu0 0
        %3506 = vmatpush2.bf16.msra.mxu0 0
        %3507 = vmatprep.subr.bf16.mxu0 0
        %3508 = vmatpush2.bf16.msra.mxu0 0
        %3509 = vmatprep.subr.bf16.mxu0 0
        %3510 = vmatpush2.bf16.msra.mxu0 0
        %3511 = vmatprep.subr.bf16.mxu0 0
        %3512 = vmatpush2.bf16.msra.mxu0 0
        %3513 = vmatprep.subr.bf16.mxu0 0
        %3514 = vmatpush2.bf16.msra.mxu0 0
        %3515 = vmatprep.subr.bf16.mxu0 0
        %3516 = vmatpush2.bf16.msra.mxu0 0
        %3517 = vmatprep.subr.bf16.mxu0 0
        %3518 = vmatpush2.bf16.msra.mxu0 0
        %3519 = vmatprep.subr.bf16.mxu0 0
        %3520 = vmatpush2.bf16.msra.mxu0 0
        %3521 = vmatprep.mubr.bf16.mxu0 0
        %3522 = vmatmul.mubr.bf16.gmra.mxu0 %v2193
        %v3523 = vpop.f32.mrf.mxu0
        %v3524 = vadd.f32 %v3363, %v3523
        %v3525 = vpop.f32.mrf.mxu0
        %v3526 = vpop.f32.mrf.mxu0
        %v3527 = vadd.f32 %v3366, %v3526
        %v3528 = vpop.f32.mrf.mxu0
        %3529 = vmatprep.mubr.bf16.mxu0 0
        %3530 = vmatmul.mubr.bf16.gmra.mxu0 %v2195
        %v3531 = vpop.f32.mrf.mxu0
        %v3532 = vadd.f32 %v3371, %v3531
        %v3533 = vpop.f32.mrf.mxu0
        %v3534 = vpop.f32.mrf.mxu0
        %v3535 = vadd.f32 %v3374, %v3534
        %v3536 = vpop.f32.mrf.mxu0
        %3537 = vmatprep.mubr.bf16.mxu0 0
        %3538 = vmatmul.mubr.bf16.gmra.mxu0 %v2197
        %v3539 = vpop.f32.mrf.mxu0
        %v3540 = vadd.f32 %v3379, %v3539
        %v3541 = vpop.f32.mrf.mxu0
        %v3542 = vpop.f32.mrf.mxu0
        %v3543 = vadd.f32 %v3382, %v3542
        %v3544 = vpop.f32.mrf.mxu0
        %3545 = vmatprep.mubr.bf16.mxu0 0
        %3546 = vmatmul.mubr.bf16.gmra.mxu0 %v2199
        %v3547 = vpop.f32.mrf.mxu0
        %v3548 = vadd.f32 %v3387, %v3547
        %v3549 = vpop.f32.mrf.mxu0
        %v3550 = vpop.f32.mrf.mxu0
        %v3551 = vadd.f32 %v3390, %v3550
        %v3552 = vpop.f32.mrf.mxu0
        %3553 = vmatprep.mubr.bf16.mxu0 0
        %3554 = vmatmul.mubr.bf16.gmra.mxu0 %v2201
        %v3555 = vpop.f32.mrf.mxu0
        %v3556 = vadd.f32 %v3395, %v3555
        %v3557 = vpop.f32.mrf.mxu0
        %v3558 = vpop.f32.mrf.mxu0
        %v3559 = vadd.f32 %v3398, %v3558
        %v3560 = vpop.f32.mrf.mxu0
        %3561 = vmatprep.mubr.bf16.mxu0 0
        %3562 = vmatmul.mubr.bf16.gmra.mxu0 %v2203
        %v3563 = vpop.f32.mrf.mxu0
        %v3564 = vadd.f32 %v3403, %v3563
        %v3565 = vpop.f32.mrf.mxu0
        %v3566 = vpop.f32.mrf.mxu0
        %v3567 = vadd.f32 %v3406, %v3566
        %v3568 = vpop.f32.mrf.mxu0
        %3569 = vmatprep.mubr.bf16.mxu0 0
        %3570 = vmatmul.mubr.bf16.gmra.mxu0 %v2205
        %v3571 = vpop.f32.mrf.mxu0
        %v3572 = vadd.f32 %v3411, %v3571
        %v3573 = vpop.f32.mrf.mxu0
        %v3574 = vpop.f32.mrf.mxu0
        %v3575 = vadd.f32 %v3414, %v3574
        %v3576 = vpop.f32.mrf.mxu0
        %3577 = vmatprep.mubr.bf16.mxu0 0
        %3578 = vmatmul.mubr.bf16.gmra.mxu0 %v2207
        %v3579 = vpop.f32.mrf.mxu0
        %v3580 = vadd.f32 %v3419, %v3579
        %v3581 = vpop.f32.mrf.mxu0
        %v3582 = vpop.f32.mrf.mxu0
        %v3583 = vadd.f32 %v3422, %v3582
        %v3584 = vpop.f32.mrf.mxu0
        %3585 = vmatprep.mubr.bf16.mxu0 0
        %3586 = vmatmul.mubr.bf16.gmra.mxu0 %v2209
        %v3587 = vpop.f32.mrf.mxu0
        %v3588 = vadd.f32 %v3427, %v3587
        %v3589 = vpop.f32.mrf.mxu0
        %v3590 = vpop.f32.mrf.mxu0
        %v3591 = vadd.f32 %v3430, %v3590
        %v3592 = vpop.f32.mrf.mxu0
        %3593 = vmatprep.mubr.bf16.mxu0 0
        %3594 = vmatmul.mubr.bf16.gmra.mxu0 %v2211
        %v3595 = vpop.f32.mrf.mxu0
        %v3596 = vadd.f32 %v3435, %v3595
        %v3597 = vpop.f32.mrf.mxu0
        %v3598 = vpop.f32.mrf.mxu0
        %v3599 = vadd.f32 %v3438, %v3598
        %v3600 = vpop.f32.mrf.mxu0
        %3601 = vmatprep.mubr.bf16.mxu0 0
        %3602 = vmatmul.mubr.bf16.gmra.mxu0 %v2213
        %v3603 = vpop.f32.mrf.mxu0
        %v3604 = vadd.f32 %v3443, %v3603
        %v3605 = vpop.f32.mrf.mxu0
        %v3606 = vpop.f32.mrf.mxu0
        %v3607 = vadd.f32 %v3446, %v3606
        %v3608 = vpop.f32.mrf.mxu0
        %3609 = vmatprep.mubr.bf16.mxu0 0
        %3610 = vmatmul.mubr.bf16.gmra.mxu0 %v2215
        %v3611 = vpop.f32.mrf.mxu0
        %v3612 = vadd.f32 %v3451, %v3611
        %v3613 = vpop.f32.mrf.mxu0
        %v3614 = vpop.f32.mrf.mxu0
        %v3615 = vadd.f32 %v3454, %v3614
        %v3616 = vpop.f32.mrf.mxu0
        %3617 = vmatprep.mubr.bf16.mxu0 0
        %3618 = vmatmul.mubr.bf16.gmra.mxu0 %v2217
        %v3619 = vpop.f32.mrf.mxu0
        %v3620 = vadd.f32 %v3459, %v3619
        %v3621 = vpop.f32.mrf.mxu0
        %v3622 = vpop.f32.mrf.mxu0
        %v3623 = vadd.f32 %v3462, %v3622
        %v3624 = vpop.f32.mrf.mxu0
        %3625 = vmatprep.mubr.bf16.mxu0 0
        %3626 = vmatmul.mubr.bf16.gmra.mxu0 %v2219
        %v3627 = vpop.f32.mrf.mxu0
        %v3628 = vadd.f32 %v3467, %v3627
        %v3629 = vpop.f32.mrf.mxu0
        %v3630 = vpop.f32.mrf.mxu0
        %v3631 = vadd.f32 %v3470, %v3630
        %v3632 = vpop.f32.mrf.mxu0
        %3633 = vmatprep.mubr.bf16.mxu0 0
        %3634 = vmatmul.mubr.bf16.gmra.mxu0 %v2247
        %v3635 = vpop.f32.mrf.mxu0
        %v3636 = vadd.f32 %v3475, %v3635
        %v3637 = vpop.f32.mrf.mxu0
        %v3638 = vpop.f32.mrf.mxu0
        %v3639 = vadd.f32 %v3478, %v3638
        %v3640 = vpop.f32.mrf.mxu0
        %3641 = vmatprep.mubr.bf16.mxu0 0
        %3642 = vmatmul.mubr.bf16.gmra.mxu0 %v2260
        %v3643 = vpop.f32.mrf.mxu0
        %v3644 = vadd.f32 %v3483, %v3643
        %v3645 = vpop.f32.mrf.mxu0
        %v3646 = vpop.f32.mrf.mxu0
        %v3647 = vadd.f32 %v3486, %v3646
        %v3648 = vpop.f32.mrf.mxu0
        %3649 = vdwg.mxu0
        %v3650 = vmax.f32 %v3524, 0.0
        %v3651 = vmax.f32 %v3527, 0.0
        %v3652 = vmax.f32 %v3532, 0.0
        %v3653 = vmax.f32 %v3535, 0.0
        %v3654 = vmax.f32 %v3540, 0.0
        %v3655 = vmax.f32 %v3543, 0.0
        %v3656 = vmax.f32 %v3548, 0.0
        %v3657 = vmax.f32 %v3551, 0.0
        %v3658 = vmax.f32 %v3556, 0.0
        %v3659 = vmax.f32 %v3559, 0.0
        %v3660 = vmax.f32 %v3564, 0.0
        %v3661 = vmax.f32 %v3567, 0.0
        %v3662 = vmax.f32 %v3572, 0.0
        %v3663 = vmax.f32 %v3575, 0.0
        %v3664 = vmax.f32 %v3580, 0.0
        %v3665 = vmax.f32 %v3583, 0.0
        %v3666 = vmax.f32 %v3588, 0.0
        %v3667 = vmax.f32 %v3591, 0.0
        %v3668 = vmax.f32 %v3596, 0.0
        %v3669 = vmax.f32 %v3599, 0.0
        %v3670 = vmax.f32 %v3604, 0.0
        %v3671 = vmax.f32 %v3607, 0.0
        %v3672 = vmax.f32 %v3612, 0.0
        %v3673 = vmax.f32 %v3615, 0.0
        %v3674 = vmax.f32 %v3620, 0.0
        %v3675 = vmax.f32 %v3623, 0.0
        %v3676 = vmax.f32 %v3628, 0.0
        %v3677 = vmax.f32 %v3631, 0.0
        %v3678 = vmax.f32 %v3636, 0.0
        %v3679 = vmax.f32 %v3639, 0.0
        %v3680 = vmax.f32 %v3644, 0.0
        %v3681 = vmax.f32 %v3647, 0.0
        %v3682 = vpack.c.bf16 %v3651, %v3650
        %v3683 = vpack.c.bf16 %v3653, %v3652
        %v3684 = vpack.c.bf16 %v3655, %v3654
        %v3685 = vpack.c.bf16 %v3657, %v3656
        %v3686 = vpack.c.bf16 %v3659, %v3658
        %v3687 = vpack.c.bf16 %v3661, %v3660
        %v3688 = vpack.c.bf16 %v3663, %v3662
        %v3689 = vpack.c.bf16 %v3665, %v3664
        %v3690 = vpack.c.bf16 %v3667, %v3666
        %v3691 = vpack.c.bf16 %v3669, %v3668
        %v3692 = vpack.c.bf16 %v3671, %v3670
        %v3693 = vpack.c.bf16 %v3673, %v3672
        %v3694 = vpack.c.bf16 %v3675, %v3674
        %v3695 = vpack.c.bf16 %v3677, %v3676
        %v3696 = vpack.c.bf16 %v3679, %v3678
        %v3697 = vpack.c.bf16 %v3681, %v3680
        %v3698 = vld [vmem:[#allocation8] sm:$0xf]
        %v3699 = vld [vmem:[#allocation8 + $0x4] sm:$0xf]
        %v3700 = vld [vmem:[#allocation8 + $0x8] sm:$0xf]
        %v3701 = vld [vmem:[#allocation8 + $0xc] sm:$0xf]
        %v3702 = vld [vmem:[#allocation8 + $0x10] sm:$0xf]
        %v3703 = vld [vmem:[#allocation8 + $0x14] sm:$0xf]
        %v3704 = vld [vmem:[#allocation8 + $0x18] sm:$0xf]
        %v3705 = vld [vmem:[#allocation8 + $0x1c] sm:$0xf]
        %v3706 = vld [vmem:[#allocation8 + $0x20] sm:$0xf]
        %v3707 = vld [vmem:[#allocation8 + $0x24] sm:$0xf]
        %v3708 = vld [vmem:[#allocation8 + $0x28] sm:$0xf]
        %v3709 = vld [vmem:[#allocation8 + $0x2c] sm:$0xf]
        %v3710 = vld [vmem:[#allocation8 + $0x30] sm:$0xf]
        %v3711 = vld [vmem:[#allocation8 + $0x34] sm:$0xf]
        %v3712 = vld [vmem:[#allocation8 + $0x38] sm:$0xf]
        %v3713 = vld [vmem:[#allocation8 + $0x3c] sm:$0xf]
        %v3714 = vld [vmem:[%s6] sm:$0x1]
        %v3716 = vlaneseq
        %v3717 = vshrl.u32 %v3716, 7
        %v3718 = vsub.s32 0, %v3717
        %v3719 = vrot.slane %v3714, %v3718
        %v3737 = vunpack.c.l.b16 %v3698
        %v3738 = vunpack.c.l.b16 %v3699
        %v3739 = vunpack.c.l.b16 %v3700
        %v3740 = vunpack.c.l.b16 %v3701
        %v3741 = vunpack.c.l.b16 %v3702
        %v3742 = vunpack.c.l.b16 %v3703
        %v3743 = vunpack.c.l.b16 %v3704
        %v3744 = vunpack.c.l.b16 %v3705
        %v3745 = vunpack.c.l.b16 %v3706
        %v3746 = vunpack.c.l.b16 %v3707
        %v3747 = vunpack.c.l.b16 %v3708
        %v3748 = vunpack.c.l.b16 %v3709
        %v3749 = vunpack.c.l.b16 %v3710
        %v3750 = vunpack.c.l.b16 %v3711
        %v3751 = vunpack.c.l.b16 %v3712
        %v3752 = vunpack.c.l.b16 %v3713
        %v3753 = vpack.c.b16 %v3738, %v3737
        %v3754 = vpack.c.b16 %v3740, %v3739
        %v3755 = vpack.c.b16 %v3742, %v3741
        %v3756 = vpack.c.b16 %v3744, %v3743
        %v3757 = vpack.c.b16 %v3746, %v3745
        %v3758 = vpack.c.b16 %v3748, %v3747
        %v3759 = vpack.c.b16 %v3750, %v3749
        %v3760 = vpack.c.b16 %v3752, %v3751
        %3769 = vmatprep.subr.bf16.mxu0 0
        %3770 = vmatpush1.bf16.msra.mxu0 %v3760
        %3771 = vmatprep.subr.bf16.mxu0 0
        %3772 = vmatpush1.bf16.msra.mxu0 %v3759
        %3773 = vmatprep.subr.bf16.mxu0 0
        %3774 = vmatpush1.bf16.msra.mxu0 %v3758
        %3775 = vmatprep.subr.bf16.mxu0 0
        %3776 = vmatpush1.bf16.msra.mxu0 %v3757
        %3777 = vmatprep.subr.bf16.mxu0 0
        %3778 = vmatpush1.bf16.msra.mxu0 %v3756
        %3779 = vmatprep.subr.bf16.mxu0 0
        %3780 = vmatpush1.bf16.msra.mxu0 %v3755
        %3781 = vmatprep.subr.bf16.mxu0 0
        %3782 = vmatpush1.bf16.msra.mxu0 %v3754
        %3783 = vmatprep.subr.bf16.mxu0 0
        %3784 = vmatpush1.bf16.msra.mxu0 %v3753
        %3785 = vmatprep.subr.bf16.mxu0 0
        %3786 = vmatpush2.bf16.msra.mxu0 0
        %3787 = vmatprep.subr.bf16.mxu0 0
        %3788 = vmatpush2.bf16.msra.mxu0 0
        %3789 = vmatprep.subr.bf16.mxu0 0
        %3790 = vmatpush2.bf16.msra.mxu0 0
        %3791 = vmatprep.subr.bf16.mxu0 0
        %3792 = vmatpush2.bf16.msra.mxu0 0
        %3793 = vmatprep.subr.bf16.mxu0 0
        %3794 = vmatpush2.bf16.msra.mxu0 0
        %3795 = vmatprep.subr.bf16.mxu0 0
        %3796 = vmatpush2.bf16.msra.mxu0 0
        %3797 = vmatprep.subr.bf16.mxu0 0
        %3798 = vmatpush2.bf16.msra.mxu0 0
        %3799 = vmatprep.subr.bf16.mxu0 0
        %3800 = vmatpush2.bf16.msra.mxu0 0
        %3801 = vmatprep.mubr.bf16.mxu0 0
        %3802 = vmatmul.mubr.bf16.gmra.mxu0 %v3682
        %v3803 = vpop.f32.mrf.mxu0
        %v3804 = vadd.f32 %v3719, %v3803
        %v3805 = vpop.f32.mrf.mxu0
        %v3806 = vpop.f32.mrf.mxu0
        %v3807 = vadd.f32 %v3719, %v3806
        %v3808 = vpop.f32.mrf.mxu0
        %3809 = vmatprep.mubr.bf16.mxu0 0
        %3810 = vmatmul.mubr.bf16.gmra.mxu0 %v3683
        %v3811 = vpop.f32.mrf.mxu0
        %v3812 = vadd.f32 %v3719, %v3811
        %v3813 = vpop.f32.mrf.mxu0
        %v3814 = vpop.f32.mrf.mxu0
        %v3815 = vadd.f32 %v3719, %v3814
        %v3816 = vpop.f32.mrf.mxu0
        %3817 = vmatprep.mubr.bf16.mxu0 0
        %3818 = vmatmul.mubr.bf16.gmra.mxu0 %v3684
        %v3819 = vpop.f32.mrf.mxu0
        %v3820 = vadd.f32 %v3719, %v3819
        %v3821 = vpop.f32.mrf.mxu0
        %v3822 = vpop.f32.mrf.mxu0
        %v3823 = vadd.f32 %v3719, %v3822
        %v3824 = vpop.f32.mrf.mxu0
        %3825 = vmatprep.mubr.bf16.mxu0 0
        %3826 = vmatmul.mubr.bf16.gmra.mxu0 %v3685
        %v3827 = vpop.f32.mrf.mxu0
        %v3828 = vadd.f32 %v3719, %v3827
        %v3829 = vpop.f32.mrf.mxu0
        %v3830 = vpop.f32.mrf.mxu0
        %v3831 = vadd.f32 %v3719, %v3830
        %v3832 = vpop.f32.mrf.mxu0
        %3833 = vmatprep.mubr.bf16.mxu0 0
        %3834 = vmatmul.mubr.bf16.gmra.mxu0 %v3686
        %v3835 = vpop.f32.mrf.mxu0
        %v3836 = vadd.f32 %v3719, %v3835
        %v3837 = vpop.f32.mrf.mxu0
        %v3838 = vpop.f32.mrf.mxu0
        %v3839 = vadd.f32 %v3719, %v3838
        %v3840 = vpop.f32.mrf.mxu0
        %3841 = vmatprep.mubr.bf16.mxu0 0
        %3842 = vmatmul.mubr.bf16.gmra.mxu0 %v3687
        %v3843 = vpop.f32.mrf.mxu0
        %v3844 = vadd.f32 %v3719, %v3843
        %v3845 = vpop.f32.mrf.mxu0
        %v3846 = vpop.f32.mrf.mxu0
        %v3847 = vadd.f32 %v3719, %v3846
        %v3848 = vpop.f32.mrf.mxu0
        %3849 = vmatprep.mubr.bf16.mxu0 0
        %3850 = vmatmul.mubr.bf16.gmra.mxu0 %v3688
        %v3851 = vpop.f32.mrf.mxu0
        %v3852 = vadd.f32 %v3719, %v3851
        %v3853 = vpop.f32.mrf.mxu0
        %v3854 = vpop.f32.mrf.mxu0
        %v3855 = vadd.f32 %v3719, %v3854
        %v3856 = vpop.f32.mrf.mxu0
        %3857 = vmatprep.mubr.bf16.mxu0 0
        %3858 = vmatmul.mubr.bf16.gmra.mxu0 %v3689
        %v3859 = vpop.f32.mrf.mxu0
        %v3860 = vadd.f32 %v3719, %v3859
        %v3861 = vpop.f32.mrf.mxu0
        %v3862 = vpop.f32.mrf.mxu0
        %v3863 = vadd.f32 %v3719, %v3862
        %v3864 = vpop.f32.mrf.mxu0
        %3865 = vmatprep.mubr.bf16.mxu0 0
        %3866 = vmatmul.mubr.bf16.gmra.mxu0 %v3690
        %v3867 = vpop.f32.mrf.mxu0
        %v3868 = vadd.f32 %v3719, %v3867
        %v3869 = vpop.f32.mrf.mxu0
        %v3870 = vpop.f32.mrf.mxu0
        %v3871 = vadd.f32 %v3719, %v3870
        %v3872 = vpop.f32.mrf.mxu0
        %3873 = vmatprep.mubr.bf16.mxu0 0
        %3874 = vmatmul.mubr.bf16.gmra.mxu0 %v3691
        %v3875 = vpop.f32.mrf.mxu0
        %v3876 = vadd.f32 %v3719, %v3875
        %v3877 = vpop.f32.mrf.mxu0
        %v3878 = vpop.f32.mrf.mxu0
        %v3879 = vadd.f32 %v3719, %v3878
        %v3880 = vpop.f32.mrf.mxu0
        %3881 = vmatprep.mubr.bf16.mxu0 0
        %3882 = vmatmul.mubr.bf16.gmra.mxu0 %v3692
        %v3883 = vpop.f32.mrf.mxu0
        %v3884 = vadd.f32 %v3719, %v3883
        %v3885 = vpop.f32.mrf.mxu0
        %v3886 = vpop.f32.mrf.mxu0
        %v3887 = vadd.f32 %v3719, %v3886
        %v3888 = vpop.f32.mrf.mxu0
        %3889 = vmatprep.mubr.bf16.mxu0 0
        %3890 = vmatmul.mubr.bf16.gmra.mxu0 %v3693
        %v3891 = vpop.f32.mrf.mxu0
        %v3892 = vadd.f32 %v3719, %v3891
        %v3893 = vpop.f32.mrf.mxu0
        %v3894 = vpop.f32.mrf.mxu0
        %v3895 = vadd.f32 %v3719, %v3894
        %v3896 = vpop.f32.mrf.mxu0
        %3897 = vmatprep.mubr.bf16.mxu0 0
        %3898 = vmatmul.mubr.bf16.gmra.mxu0 %v3694
        %v3899 = vpop.f32.mrf.mxu0
        %v3900 = vadd.f32 %v3719, %v3899
        %v3901 = vpop.f32.mrf.mxu0
        %v3902 = vpop.f32.mrf.mxu0
        %v3903 = vadd.f32 %v3719, %v3902
        %v3904 = vpop.f32.mrf.mxu0
        %3905 = vmatprep.mubr.bf16.mxu0 0
        %3906 = vmatmul.mubr.bf16.gmra.mxu0 %v3695
        %v3907 = vpop.f32.mrf.mxu0
        %v3908 = vadd.f32 %v3719, %v3907
        %v3909 = vpop.f32.mrf.mxu0
        %v3910 = vpop.f32.mrf.mxu0
        %v3911 = vadd.f32 %v3719, %v3910
        %v3912 = vpop.f32.mrf.mxu0
        %3913 = vmatprep.mubr.bf16.mxu0 0
        %3914 = vmatmul.mubr.bf16.gmra.mxu0 %v3696
        %v3915 = vpop.f32.mrf.mxu0
        %v3916 = vadd.f32 %v3719, %v3915
        %v3917 = vpop.f32.mrf.mxu0
        %v3918 = vpop.f32.mrf.mxu0
        %v3919 = vadd.f32 %v3719, %v3918
        %v3920 = vpop.f32.mrf.mxu0
        %3921 = vmatprep.mubr.bf16.mxu0 0
        %3922 = vmatmul.mubr.bf16.gmra.mxu0 %v3697
        %v3923 = vpop.f32.mrf.mxu0
        %v3924 = vadd.f32 %v3719, %v3923
        %v3925 = vpop.f32.mrf.mxu0
        %v3926 = vpop.f32.mrf.mxu0
        %v3927 = vadd.f32 %v3719, %v3926
        %v3928 = vpop.f32.mrf.mxu0
        %3929 = vdwg.mxu0
        %s3930 = sadd.s32 %s359, 17
        %s3931 = scalar_lea.vmem %s312, %s3930 [#allocation2]
        %v3932 = vld [vmem:[%s3931] sm:$0xff]
        %v3933 = vld [vmem:[%s3931 + $0x8] sm:$0xff]
        %v3934 = vld [vmem:[%s3931 + $0x10] sm:$0xff]
        %v3935 = vld [vmem:[%s3931 + $0x18] sm:$0xff]
        %v3936 = vld [vmem:[%s3931 + $0x20] sm:$0xff]
        %v3937 = vld [vmem:[%s3931 + $0x28] sm:$0xff]
        %v3938 = vld [vmem:[%s3931 + $0x30] sm:$0xff]
        %v3939 = vld [vmem:[%s3931 + $0x38] sm:$0xff]
        %v3940 = vld [vmem:[%s3931 + $0x40] sm:$0xff]
        %v3941 = vld [vmem:[%s3931 + $0x48] sm:$0xff]
        %v3942 = vld [vmem:[%s3931 + $0x50] sm:$0xff]
        %v3943 = vld [vmem:[%s3931 + $0x58] sm:$0xff]
        %v3944 = vld [vmem:[%s3931 + $0x60] sm:$0xff]
        %v3945 = vld [vmem:[%s3931 + $0x68] sm:$0xff]
        %v3946 = vld [vmem:[%s3931 + $0x70] sm:$0xff]
        %v3947 = vld [vmem:[%s3931 + $0x78] sm:$0xff]
        %v3948 = vld [vmem:[%s3931 + $0x80] sm:$0xff]
        %v3949 = vld [vmem:[%s3931 + $0x88] sm:$0xff]
        %v3950 = vld [vmem:[%s3931 + $0x90] sm:$0xff]
        %v3951 = vld [vmem:[%s3931 + $0x98] sm:$0xff]
        %v3952 = vld [vmem:[%s3931 + $0xa0] sm:$0xff]
        %v3953 = vld [vmem:[%s3931 + $0xa8] sm:$0xff]
        %v3954 = vld [vmem:[%s3931 + $0xb0] sm:$0xff]
        %v3955 = vld [vmem:[%s3931 + $0xb8] sm:$0xff]
        %v3956 = vld [vmem:[%s3931 + $0xc0] sm:$0xff]
        %v3957 = vld [vmem:[%s3931 + $0xc8] sm:$0xff]
        %v3958 = vld [vmem:[%s3931 + $0xd0] sm:$0xff]
        %v3959 = vld [vmem:[%s3931 + $0xd8] sm:$0xff]
        %v3960 = vld [vmem:[%s3931 + $0xe0] sm:$0xff]
        %v3961 = vld [vmem:[%s3931 + $0xe8] sm:$0xff]
        %v3962 = vld [vmem:[%s3931 + $0xf0] sm:$0xff]
        %v3963 = vld [vmem:[%s3931 + $0xf8] sm:$0xff]
        %v3964 = vadd.f32 %v3804, %v3932
        %v3965 = vadd.f32 %v3807, %v3933
        %v3966 = vadd.f32 %v3812, %v3934
        %v3967 = vadd.f32 %v3815, %v3935
        %v3968 = vadd.f32 %v3820, %v3936
        %v3969 = vadd.f32 %v3823, %v3937
        %v3970 = vadd.f32 %v3828, %v3938
        %v3971 = vadd.f32 %v3831, %v3939
        %v3972 = vadd.f32 %v3836, %v3940
        %v3973 = vadd.f32 %v3839, %v3941
        %v3974 = vadd.f32 %v3844, %v3942
        %v3975 = vadd.f32 %v3847, %v3943
        %v3976 = vadd.f32 %v3852, %v3944
        %v3977 = vadd.f32 %v3855, %v3945
        %v3978 = vadd.f32 %v3860, %v3946
        %v3979 = vadd.f32 %v3863, %v3947
        %v3980 = vadd.f32 %v3868, %v3948
        %v3981 = vadd.f32 %v3871, %v3949
        %v3982 = vadd.f32 %v3876, %v3950
        %v3983 = vadd.f32 %v3879, %v3951
        %v3984 = vadd.f32 %v3884, %v3952
        %v3985 = vadd.f32 %v3887, %v3953
        %v3986 = vadd.f32 %v3892, %v3954
        %v3987 = vadd.f32 %v3895, %v3955
        %v3988 = vadd.f32 %v3900, %v3956
        %v3989 = vadd.f32 %v3903, %v3957
        %v3990 = vadd.f32 %v3908, %v3958
        %v3991 = vadd.f32 %v3911, %v3959
        %v3992 = vadd.f32 %v3916, %v3960
        %v3993 = vadd.f32 %v3919, %v3961
        %v3994 = vadd.f32 %v3924, %v3962
        %v3995 = vadd.f32 %v3927, %v3963
        %v3996 = vmax.f32 %v3964, 0.0
        %v3997 = vmax.f32 %v3965, 0.0
        %v3998 = vmax.f32 %v3966, 0.0
        %v3999 = vmax.f32 %v3967, 0.0
        %v4000 = vmax.f32 %v3968, 0.0
        %v4001 = vmax.f32 %v3969, 0.0
        %v4002 = vmax.f32 %v3970, 0.0
        %v4003 = vmax.f32 %v3971, 0.0
        %v4004 = vmax.f32 %v3972, 0.0
        %v4005 = vmax.f32 %v3973, 0.0
        %v4006 = vmax.f32 %v3974, 0.0
        %v4007 = vmax.f32 %v3975, 0.0
        %v4008 = vmax.f32 %v3976, 0.0
        %v4009 = vmax.f32 %v3977, 0.0
        %v4010 = vmax.f32 %v3978, 0.0
        %v4011 = vmax.f32 %v3979, 0.0
        %v4012 = vmax.f32 %v3980, 0.0
        %v4013 = vmax.f32 %v3981, 0.0
        %v4014 = vmax.f32 %v3982, 0.0
        %v4015 = vmax.f32 %v3983, 0.0
        %v4016 = vmax.f32 %v3984, 0.0
        %v4017 = vmax.f32 %v3985, 0.0
        %v4018 = vmax.f32 %v3986, 0.0
        %v4019 = vmax.f32 %v3987, 0.0
        %v4020 = vmax.f32 %v3988, 0.0
        %v4021 = vmax.f32 %v3989, 0.0
        %v4022 = vmax.f32 %v3990, 0.0
        %v4023 = vmax.f32 %v3991, 0.0
        %v4024 = vmax.f32 %v3992, 0.0
        %v4025 = vmax.f32 %v3993, 0.0
        %v4026 = vmax.f32 %v3994, 0.0
        %v4027 = vmax.f32 %v3995, 0.0
        %4028 = vst [vmem:[%s354] sm:$0xff] %v3996
        %4029 = vst [vmem:[%s354 + $0x8] sm:$0xff] %v3997
        %4030 = vst [vmem:[%s354 + $0x10] sm:$0xff] %v3998
        %4031 = vst [vmem:[%s354 + $0x18] sm:$0xff] %v3999
        %4032 = vst [vmem:[%s354 + $0x20] sm:$0xff] %v4000
        %4033 = vst [vmem:[%s354 + $0x28] sm:$0xff] %v4001
        %4034 = vst [vmem:[%s354 + $0x30] sm:$0xff] %v4002
        %4035 = vst [vmem:[%s354 + $0x38] sm:$0xff] %v4003
        %4036 = vst [vmem:[%s354 + $0x40] sm:$0xff] %v4004
        %4037 = vst [vmem:[%s354 + $0x48] sm:$0xff] %v4005
        %4038 = vst [vmem:[%s354 + $0x50] sm:$0xff] %v4006
        %4039 = vst [vmem:[%s354 + $0x58] sm:$0xff] %v4007
        %4040 = vst [vmem:[%s354 + $0x60] sm:$0xff] %v4008
        %4041 = vst [vmem:[%s354 + $0x68] sm:$0xff] %v4009
        %4042 = vst [vmem:[%s354 + $0x70] sm:$0xff] %v4010
        %4043 = vst [vmem:[%s354 + $0x78] sm:$0xff] %v4011
        %4044 = vst [vmem:[%s354 + $0x80] sm:$0xff] %v4012
        %4045 = vst [vmem:[%s354 + $0x88] sm:$0xff] %v4013
        %4046 = vst [vmem:[%s354 + $0x90] sm:$0xff] %v4014
        %4047 = vst [vmem:[%s354 + $0x98] sm:$0xff] %v4015
        %4048 = vst [vmem:[%s354 + $0xa0] sm:$0xff] %v4016
        %4049 = vst [vmem:[%s354 + $0xa8] sm:$0xff] %v4017
        %4050 = vst [vmem:[%s354 + $0xb0] sm:$0xff] %v4018
        %4051 = vst [vmem:[%s354 + $0xb8] sm:$0xff] %v4019
        %4052 = vst [vmem:[%s354 + $0xc0] sm:$0xff] %v4020
        %4053 = vst [vmem:[%s354 + $0xc8] sm:$0xff] %v4021
        %4054 = vst [vmem:[%s354 + $0xd0] sm:$0xff] %v4022
        %4055 = vst [vmem:[%s354 + $0xd8] sm:$0xff] %v4023
        %4056 = vst [vmem:[%s354 + $0xe0] sm:$0xff] %v4024
        %4057 = vst [vmem:[%s354 + $0xe8] sm:$0xff] %v4025
        %4058 = vst [vmem:[%s354 + $0xf0] sm:$0xff] %v4026
        %4059 = vst [vmem:[%s354 + $0xf8] sm:$0xff] %v4027
        %s4060 = sand.u32 %s200, 1
        %s4061 = scalar_lea.sflag [#allocation4], %s4060
        %s4062 = sand.u32 %s200, 1
        %s4063 = smul.addr %s4062, 256
        %s4064 = scalar_lea.vmem [#allocation10], %s4063
        // Predicated region
        $region65: #{tpu_custom_call.1} parent=47 // pred_check
          %p4065 = pneg %p210
        $region66: #{tpu_custom_call.1} parent=47 // pred_check_branch
          %4067 = sbr.rel (%p4065) target = $region68
        $region67: #{tpu_custom_call.1} parent=47 // pred_region
          %s4068 = smul.u32 32, %s31
          %s4070 = ssub.s32 4096, 4096
          %4071 = vsyncadd %s4061, %s4070
          %s4072 = smul.addr %s30, 32
          %s4073 = sadd.s32 %s4068, %s4072
          %s4074 = smul.addr %s4073, 128
          %s4075 = scalar_lea.hbm %s7, %s4074
          %s4076 = sshll.u32 %s4064, 4
          %s4077 = int_to_ptr.vmem [resolvable:$true] %s4076
          %4082 = dma.vmem_to_hbm [thread:$0]  %s4077, 4096, %s4075, %s4061, 128, 128, 8
        $region68: #{tpu_custom_call.1} parent=47 // pred_fallthru
          _
      $region48: #{tpu_custom_call.1} parent=5 // pred_fallthru
        _
      %p4083 = scmp.le.s32.totalorder 2, %s21
      // Predicated region
      $region69: #{tpu_custom_call.1} parent=5 // pred_check
        %p4084 = pneg %p4083
      $region70: #{tpu_custom_call.1} parent=5 // pred_check_branch
        %4086 = sbr.rel (%p4084) target = $region72
      $region71: #{tpu_custom_call.1} parent=5 // pred_region
        %s4087 = ssub.s32 %s21, 2
        // Predicated region
        $region73: #{tpu_custom_call.1} parent=71 // pred_check
          %p4088 = pneg %p216
        $region74: #{tpu_custom_call.1} parent=71 // pred_check_branch
          %4090 = sbr.rel (%p4088) target = $region76
        $region75: #{tpu_custom_call.1} parent=71 // pred_region
          %s4091 = sand.u32 %s201, 1
          %s4092 = scalar_lea.sflag [#allocation4], %s4091
          %s4093 = sand.u32 %s201, 1
          %s4094 = smul.addr %s4093, 256
          %s4095 = scalar_lea.vmem [#allocation10], %s4094
          %4096 = dma.done %s4092, 4096
        $region76: #{tpu_custom_call.1} parent=71 // pred_fallthru
          _
      $region72: #{tpu_custom_call.1} parent=5 // pred_fallthru
        _
    $region6: #{tpu_custom_call.1} parent=1 // loop_footer
      %s25 = sadd.s32 1, %s21
    $region7: #{tpu_custom_call.1} parent=1 // loop_footer_branch
      %20 = sbr.rel target = $region3
    $region8: #{tpu_custom_call.1} parent=1 // loop_exit
      _
    %4097 = vsyncpa [#allocation3], 1
    %s4098 = scalar_lea.sflag [#allocation3], 1
    %4099 = vsyncpa %s4098, 1
    %4100 = vsyncpa [#allocation6], 1
    %4101 = vsyncpa [#allocation9], 1
    %4102 = vsyncpa [#allocation4], 1
    %s4103 = scalar_lea.sflag [#allocation4], 1
    %4104 = vsyncpa %s4103, 1

</llo_original>
